<compile_context>
chip_gen: v6e
topology: v6e:2x2x1
jax: 0.10.0
libtpu: 0.0.40
codegen_flags: <defaults>
</compile_context>

<pallas_src>
import jax
import jax.numpy as jnp
from jax.experimental import pallas as pl
from jax.experimental.pallas import tpu as pltpu


def simple_cnn(x_nchw, params):
    """SimpleCNN.forward: ConvBlock -> ConvBlock -> (conv3x3 -> Sigmoid). NCHW in/out."""
    # TODO(synk): BatchNorm2d is modeled in train mode (batch statistics, biased var);
    # eval-mode running-stats inference / running-stat updates are not modeled.
    x = jnp.transpose(x_nchw, (0, 2, 3, 1)).astype(jnp.float32)      # NCHW -> NHWC
    N, H, W, Cin = x.shape
    Cout = params["w_out"].shape[-1]
    R, Lin, Lout = N * H, W * Cin, W * Cout
    P = N * H * W                                                     # elements per channel
    eps = 1e-5
    inv_p = 1.0 / float(P)

    # ---------------- wrapper-side constant / weight preprocessing ----------------
    def band(w_hwio):
        """(3,3,ci,co) HWIO conv weight -> (3, W*ci, W*co) block-banded bf16 matrices.

        mats[dh][w_in*ci + i, w_out*co + o] = w_hwio[dh, w_in - w_out + 1, i, o]
        (zero outside the 3-tap band), so kernel-row dh's W-direction taps and the
        channel mixing collapse into one lane-dense matmul.
        """
        _, _, ci, co = w_hwio.shape
        mats = []
        for dh in range(3):
            m = jnp.zeros((W, ci, W, co), jnp.float32)
            for dw in range(3):
                e = jnp.eye(W, k=1 - dw, dtype=jnp.float32)           # w_in = w_out + dw - 1
                m = m + e[:, None, :, None] * w_hwio[dh, dw][None, :, None, :]
            mats.append(m.reshape(W * ci, W * co))
        return jnp.stack(mats).astype(jnp.bfloat16)

    def group_mat(C):
        """(W*C, W*C) 0/1 matrix: (lane_sums @ G) -> per-channel totals, lane-replicated."""
        l = jnp.arange(W * C)
        return (l[:, None] % C == l[None, :] % C).astype(jnp.float32)

    def lane_bn(v, C):
        """Per-channel (C,) BN parameter -> (1, W*C) lane layout (lane index = w*C + c)."""
        return jnp.tile(v.reshape(1, C).astype(jnp.float32), (1, W))

    r = jnp.arange(R)
    # row-shift matrices with the image-boundary zero padding baked in
    s_up = (jnp.eye(R, k=-1, dtype=jnp.float32)
            * (r % H != 0)[:, None]).astype(jnp.bfloat16)             # row r <- row r-1
    s_dn = (jnp.eye(R, k=1, dtype=jnp.float32)
            * (r % H != H - 1)[:, None]).astype(jnp.bfloat16)         # row r <- row r+1

    c1, c2 = params["conv1"], params["conv2"]
    args = (
        x.reshape(R, Lin),                                            # lane-dense input (32, 64)
        s_up, s_dn,
        group_mat(Cin), group_mat(Cout),
        lane_bn(c1["bn1_g"], Cin),  lane_bn(c1["bn1_b"], Cin),
        lane_bn(c1["bn2_g"], Cout), lane_bn(c1["bn2_b"], Cout),
        lane_bn(c2["bn1_g"], Cout), lane_bn(c2["bn1_b"], Cout),
        lane_bn(c2["bn2_g"], Cout), lane_bn(c2["bn2_b"], Cout),
        band(c1["w1"]), band(c1["w2"]),
        band(c2["w1"]), band(c2["w2"]),
        band(params["w_out"]),
    )

    # --------------------------------- kernel ---------------------------------
    def kernel(x_ref, sup_ref, sdn_ref, gin_ref, gout_ref,
               g1_ref, b1_ref, g2_ref, b2_ref, g3_ref, b3_ref, g4_ref, b4_ref,
               w1_ref, w2_ref, w3_ref, w4_ref, w5_ref, o_ref):
        sup = sup_ref[...]                                            # (R, R) bf16
        sdn = sdn_ref[...]

        def batchnorm(a, g_mat, g_ref, b_ref):
            # single-pass batch stats; g_mat replicates per-channel sums to every lane
            s1 = jnp.sum(a, axis=0, keepdims=True)                    # (1, L) f32
            s2 = jnp.sum(a * a, axis=0, keepdims=True)
            mean = jnp.dot(s1, g_mat, preferred_element_type=jnp.float32) * inv_p
            ex2 = jnp.dot(s2, g_mat, preferred_element_type=jnp.float32) * inv_p
            var = ex2 - mean * mean
            scale = g_ref[...] * jax.lax.rsqrt(var + eps)
            shift = b_ref[...] - mean * scale
            return a * scale + shift                                  # (R, L) f32

        def conv3x3(a, w_ref, act):
            # a: (R, W*ci) lane-dense; w_ref: (3, W*ci, W*co) block-banded bf16
            ab = a.astype(jnp.bfloat16)
            up = jnp.dot(sup, ab, preferred_element_type=jnp.float32).astype(jnp.bfloat16)
            dn = jnp.dot(sdn, ab, preferred_element_type=jnp.float32).astype(jnp.bfloat16)
            acc = jnp.dot(up, w_ref[0], preferred_element_type=jnp.float32)
            acc = acc + jnp.dot(ab, w_ref[1], preferred_element_type=jnp.float32)
            acc = acc + jnp.dot(dn, w_ref[2], preferred_element_type=jnp.float32)
            if act == "relu":
                return jnp.maximum(acc, 0.0)
            return jax.nn.sigmoid(acc)

        gin = gin_ref[...]
        gout = gout_ref[...]
        a = x_ref[...]
        # conv1 (ConvBlock): BN -> conv -> ReLU -> BN -> conv -> ReLU
        a = conv3x3(batchnorm(a, gin, g1_ref, b1_ref), w1_ref, "relu")
        a = conv3x3(batchnorm(a, gout, g2_ref, b2_ref), w2_ref, "relu")
        # conv2 (ConvBlock)
        a = conv3x3(batchnorm(a, gout, g3_ref, b3_ref), w3_ref, "relu")
        a = conv3x3(batchnorm(a, gout, g4_ref, b4_ref), w4_ref, "relu")
        # conv_out: conv -> Sigmoid
        a = conv3x3(a, w5_ref, "sigmoid")
        o_ref[...] = a                                                # (R, W*Cout) unmasked store

    vmem = pl.BlockSpec(memory_space=pltpu.MemorySpace.VMEM)
    out2 = pl.pallas_call(
        kernel,
        out_shape=jax.ShapeDtypeStruct((R, Lout), jnp.float32),       # lane-dense output (32, 128)
        in_specs=[vmem] * len(args),
        out_specs=vmem,
    )(*args)
    return jnp.transpose(out2.reshape(N, H, W, Cout), (0, 3, 1, 2))   # -> NCHW


def simple_cnn_ref(x_nchw, params):
    """Pure-JAX reference (train-mode BN, f32 conv) for correctness checking only."""
    def bn(x, g, b):
        mean = jnp.mean(x, axis=(0, 2, 3), keepdims=True)
        var = jnp.mean(jnp.square(x - mean), axis=(0, 2, 3), keepdims=True)
        return ((x - mean) * jax.lax.rsqrt(var + 1e-5) * g.reshape(1, -1, 1, 1)
                + b.reshape(1, -1, 1, 1))

    def conv(x, w_hwio):
        return jax.lax.conv_general_dilated(
            x, w_hwio, window_strides=(1, 1), padding="SAME",
            dimension_numbers=("NCHW", "HWIO", "NCHW"))

    c1, c2 = params["conv1"], params["conv2"]
    h = x_nchw.astype(jnp.float32)
    h = jnp.maximum(conv(bn(h, c1["bn1_g"], c1["bn1_b"]), c1["w1"]), 0.0)
    h = jnp.maximum(conv(bn(h, c1["bn2_g"], c1["bn2_b"]), c1["w2"]), 0.0)
    h = jnp.maximum(conv(bn(h, c2["bn1_g"], c2["bn1_b"]), c2["w1"]), 0.0)
    h = jnp.maximum(conv(bn(h, c2["bn2_g"], c2["bn2_b"]), c2["w2"]), 0.0)
    return jax.nn.sigmoid(conv(h, params["w_out"]))


if __name__ == "__main__":
    N, IN_CH, OUT_CH, H, W = 2, 4, 8, 16, 16

    key = jax.random.PRNGKey(0)
    kiter = iter(jax.random.split(key, 20))

    def conv_w(cin, cout):
        bound = 1.0 / jnp.sqrt(jnp.float32(cin * 9))
        return jax.random.uniform(next(kiter), (3, 3, cin, cout), jnp.float32, -bound, bound)

    def bn_p(c):
        g = jax.random.uniform(next(kiter), (c,), jnp.float32, 0.5, 1.5)
        b = jax.random.normal(next(kiter), (c,), jnp.float32) * 0.1
        return g, b

    x = jax.random.normal(next(kiter), (N, IN_CH, H, W), jnp.float32)

    g11, b11 = bn_p(IN_CH)
    g12, b12 = bn_p(OUT_CH)
    g21, b21 = bn_p(OUT_CH)
    g22, b22 = bn_p(OUT_CH)
    params = {
        "conv1": dict(bn1_g=g11, bn1_b=b11, w1=conv_w(IN_CH, OUT_CH),
                      bn2_g=g12, bn2_b=b12, w2=conv_w(OUT_CH, OUT_CH)),
        "conv2": dict(bn1_g=g21, bn1_b=b21, w1=conv_w(OUT_CH, OUT_CH),
                      bn2_g=g22, bn2_b=b22, w2=conv_w(OUT_CH, OUT_CH)),
        "w_out": conv_w(OUT_CH, OUT_CH),
    }

    out = jax.jit(simple_cnn)(x, params)
    out = jax.block_until_ready(out)

    assert out.shape == (N, OUT_CH, H, W), out.shape
    assert bool(jnp.all(jnp.isfinite(out)))
    assert bool(jnp.all((out > 0.0) & (out < 1.0)))      # sigmoid range sanity

    # loose tolerance: kernel uses bf16 MXU operands (f32 accumulate) by design
    ref = simple_cnn_ref(x, params)
    max_err = float(jnp.max(jnp.abs(out - ref)))
    assert max_err < 5e-2, f"max abs error vs reference = {max_err}"

    print("KERNEL_OK")
</pallas_src>

<mosaic_0001>
module attributes {stable_mosaic.version = 11 : i64} {
  func.func @kernel(%arg0: memref<32x64xf32, #tpu.memory_space<vmem>>, %arg1: memref<32x32xbf16, #tpu.memory_space<vmem>>, %arg2: memref<32x32xbf16, #tpu.memory_space<vmem>>, %arg3: memref<64x64xf32, #tpu.memory_space<vmem>>, %arg4: memref<128x128xf32, #tpu.memory_space<vmem>>, %arg5: memref<1x64xf32, #tpu.memory_space<vmem>>, %arg6: memref<1x64xf32, #tpu.memory_space<vmem>>, %arg7: memref<1x128xf32, #tpu.memory_space<vmem>>, %arg8: memref<1x128xf32, #tpu.memory_space<vmem>>, %arg9: memref<1x128xf32, #tpu.memory_space<vmem>>, %arg10: memref<1x128xf32, #tpu.memory_space<vmem>>, %arg11: memref<1x128xf32, #tpu.memory_space<vmem>>, %arg12: memref<1x128xf32, #tpu.memory_space<vmem>>, %arg13: memref<3x64x128xbf16, #tpu.memory_space<vmem>>, %arg14: memref<3x128x128xbf16, #tpu.memory_space<vmem>>, %arg15: memref<3x128x128xbf16, #tpu.memory_space<vmem>>, %arg16: memref<3x128x128xbf16, #tpu.memory_space<vmem>>, %arg17: memref<3x128x128xbf16, #tpu.memory_space<vmem>>, %arg18: memref<32x128xf32, #tpu.memory_space<vmem>>) attributes {dimension_semantics = [], scalar_prefetch = 0 : i64, scratch_operands = 0 : i64, tpu.core_type = #tpu.core_type<tc>} {
    %c0 = arith.constant 0 : index
    %c0_0 = arith.constant 0 : index
    %0 = vector.load %arg1[%c0, %c0_0] : memref<32x32xbf16, #tpu.memory_space<vmem>>, vector<32x32xbf16>
    %c0_1 = arith.constant 0 : index
    %c0_2 = arith.constant 0 : index
    %1 = vector.load %arg2[%c0_1, %c0_2] : memref<32x32xbf16, #tpu.memory_space<vmem>>, vector<32x32xbf16>
    %c0_3 = arith.constant 0 : index
    %c0_4 = arith.constant 0 : index
    %2 = vector.load %arg3[%c0_3, %c0_4] : memref<64x64xf32, #tpu.memory_space<vmem>>, vector<64x64xf32>
    %c0_5 = arith.constant 0 : index
    %c0_6 = arith.constant 0 : index
    %3 = vector.load %arg4[%c0_5, %c0_6] : memref<128x128xf32, #tpu.memory_space<vmem>>, vector<128x128xf32>
    %c0_7 = arith.constant 0 : index
    %c0_8 = arith.constant 0 : index
    %4 = vector.load %arg0[%c0_7, %c0_8] : memref<32x64xf32, #tpu.memory_space<vmem>>, vector<32x64xf32>
    %cst = arith.constant dense<0.000000e+00> : vector<64xf32>
    %5 = vector.multi_reduction <add>, %4, %cst [0] : vector<32x64xf32> to vector<64xf32>
    %6 = vector.shape_cast %5 : vector<64xf32> to vector<1x64xf32>
    %7 = arith.mulf %4, %4 : vector<32x64xf32>
    %cst_9 = arith.constant dense<0.000000e+00> : vector<64xf32>
    %8 = vector.multi_reduction <add>, %7, %cst_9 [0] : vector<32x64xf32> to vector<64xf32>
    %9 = vector.shape_cast %8 : vector<64xf32> to vector<1x64xf32>
    %cst_10 = arith.constant dense<0.000000e+00> : vector<1x64xf32>
    %10 = tpu.matmul %6, %2, %cst_10 {dimension_numbers = #tpu.dot_dimension_numbers<[1], [0], [0], [1], [0, 0, 1, 1], [], []>} : vector<1x64xf32>, vector<64x64xf32>, vector<1x64xf32> -> vector<1x64xf32>
    %cst_11 = arith.constant 0.001953125 : f32
    %11 = vector.broadcast %cst_11 : f32 to vector<1x64xf32>
    %12 = arith.mulf %10, %11 : vector<1x64xf32>
    %cst_12 = arith.constant dense<0.000000e+00> : vector<1x64xf32>
    %13 = tpu.matmul %9, %2, %cst_12 {dimension_numbers = #tpu.dot_dimension_numbers<[1], [0], [0], [1], [0, 0, 1, 1], [], []>} : vector<1x64xf32>, vector<64x64xf32>, vector<1x64xf32> -> vector<1x64xf32>
    %cst_13 = arith.constant 0.001953125 : f32
    %14 = vector.broadcast %cst_13 : f32 to vector<1x64xf32>
    %15 = arith.mulf %13, %14 : vector<1x64xf32>
    %16 = arith.mulf %12, %12 : vector<1x64xf32>
    %17 = arith.subf %15, %16 : vector<1x64xf32>
    %c0_14 = arith.constant 0 : index
    %c0_15 = arith.constant 0 : index
    %18 = vector.load %arg5[%c0_14, %c0_15] : memref<1x64xf32, #tpu.memory_space<vmem>>, vector<1x64xf32>
    %cst_16 = arith.constant 9.99999974E-6 : f32
    %19 = vector.broadcast %cst_16 : f32 to vector<1x64xf32>
    %20 = arith.addf %17, %19 : vector<1x64xf32>
    %21 = math.rsqrt %20 : vector<1x64xf32>
    %22 = arith.mulf %18, %21 : vector<1x64xf32>
    %c0_17 = arith.constant 0 : index
    %c0_18 = arith.constant 0 : index
    %23 = vector.load %arg6[%c0_17, %c0_18] : memref<1x64xf32, #tpu.memory_space<vmem>>, vector<1x64xf32>
    %24 = arith.mulf %12, %22 : vector<1x64xf32>
    %25 = arith.subf %23, %24 : vector<1x64xf32>
    %26 = vector.broadcast %22 : vector<1x64xf32> to vector<32x64xf32>
    %27 = arith.mulf %4, %26 : vector<32x64xf32>
    %28 = vector.broadcast %25 : vector<1x64xf32> to vector<32x64xf32>
    %29 = arith.addf %27, %28 : vector<32x64xf32>
    %30 = arith.truncf %29 : vector<32x64xf32> to vector<32x64xbf16>
    %cst_19 = arith.constant dense<0.000000e+00> : vector<32x64xf32>
    %31 = tpu.matmul %0, %30, %cst_19 {dimension_numbers = #tpu.dot_dimension_numbers<[1], [0], [0], [1], [0, 0, 1, 1], [], []>} : vector<32x32xbf16>, vector<32x64xbf16>, vector<32x64xf32> -> vector<32x64xf32>
    %32 = arith.truncf %31 : vector<32x64xf32> to vector<32x64xbf16>
    %cst_20 = arith.constant dense<0.000000e+00> : vector<32x64xf32>
    %33 = tpu.matmul %1, %30, %cst_20 {dimension_numbers = #tpu.dot_dimension_numbers<[1], [0], [0], [1], [0, 0, 1, 1], [], []>} : vector<32x32xbf16>, vector<32x64xbf16>, vector<32x64xf32> -> vector<32x64xf32>
    %34 = arith.truncf %33 : vector<32x64xf32> to vector<32x64xbf16>
    %c0_21 = arith.constant 0 : index
    %c0_22 = arith.constant 0 : index
    %c0_23 = arith.constant 0 : index
    %35 = vector.load %arg13[%c0_21, %c0_22, %c0_23] : memref<3x64x128xbf16, #tpu.memory_space<vmem>>, vector<1x64x128xbf16>
    %36 = vector.shape_cast %35 : vector<1x64x128xbf16> to vector<64x128xbf16>
    %cst_24 = arith.constant dense<0.000000e+00> : vector<32x128xf32>
    %37 = tpu.matmul %32, %36, %cst_24 {dimension_numbers = #tpu.dot_dimension_numbers<[1], [0], [0], [1], [0, 0, 1, 1], [], []>} : vector<32x64xbf16>, vector<64x128xbf16>, vector<32x128xf32> -> vector<32x128xf32>
    %c1 = arith.constant 1 : index
    %c0_25 = arith.constant 0 : index
    %c0_26 = arith.constant 0 : index
    %38 = vector.load %arg13[%c1, %c0_25, %c0_26] : memref<3x64x128xbf16, #tpu.memory_space<vmem>>, vector<1x64x128xbf16>
    %39 = vector.shape_cast %38 : vector<1x64x128xbf16> to vector<64x128xbf16>
    %cst_27 = arith.constant dense<0.000000e+00> : vector<32x128xf32>
    %40 = tpu.matmul %30, %39, %cst_27 {dimension_numbers = #tpu.dot_dimension_numbers<[1], [0], [0], [1], [0, 0, 1, 1], [], []>} : vector<32x64xbf16>, vector<64x128xbf16>, vector<32x128xf32> -> vector<32x128xf32>
    %41 = arith.addf %37, %40 : vector<32x128xf32>
    %c2 = arith.constant 2 : index
    %c0_28 = arith.constant 0 : index
    %c0_29 = arith.constant 0 : index
    %42 = vector.load %arg13[%c2, %c0_28, %c0_29] : memref<3x64x128xbf16, #tpu.memory_space<vmem>>, vector<1x64x128xbf16>
    %43 = vector.shape_cast %42 : vector<1x64x128xbf16> to vector<64x128xbf16>
    %cst_30 = arith.constant dense<0.000000e+00> : vector<32x128xf32>
    %44 = tpu.matmul %34, %43, %cst_30 {dimension_numbers = #tpu.dot_dimension_numbers<[1], [0], [0], [1], [0, 0, 1, 1], [], []>} : vector<32x64xbf16>, vector<64x128xbf16>, vector<32x128xf32> -> vector<32x128xf32>
    %45 = arith.addf %41, %44 : vector<32x128xf32>
    %cst_31 = arith.constant 0.000000e+00 : f32
    %46 = vector.broadcast %cst_31 : f32 to vector<32x128xf32>
    %47 = arith.maximumf %45, %46 : vector<32x128xf32>
    %cst_32 = arith.constant dense<0.000000e+00> : vector<128xf32>
    %48 = vector.multi_reduction <add>, %47, %cst_32 [0] : vector<32x128xf32> to vector<128xf32>
    %49 = vector.shape_cast %48 : vector<128xf32> to vector<1x128xf32>
    %50 = arith.mulf %47, %47 : vector<32x128xf32>
    %cst_33 = arith.constant dense<0.000000e+00> : vector<128xf32>
    %51 = vector.multi_reduction <add>, %50, %cst_33 [0] : vector<32x128xf32> to vector<128xf32>
    %52 = vector.shape_cast %51 : vector<128xf32> to vector<1x128xf32>
    %cst_34 = arith.constant dense<0.000000e+00> : vector<1x128xf32>
    %53 = tpu.matmul %49, %3, %cst_34 {dimension_numbers = #tpu.dot_dimension_numbers<[1], [0], [0], [1], [0, 0, 1, 1], [], []>} : vector<1x128xf32>, vector<128x128xf32>, vector<1x128xf32> -> vector<1x128xf32>
    %cst_35 = arith.constant 0.001953125 : f32
    %54 = vector.broadcast %cst_35 : f32 to vector<1x128xf32>
    %55 = arith.mulf %53, %54 : vector<1x128xf32>
    %cst_36 = arith.constant dense<0.000000e+00> : vector<1x128xf32>
    %56 = tpu.matmul %52, %3, %cst_36 {dimension_numbers = #tpu.dot_dimension_numbers<[1], [0], [0], [1], [0, 0, 1, 1], [], []>} : vector<1x128xf32>, vector<128x128xf32>, vector<1x128xf32> -> vector<1x128xf32>
    %cst_37 = arith.constant 0.001953125 : f32
    %57 = vector.broadcast %cst_37 : f32 to vector<1x128xf32>
    %58 = arith.mulf %56, %57 : vector<1x128xf32>
    %59 = arith.mulf %55, %55 : vector<1x128xf32>
    %60 = arith.subf %58, %59 : vector<1x128xf32>
    %c0_38 = arith.constant 0 : index
    %c0_39 = arith.constant 0 : index
    %61 = vector.load %arg7[%c0_38, %c0_39] : memref<1x128xf32, #tpu.memory_space<vmem>>, vector<1x128xf32>
    %cst_40 = arith.constant 9.99999974E-6 : f32
    %62 = vector.broadcast %cst_40 : f32 to vector<1x128xf32>
    %63 = arith.addf %60, %62 : vector<1x128xf32>
    %64 = math.rsqrt %63 : vector<1x128xf32>
    %65 = arith.mulf %61, %64 : vector<1x128xf32>
    %c0_41 = arith.constant 0 : index
    %c0_42 = arith.constant 0 : index
    %66 = vector.load %arg8[%c0_41, %c0_42] : memref<1x128xf32, #tpu.memory_space<vmem>>, vector<1x128xf32>
    %67 = arith.mulf %55, %65 : vector<1x128xf32>
    %68 = arith.subf %66, %67 : vector<1x128xf32>
    %69 = vector.broadcast %65 : vector<1x128xf32> to vector<32x128xf32>
    %70 = arith.mulf %47, %69 : vector<32x128xf32>
    %71 = vector.broadcast %68 : vector<1x128xf32> to vector<32x128xf32>
    %72 = arith.addf %70, %71 : vector<32x128xf32>
    %73 = arith.truncf %72 : vector<32x128xf32> to vector<32x128xbf16>
    %cst_43 = arith.constant dense<0.000000e+00> : vector<32x128xf32>
    %74 = tpu.matmul %0, %73, %cst_43 {dimension_numbers = #tpu.dot_dimension_numbers<[1], [0], [0], [1], [0, 0, 1, 1], [], []>} : vector<32x32xbf16>, vector<32x128xbf16>, vector<32x128xf32> -> vector<32x128xf32>
    %75 = arith.truncf %74 : vector<32x128xf32> to vector<32x128xbf16>
    %cst_44 = arith.constant dense<0.000000e+00> : vector<32x128xf32>
    %76 = tpu.matmul %1, %73, %cst_44 {dimension_numbers = #tpu.dot_dimension_numbers<[1], [0], [0], [1], [0, 0, 1, 1], [], []>} : vector<32x32xbf16>, vector<32x128xbf16>, vector<32x128xf32> -> vector<32x128xf32>
    %77 = arith.truncf %76 : vector<32x128xf32> to vector<32x128xbf16>
    %c0_45 = arith.constant 0 : index
    %c0_46 = arith.constant 0 : index
    %c0_47 = arith.constant 0 : index
    %78 = vector.load %arg14[%c0_45, %c0_46, %c0_47] : memref<3x128x128xbf16, #tpu.memory_space<vmem>>, vector<1x128x128xbf16>
    %79 = vector.shape_cast %78 : vector<1x128x128xbf16> to vector<128x128xbf16>
    %cst_48 = arith.constant dense<0.000000e+00> : vector<32x128xf32>
    %80 = tpu.matmul %75, %79, %cst_48 {dimension_numbers = #tpu.dot_dimension_numbers<[1], [0], [0], [1], [0, 0, 1, 1], [], []>} : vector<32x128xbf16>, vector<128x128xbf16>, vector<32x128xf32> -> vector<32x128xf32>
    %c1_49 = arith.constant 1 : index
    %c0_50 = arith.constant 0 : index
    %c0_51 = arith.constant 0 : index
    %81 = vector.load %arg14[%c1_49, %c0_50, %c0_51] : memref<3x128x128xbf16, #tpu.memory_space<vmem>>, vector<1x128x128xbf16>
    %82 = vector.shape_cast %81 : vector<1x128x128xbf16> to vector<128x128xbf16>
    %cst_52 = arith.constant dense<0.000000e+00> : vector<32x128xf32>
    %83 = tpu.matmul %73, %82, %cst_52 {dimension_numbers = #tpu.dot_dimension_numbers<[1], [0], [0], [1], [0, 0, 1, 1], [], []>} : vector<32x128xbf16>, vector<128x128xbf16>, vector<32x128xf32> -> vector<32x128xf32>
    %84 = arith.addf %80, %83 : vector<32x128xf32>
    %c2_53 = arith.constant 2 : index
    %c0_54 = arith.constant 0 : index
    %c0_55 = arith.constant 0 : index
    %85 = vector.load %arg14[%c2_53, %c0_54, %c0_55] : memref<3x128x128xbf16, #tpu.memory_space<vmem>>, vector<1x128x128xbf16>
    %86 = vector.shape_cast %85 : vector<1x128x128xbf16> to vector<128x128xbf16>
    %cst_56 = arith.constant dense<0.000000e+00> : vector<32x128xf32>
    %87 = tpu.matmul %77, %86, %cst_56 {dimension_numbers = #tpu.dot_dimension_numbers<[1], [0], [0], [1], [0, 0, 1, 1], [], []>} : vector<32x128xbf16>, vector<128x128xbf16>, vector<32x128xf32> -> vector<32x128xf32>
    %88 = arith.addf %84, %87 : vector<32x128xf32>
    %cst_57 = arith.constant 0.000000e+00 : f32
    %89 = vector.broadcast %cst_57 : f32 to vector<32x128xf32>
    %90 = arith.maximumf %88, %89 : vector<32x128xf32>
    %cst_58 = arith.constant dense<0.000000e+00> : vector<128xf32>
    %91 = vector.multi_reduction <add>, %90, %cst_58 [0] : vector<32x128xf32> to vector<128xf32>
    %92 = vector.shape_cast %91 : vector<128xf32> to vector<1x128xf32>
    %93 = arith.mulf %90, %90 : vector<32x128xf32>
    %cst_59 = arith.constant dense<0.000000e+00> : vector<128xf32>
    %94 = vector.multi_reduction <add>, %93, %cst_59 [0] : vector<32x128xf32> to vector<128xf32>
    %95 = vector.shape_cast %94 : vector<128xf32> to vector<1x128xf32>
    %cst_60 = arith.constant dense<0.000000e+00> : vector<1x128xf32>
    %96 = tpu.matmul %92, %3, %cst_60 {dimension_numbers = #tpu.dot_dimension_numbers<[1], [0], [0], [1], [0, 0, 1, 1], [], []>} : vector<1x128xf32>, vector<128x128xf32>, vector<1x128xf32> -> vector<1x128xf32>
    %cst_61 = arith.constant 0.001953125 : f32
    %97 = vector.broadcast %cst_61 : f32 to vector<1x128xf32>
    %98 = arith.mulf %96, %97 : vector<1x128xf32>
    %cst_62 = arith.constant dense<0.000000e+00> : vector<1x128xf32>
    %99 = tpu.matmul %95, %3, %cst_62 {dimension_numbers = #tpu.dot_dimension_numbers<[1], [0], [0], [1], [0, 0, 1, 1], [], []>} : vector<1x128xf32>, vector<128x128xf32>, vector<1x128xf32> -> vector<1x128xf32>
    %cst_63 = arith.constant 0.001953125 : f32
    %100 = vector.broadcast %cst_63 : f32 to vector<1x128xf32>
    %101 = arith.mulf %99, %100 : vector<1x128xf32>
    %102 = arith.mulf %98, %98 : vector<1x128xf32>
    %103 = arith.subf %101, %102 : vector<1x128xf32>
    %c0_64 = arith.constant 0 : index
    %c0_65 = arith.constant 0 : index
    %104 = vector.load %arg9[%c0_64, %c0_65] : memref<1x128xf32, #tpu.memory_space<vmem>>, vector<1x128xf32>
    %cst_66 = arith.constant 9.99999974E-6 : f32
    %105 = vector.broadcast %cst_66 : f32 to vector<1x128xf32>
    %106 = arith.addf %103, %105 : vector<1x128xf32>
    %107 = math.rsqrt %106 : vector<1x128xf32>
    %108 = arith.mulf %104, %107 : vector<1x128xf32>
    %c0_67 = arith.constant 0 : index
    %c0_68 = arith.constant 0 : index
    %109 = vector.load %arg10[%c0_67, %c0_68] : memref<1x128xf32, #tpu.memory_space<vmem>>, vector<1x128xf32>
    %110 = arith.mulf %98, %108 : vector<1x128xf32>
    %111 = arith.subf %109, %110 : vector<1x128xf32>
    %112 = vector.broadcast %108 : vector<1x128xf32> to vector<32x128xf32>
    %113 = arith.mulf %90, %112 : vector<32x128xf32>
    %114 = vector.broadcast %111 : vector<1x128xf32> to vector<32x128xf32>
    %115 = arith.addf %113, %114 : vector<32x128xf32>
    %116 = arith.truncf %115 : vector<32x128xf32> to vector<32x128xbf16>
    %cst_69 = arith.constant dense<0.000000e+00> : vector<32x128xf32>
    %117 = tpu.matmul %0, %116, %cst_69 {dimension_numbers = #tpu.dot_dimension_numbers<[1], [0], [0], [1], [0, 0, 1, 1], [], []>} : vector<32x32xbf16>, vector<32x128xbf16>, vector<32x128xf32> -> vector<32x128xf32>
    %118 = arith.truncf %117 : vector<32x128xf32> to vector<32x128xbf16>
    %cst_70 = arith.constant dense<0.000000e+00> : vector<32x128xf32>
    %119 = tpu.matmul %1, %116, %cst_70 {dimension_numbers = #tpu.dot_dimension_numbers<[1], [0], [0], [1], [0, 0, 1, 1], [], []>} : vector<32x32xbf16>, vector<32x128xbf16>, vector<32x128xf32> -> vector<32x128xf32>
    %120 = arith.truncf %119 : vector<32x128xf32> to vector<32x128xbf16>
    %c0_71 = arith.constant 0 : index
    %c0_72 = arith.constant 0 : index
    %c0_73 = arith.constant 0 : index
    %121 = vector.load %arg15[%c0_71, %c0_72, %c0_73] : memref<3x128x128xbf16, #tpu.memory_space<vmem>>, vector<1x128x128xbf16>
    %122 = vector.shape_cast %121 : vector<1x128x128xbf16> to vector<128x128xbf16>
    %cst_74 = arith.constant dense<0.000000e+00> : vector<32x128xf32>
    %123 = tpu.matmul %118, %122, %cst_74 {dimension_numbers = #tpu.dot_dimension_numbers<[1], [0], [0], [1], [0, 0, 1, 1], [], []>} : vector<32x128xbf16>, vector<128x128xbf16>, vector<32x128xf32> -> vector<32x128xf32>
    %c1_75 = arith.constant 1 : index
    %c0_76 = arith.constant 0 : index
    %c0_77 = arith.constant 0 : index
    %124 = vector.load %arg15[%c1_75, %c0_76, %c0_77] : memref<3x128x128xbf16, #tpu.memory_space<vmem>>, vector<1x128x128xbf16>
    %125 = vector.shape_cast %124 : vector<1x128x128xbf16> to vector<128x128xbf16>
    %cst_78 = arith.constant dense<0.000000e+00> : vector<32x128xf32>
    %126 = tpu.matmul %116, %125, %cst_78 {dimension_numbers = #tpu.dot_dimension_numbers<[1], [0], [0], [1], [0, 0, 1, 1], [], []>} : vector<32x128xbf16>, vector<128x128xbf16>, vector<32x128xf32> -> vector<32x128xf32>
    %127 = arith.addf %123, %126 : vector<32x128xf32>
    %c2_79 = arith.constant 2 : index
    %c0_80 = arith.constant 0 : index
    %c0_81 = arith.constant 0 : index
    %128 = vector.load %arg15[%c2_79, %c0_80, %c0_81] : memref<3x128x128xbf16, #tpu.memory_space<vmem>>, vector<1x128x128xbf16>
    %129 = vector.shape_cast %128 : vector<1x128x128xbf16> to vector<128x128xbf16>
    %cst_82 = arith.constant dense<0.000000e+00> : vector<32x128xf32>
    %130 = tpu.matmul %120, %129, %cst_82 {dimension_numbers = #tpu.dot_dimension_numbers<[1], [0], [0], [1], [0, 0, 1, 1], [], []>} : vector<32x128xbf16>, vector<128x128xbf16>, vector<32x128xf32> -> vector<32x128xf32>
    %131 = arith.addf %127, %130 : vector<32x128xf32>
    %cst_83 = arith.constant 0.000000e+00 : f32
    %132 = vector.broadcast %cst_83 : f32 to vector<32x128xf32>
    %133 = arith.maximumf %131, %132 : vector<32x128xf32>
    %cst_84 = arith.constant dense<0.000000e+00> : vector<128xf32>
    %134 = vector.multi_reduction <add>, %133, %cst_84 [0] : vector<32x128xf32> to vector<128xf32>
    %135 = vector.shape_cast %134 : vector<128xf32> to vector<1x128xf32>
    %136 = arith.mulf %133, %133 : vector<32x128xf32>
    %cst_85 = arith.constant dense<0.000000e+00> : vector<128xf32>
    %137 = vector.multi_reduction <add>, %136, %cst_85 [0] : vector<32x128xf32> to vector<128xf32>
    %138 = vector.shape_cast %137 : vector<128xf32> to vector<1x128xf32>
    %cst_86 = arith.constant dense<0.000000e+00> : vector<1x128xf32>
    %139 = tpu.matmul %135, %3, %cst_86 {dimension_numbers = #tpu.dot_dimension_numbers<[1], [0], [0], [1], [0, 0, 1, 1], [], []>} : vector<1x128xf32>, vector<128x128xf32>, vector<1x128xf32> -> vector<1x128xf32>
    %cst_87 = arith.constant 0.001953125 : f32
    %140 = vector.broadcast %cst_87 : f32 to vector<1x128xf32>
    %141 = arith.mulf %139, %140 : vector<1x128xf32>
    %cst_88 = arith.constant dense<0.000000e+00> : vector<1x128xf32>
    %142 = tpu.matmul %138, %3, %cst_88 {dimension_numbers = #tpu.dot_dimension_numbers<[1], [0], [0], [1], [0, 0, 1, 1], [], []>} : vector<1x128xf32>, vector<128x128xf32>, vector<1x128xf32> -> vector<1x128xf32>
    %cst_89 = arith.constant 0.001953125 : f32
    %143 = vector.broadcast %cst_89 : f32 to vector<1x128xf32>
    %144 = arith.mulf %142, %143 : vector<1x128xf32>
    %145 = arith.mulf %141, %141 : vector<1x128xf32>
    %146 = arith.subf %144, %145 : vector<1x128xf32>
    %c0_90 = arith.constant 0 : index
    %c0_91 = arith.constant 0 : index
    %147 = vector.load %arg11[%c0_90, %c0_91] : memref<1x128xf32, #tpu.memory_space<vmem>>, vector<1x128xf32>
    %cst_92 = arith.constant 9.99999974E-6 : f32
    %148 = vector.broadcast %cst_92 : f32 to vector<1x128xf32>
    %149 = arith.addf %146, %148 : vector<1x128xf32>
    %150 = math.rsqrt %149 : vector<1x128xf32>
    %151 = arith.mulf %147, %150 : vector<1x128xf32>
    %c0_93 = arith.constant 0 : index
    %c0_94 = arith.constant 0 : index
    %152 = vector.load %arg12[%c0_93, %c0_94] : memref<1x128xf32, #tpu.memory_space<vmem>>, vector<1x128xf32>
    %153 = arith.mulf %141, %151 : vector<1x128xf32>
    %154 = arith.subf %152, %153 : vector<1x128xf32>
    %155 = vector.broadcast %151 : vector<1x128xf32> to vector<32x128xf32>
    %156 = arith.mulf %133, %155 : vector<32x128xf32>
    %157 = vector.broadcast %154 : vector<1x128xf32> to vector<32x128xf32>
    %158 = arith.addf %156, %157 : vector<32x128xf32>
    %159 = arith.truncf %158 : vector<32x128xf32> to vector<32x128xbf16>
    %cst_95 = arith.constant dense<0.000000e+00> : vector<32x128xf32>
    %160 = tpu.matmul %0, %159, %cst_95 {dimension_numbers = #tpu.dot_dimension_numbers<[1], [0], [0], [1], [0, 0, 1, 1], [], []>} : vector<32x32xbf16>, vector<32x128xbf16>, vector<32x128xf32> -> vector<32x128xf32>
    %161 = arith.truncf %160 : vector<32x128xf32> to vector<32x128xbf16>
    %cst_96 = arith.constant dense<0.000000e+00> : vector<32x128xf32>
    %162 = tpu.matmul %1, %159, %cst_96 {dimension_numbers = #tpu.dot_dimension_numbers<[1], [0], [0], [1], [0, 0, 1, 1], [], []>} : vector<32x32xbf16>, vector<32x128xbf16>, vector<32x128xf32> -> vector<32x128xf32>
    %163 = arith.truncf %162 : vector<32x128xf32> to vector<32x128xbf16>
    %c0_97 = arith.constant 0 : index
    %c0_98 = arith.constant 0 : index
    %c0_99 = arith.constant 0 : index
    %164 = vector.load %arg16[%c0_97, %c0_98, %c0_99] : memref<3x128x128xbf16, #tpu.memory_space<vmem>>, vector<1x128x128xbf16>
    %165 = vector.shape_cast %164 : vector<1x128x128xbf16> to vector<128x128xbf16>
    %cst_100 = arith.constant dense<0.000000e+00> : vector<32x128xf32>
    %166 = tpu.matmul %161, %165, %cst_100 {dimension_numbers = #tpu.dot_dimension_numbers<[1], [0], [0], [1], [0, 0, 1, 1], [], []>} : vector<32x128xbf16>, vector<128x128xbf16>, vector<32x128xf32> -> vector<32x128xf32>
    %c1_101 = arith.constant 1 : index
    %c0_102 = arith.constant 0 : index
    %c0_103 = arith.constant 0 : index
    %167 = vector.load %arg16[%c1_101, %c0_102, %c0_103] : memref<3x128x128xbf16, #tpu.memory_space<vmem>>, vector<1x128x128xbf16>
    %168 = vector.shape_cast %167 : vector<1x128x128xbf16> to vector<128x128xbf16>
    %cst_104 = arith.constant dense<0.000000e+00> : vector<32x128xf32>
    %169 = tpu.matmul %159, %168, %cst_104 {dimension_numbers = #tpu.dot_dimension_numbers<[1], [0], [0], [1], [0, 0, 1, 1], [], []>} : vector<32x128xbf16>, vector<128x128xbf16>, vector<32x128xf32> -> vector<32x128xf32>
    %170 = arith.addf %166, %169 : vector<32x128xf32>
    %c2_105 = arith.constant 2 : index
    %c0_106 = arith.constant 0 : index
    %c0_107 = arith.constant 0 : index
    %171 = vector.load %arg16[%c2_105, %c0_106, %c0_107] : memref<3x128x128xbf16, #tpu.memory_space<vmem>>, vector<1x128x128xbf16>
    %172 = vector.shape_cast %171 : vector<1x128x128xbf16> to vector<128x128xbf16>
    %cst_108 = arith.constant dense<0.000000e+00> : vector<32x128xf32>
    %173 = tpu.matmul %163, %172, %cst_108 {dimension_numbers = #tpu.dot_dimension_numbers<[1], [0], [0], [1], [0, 0, 1, 1], [], []>} : vector<32x128xbf16>, vector<128x128xbf16>, vector<32x128xf32> -> vector<32x128xf32>
    %174 = arith.addf %170, %173 : vector<32x128xf32>
    %cst_109 = arith.constant 0.000000e+00 : f32
    %175 = vector.broadcast %cst_109 : f32 to vector<32x128xf32>
    %176 = arith.maximumf %174, %175 : vector<32x128xf32>
    %177 = arith.truncf %176 : vector<32x128xf32> to vector<32x128xbf16>
    %cst_110 = arith.constant dense<0.000000e+00> : vector<32x128xf32>
    %178 = tpu.matmul %0, %177, %cst_110 {dimension_numbers = #tpu.dot_dimension_numbers<[1], [0], [0], [1], [0, 0, 1, 1], [], []>} : vector<32x32xbf16>, vector<32x128xbf16>, vector<32x128xf32> -> vector<32x128xf32>
    %179 = arith.truncf %178 : vector<32x128xf32> to vector<32x128xbf16>
    %cst_111 = arith.constant dense<0.000000e+00> : vector<32x128xf32>
    %180 = tpu.matmul %1, %177, %cst_111 {dimension_numbers = #tpu.dot_dimension_numbers<[1], [0], [0], [1], [0, 0, 1, 1], [], []>} : vector<32x32xbf16>, vector<32x128xbf16>, vector<32x128xf32> -> vector<32x128xf32>
    %181 = arith.truncf %180 : vector<32x128xf32> to vector<32x128xbf16>
    %c0_112 = arith.constant 0 : index
    %c0_113 = arith.constant 0 : index
    %c0_114 = arith.constant 0 : index
    %182 = vector.load %arg17[%c0_112, %c0_113, %c0_114] : memref<3x128x128xbf16, #tpu.memory_space<vmem>>, vector<1x128x128xbf16>
    %183 = vector.shape_cast %182 : vector<1x128x128xbf16> to vector<128x128xbf16>
    %cst_115 = arith.constant dense<0.000000e+00> : vector<32x128xf32>
    %184 = tpu.matmul %179, %183, %cst_115 {dimension_numbers = #tpu.dot_dimension_numbers<[1], [0], [0], [1], [0, 0, 1, 1], [], []>} : vector<32x128xbf16>, vector<128x128xbf16>, vector<32x128xf32> -> vector<32x128xf32>
    %c1_116 = arith.constant 1 : index
    %c0_117 = arith.constant 0 : index
    %c0_118 = arith.constant 0 : index
    %185 = vector.load %arg17[%c1_116, %c0_117, %c0_118] : memref<3x128x128xbf16, #tpu.memory_space<vmem>>, vector<1x128x128xbf16>
    %186 = vector.shape_cast %185 : vector<1x128x128xbf16> to vector<128x128xbf16>
    %cst_119 = arith.constant dense<0.000000e+00> : vector<32x128xf32>
    %187 = tpu.matmul %177, %186, %cst_119 {dimension_numbers = #tpu.dot_dimension_numbers<[1], [0], [0], [1], [0, 0, 1, 1], [], []>} : vector<32x128xbf16>, vector<128x128xbf16>, vector<32x128xf32> -> vector<32x128xf32>
    %188 = arith.addf %184, %187 : vector<32x128xf32>
    %c2_120 = arith.constant 2 : index
    %c0_121 = arith.constant 0 : index
    %c0_122 = arith.constant 0 : index
    %189 = vector.load %arg17[%c2_120, %c0_121, %c0_122] : memref<3x128x128xbf16, #tpu.memory_space<vmem>>, vector<1x128x128xbf16>
    %190 = vector.shape_cast %189 : vector<1x128x128xbf16> to vector<128x128xbf16>
    %cst_123 = arith.constant dense<0.000000e+00> : vector<32x128xf32>
    %191 = tpu.matmul %181, %190, %cst_123 {dimension_numbers = #tpu.dot_dimension_numbers<[1], [0], [0], [1], [0, 0, 1, 1], [], []>} : vector<32x128xbf16>, vector<128x128xbf16>, vector<32x128xf32> -> vector<32x128xf32>
    %192 = arith.addf %188, %191 : vector<32x128xf32>
    %193 = arith.negf %192 : vector<32x128xf32>
    %194 = math.exp %193 : vector<32x128xf32>
    %cst_124 = arith.constant 1.000000e+00 : f32
    %195 = vector.broadcast %cst_124 : f32 to vector<32x128xf32>
    %196 = arith.addf %195, %194 : vector<32x128xf32>
    %197 = arith.divf %195, %196 : vector<32x128xf32>
    %c0_125 = arith.constant 0 : index
    %c0_126 = arith.constant 0 : index
    %198 = vector.load %arg18[%c0_125, %c0_126] : memref<32x128xf32, #tpu.memory_space<vmem>>, vector<32x128xf32>
    tpu.vector_store %arg18[%c0_125, %c0_126], %197 {strides = array<i32>} : memref<32x128xf32, #tpu.memory_space<vmem>>, vector<32x128xf32>,
    return
  }
}

</mosaic_0001>

<llo_original>
// kernel: simple_cnn.1
$region0: #{simple_cnn.1}
  #allocation0 [shape = 'u32[]', space=smem, size = 0x4, offset = 0x4, fixed_abs, tag = 'smem constant byte address 0x4 - core index']
  #allocation1 [shape = 'u32[144,128]{1,0:T(1,128)}', space=vmem, size = 0x12000, scoped, tag = 'internal scratch']
  %s0 = inlined_call_operand.vmem [shape: f32[32,64], index: 0, kind: input, shape index: {}]
  %s1 = inlined_call_operand.vmem [shape: bf16[32,32], index: 1, kind: input, shape index: {}]
  %s2 = inlined_call_operand.vmem [shape: bf16[32,32], index: 2, kind: input, shape index: {}]
  %s3 = inlined_call_operand.vmem [shape: f32[64,64], index: 3, kind: input, shape index: {}]
  %s4 = inlined_call_operand.vmem [shape: f32[128,128], index: 4, kind: input, shape index: {}]
  %s5 = inlined_call_operand.vmem [shape: f32[1,64], index: 5, kind: input, shape index: {}]
  %s6 = inlined_call_operand.vmem [shape: f32[1,64], index: 6, kind: input, shape index: {}]
  %s7 = inlined_call_operand.vmem [shape: f32[1,128], index: 7, kind: input, shape index: {}]
  %s8 = inlined_call_operand.vmem [shape: f32[1,128], index: 8, kind: input, shape index: {}]
  %s9 = inlined_call_operand.vmem [shape: f32[1,128], index: 9, kind: input, shape index: {}]
  %s10 = inlined_call_operand.vmem [shape: f32[1,128], index: 10, kind: input, shape index: {}]
  %s11 = inlined_call_operand.vmem [shape: f32[1,128], index: 11, kind: input, shape index: {}]
  %s12 = inlined_call_operand.vmem [shape: f32[1,128], index: 12, kind: input, shape index: {}]
  %s13 = inlined_call_operand.vmem [shape: bf16[3,64,128], index: 13, kind: input, shape index: {}]
  %s14 = inlined_call_operand.vmem [shape: bf16[3,128,128], index: 14, kind: input, shape index: {}]
  %s15 = inlined_call_operand.vmem [shape: bf16[3,128,128], index: 15, kind: input, shape index: {}]
  %s16 = inlined_call_operand.vmem [shape: bf16[3,128,128], index: 16, kind: input, shape index: {}]
  %s17 = inlined_call_operand.vmem [shape: bf16[3,128,128], index: 17, kind: input, shape index: {}]
  %s18 = inlined_call_operand.vmem [shape: f32[32,128], index: 18, kind: output, shape index: {}]
  %s19 = sld [smem:[#allocation0]]
  $region82: #{simple_cnn.1} parent=0
    _
  %s21 = ssub.s32 1, %s19
  %s22 = scalar_select 0, %s21, %s19
  // Predicated region
  $region2: #{simple_cnn.1} parent=0 // pred_check
    _
  $region3: #{simple_cnn.1} parent=0 // pred_check_branch
    %24 = sbr.rel (0) target = $region5
  $region4: #{simple_cnn.1} parent=0 // pred_region
    _
  $region5: #{simple_cnn.1} parent=0 // pred_fallthru
    _
  // Predicated region
  $region6: #{simple_cnn.1} parent=0 // pred_check
    _
  $region7: #{simple_cnn.1} parent=0 // pred_check_branch
    %26 = sbr.rel (0) target = $region9
  $region8: #{simple_cnn.1} parent=0 // pred_region
    _
  $region9: #{simple_cnn.1} parent=0 // pred_fallthru
    _
  // Predicated region
  $region10: #{simple_cnn.1} parent=0 // pred_check
    _
  $region11: #{simple_cnn.1} parent=0 // pred_check_branch
    %28 = sbr.rel (0) target = $region13
  $region12: #{simple_cnn.1} parent=0 // pred_region
    _
  $region13: #{simple_cnn.1} parent=0 // pred_fallthru
    _
  // Predicated region
  $region14: #{simple_cnn.1} parent=0 // pred_check
    _
  $region15: #{simple_cnn.1} parent=0 // pred_check_branch
    %30 = sbr.rel (0) target = $region17
  $region16: #{simple_cnn.1} parent=0 // pred_region
    _
  $region17: #{simple_cnn.1} parent=0 // pred_fallthru
    _
  // Predicated region
  $region18: #{simple_cnn.1} parent=0 // pred_check
    _
  $region19: #{simple_cnn.1} parent=0 // pred_check_branch
    %32 = sbr.rel (0) target = $region21
  $region20: #{simple_cnn.1} parent=0 // pred_region
    _
  $region21: #{simple_cnn.1} parent=0 // pred_fallthru
    _
  // Predicated region
  $region22: #{simple_cnn.1} parent=0 // pred_check
    _
  $region23: #{simple_cnn.1} parent=0 // pred_check_branch
    %34 = sbr.rel (0) target = $region25
  $region24: #{simple_cnn.1} parent=0 // pred_region
    _
  $region25: #{simple_cnn.1} parent=0 // pred_fallthru
    _
  // Predicated region
  $region26: #{simple_cnn.1} parent=0 // pred_check
    _
  $region27: #{simple_cnn.1} parent=0 // pred_check_branch
    %36 = sbr.rel (0) target = $region29
  $region28: #{simple_cnn.1} parent=0 // pred_region
    _
  $region29: #{simple_cnn.1} parent=0 // pred_fallthru
    _
  // Predicated region
  $region30: #{simple_cnn.1} parent=0 // pred_check
    _
  $region31: #{simple_cnn.1} parent=0 // pred_check_branch
    %38 = sbr.rel (0) target = $region33
  $region32: #{simple_cnn.1} parent=0 // pred_region
    _
  $region33: #{simple_cnn.1} parent=0 // pred_fallthru
    _
  // Predicated region
  $region34: #{simple_cnn.1} parent=0 // pred_check
    _
  $region35: #{simple_cnn.1} parent=0 // pred_check_branch
    %40 = sbr.rel (0) target = $region37
  $region36: #{simple_cnn.1} parent=0 // pred_region
    _
  $region37: #{simple_cnn.1} parent=0 // pred_fallthru
    _
  // Predicated region
  $region38: #{simple_cnn.1} parent=0 // pred_check
    _
  $region39: #{simple_cnn.1} parent=0 // pred_check_branch
    %42 = sbr.rel (0) target = $region41
  $region40: #{simple_cnn.1} parent=0 // pred_region
    _
  $region41: #{simple_cnn.1} parent=0 // pred_fallthru
    _
  // Predicated region
  $region42: #{simple_cnn.1} parent=0 // pred_check
    _
  $region43: #{simple_cnn.1} parent=0 // pred_check_branch
    %44 = sbr.rel (0) target = $region45
  $region44: #{simple_cnn.1} parent=0 // pred_region
    _
  $region45: #{simple_cnn.1} parent=0 // pred_fallthru
    _
  // Predicated region
  $region46: #{simple_cnn.1} parent=0 // pred_check
    _
  $region47: #{simple_cnn.1} parent=0 // pred_check_branch
    %46 = sbr.rel (0) target = $region49
  $region48: #{simple_cnn.1} parent=0 // pred_region
    _
  $region49: #{simple_cnn.1} parent=0 // pred_fallthru
    _
  // Predicated region
  $region50: #{simple_cnn.1} parent=0 // pred_check
    _
  $region51: #{simple_cnn.1} parent=0 // pred_check_branch
    %48 = sbr.rel (0) target = $region53
  $region52: #{simple_cnn.1} parent=0 // pred_region
    _
  $region53: #{simple_cnn.1} parent=0 // pred_fallthru
    _
  // Predicated region
  $region54: #{simple_cnn.1} parent=0 // pred_check
    _
  $region55: #{simple_cnn.1} parent=0 // pred_check_branch
    %50 = sbr.rel (0) target = $region57
  $region56: #{simple_cnn.1} parent=0 // pred_region
    _
  $region57: #{simple_cnn.1} parent=0 // pred_fallthru
    _
  // Predicated region
  $region58: #{simple_cnn.1} parent=0 // pred_check
    _
  $region59: #{simple_cnn.1} parent=0 // pred_check_branch
    %52 = sbr.rel (0) target = $region61
  $region60: #{simple_cnn.1} parent=0 // pred_region
    _
  $region61: #{simple_cnn.1} parent=0 // pred_fallthru
    _
  // Predicated region
  $region62: #{simple_cnn.1} parent=0 // pred_check
    _
  $region63: #{simple_cnn.1} parent=0 // pred_check_branch
    %54 = sbr.rel (0) target = $region65
  $region64: #{simple_cnn.1} parent=0 // pred_region
    _
  $region65: #{simple_cnn.1} parent=0 // pred_fallthru
    _
  // Predicated region
  $region66: #{simple_cnn.1} parent=0 // pred_check
    _
  $region67: #{simple_cnn.1} parent=0 // pred_check_branch
    %56 = sbr.rel (0) target = $region69
  $region68: #{simple_cnn.1} parent=0 // pred_region
    _
  $region69: #{simple_cnn.1} parent=0 // pred_fallthru
    _
  // Predicated region
  $region70: #{simple_cnn.1} parent=0 // pred_check
    _
  $region71: #{simple_cnn.1} parent=0 // pred_check_branch
    %58 = sbr.rel (0) target = $region73
  $region72: #{simple_cnn.1} parent=0 // pred_region
    _
  $region73: #{simple_cnn.1} parent=0 // pred_fallthru
    _
  %v60 = vld [vmem:[%s1] sm:$0xf]
  %v61 = vld [vmem:[%s1 + $0x4] sm:$0xf]
  %v62 = vld [vmem:[%s1 + $0x8] sm:$0xf]
  %v63 = vld [vmem:[%s1 + $0xc] sm:$0xf]
  %v64 = vld [vmem:[%s2] sm:$0xf]
  %v65 = vld [vmem:[%s2 + $0x4] sm:$0xf]
  %v66 = vld [vmem:[%s2 + $0x8] sm:$0xf]
  %v67 = vld [vmem:[%s2 + $0xc] sm:$0xf]
  %v68 = vld [vmem:[%s3] sm:$0xff]
  %v69 = vld [vmem:[%s3 + $0x8] sm:$0xff]
  %v70 = vld [vmem:[%s3 + $0x10] sm:$0xff]
  %v71 = vld [vmem:[%s3 + $0x18] sm:$0xff]
  %v72 = vld [vmem:[%s3 + $0x20] sm:$0xff]
  %v73 = vld [vmem:[%s3 + $0x28] sm:$0xff]
  %v74 = vld [vmem:[%s3 + $0x30] sm:$0xff]
  %v75 = vld [vmem:[%s3 + $0x38] sm:$0xff]
  %v76 = vld [vmem:[%s4] sm:$0xff]
  %v77 = vld [vmem:[%s4 + $0x8] sm:$0xff]
  %v78 = vld [vmem:[%s4 + $0x10] sm:$0xff]
  %v79 = vld [vmem:[%s4 + $0x18] sm:$0xff]
  %v80 = vld [vmem:[%s4 + $0x20] sm:$0xff]
  %v81 = vld [vmem:[%s4 + $0x28] sm:$0xff]
  %v82 = vld [vmem:[%s4 + $0x30] sm:$0xff]
  %v83 = vld [vmem:[%s4 + $0x38] sm:$0xff]
  %v84 = vld [vmem:[%s4 + $0x40] sm:$0xff]
  %v85 = vld [vmem:[%s4 + $0x48] sm:$0xff]
  %v86 = vld [vmem:[%s4 + $0x50] sm:$0xff]
  %v87 = vld [vmem:[%s4 + $0x58] sm:$0xff]
  %v88 = vld [vmem:[%s4 + $0x60] sm:$0xff]
  %v89 = vld [vmem:[%s4 + $0x68] sm:$0xff]
  %v90 = vld [vmem:[%s4 + $0x70] sm:$0xff]
  %v91 = vld [vmem:[%s4 + $0x78] sm:$0xff]
  %v92 = vld [vmem:[%s0] sm:$0xff]
  %v93 = vld [vmem:[%s0 + $0x8] sm:$0xff]
  %v94 = vld [vmem:[%s0 + $0x10] sm:$0xff]
  %v95 = vld [vmem:[%s0 + $0x18] sm:$0xff]
  %vm96 = vcmask 523264
  %v97 = vsel %vm96, %v92, 0.0
  %v98 = vsel %vm96, %v93, 0.0
  %v99 = vadd.f32 %v97, %v98
  %v100 = vsel %vm96, %v94, 0.0
  %v101 = vadd.f32 %v99, %v100
  %v102 = vsel %vm96, %v95, 0.0
  %v103 = vadd.f32 %v101, %v102
  %v104 = vrot.slane %v103, 4
  %v105 = vadd.f32 %v103, %v104
  %v106 = vrot.slane %v105, 2
  %v107 = vadd.f32 %v105, %v106
  %v108 = vrot.slane %v107, 1
  %v109 = vadd.f32 %v107, %v108
  %v110 = vmul.f32 %v92, %v92
  %v111 = vmul.f32 %v93, %v93
  %v112 = vmul.f32 %v94, %v94
  %v113 = vmul.f32 %v95, %v95
  %v114 = vsel %vm96, %v110, 0.0
  %v115 = vsel %vm96, %v111, 0.0
  %v116 = vadd.f32 %v114, %v115
  %v117 = vsel %vm96, %v112, 0.0
  %v118 = vadd.f32 %v116, %v117
  %v119 = vsel %vm96, %v113, 0.0
  %v120 = vadd.f32 %v118, %v119
  %v121 = vrot.slane %v120, 4
  %v122 = vadd.f32 %v120, %v121
  %v123 = vrot.slane %v122, 2
  %v124 = vadd.f32 %v122, %v123
  %v125 = vrot.slane %v124, 1
  %v126 = vadd.f32 %v124, %v125
  %v128 = vsel %vm96, %v109, 0
  %130 = vmatprep.subr.mxu0 0.0
  %131 = vmatpush1.msra.mxu0 0.0
  %132 = vmatprep.subr.mxu0 0.0
  %133 = vmatpush1.msra.mxu0 0.0
  %134 = vmatprep.subr.mxu0 0.0
  %135 = vmatpush1.msra.mxu0 0.0
  %136 = vmatprep.subr.mxu0 0.0
  %137 = vmatpush1.msra.mxu0 0.0
  %138 = vmatprep.subr.mxu0 0.0
  %139 = vmatpush1.msra.mxu0 0.0
  %140 = vmatprep.subr.mxu0 0.0
  %141 = vmatpush1.msra.mxu0 0.0
  %142 = vmatprep.subr.mxu0 0.0
  %143 = vmatpush1.msra.mxu0 0.0
  %144 = vmatprep.subr.mxu0 0.0
  %145 = vmatpush1.msra.mxu0 0.0
  %146 = vmatprep.subr.mxu0 0.0
  %147 = vmatpush1.msra.mxu0 %v75
  %148 = vmatprep.subr.mxu0 0.0
  %149 = vmatpush1.msra.mxu0 %v74
  %150 = vmatprep.subr.mxu0 0.0
  %151 = vmatpush1.msra.mxu0 %v73
  %152 = vmatprep.subr.mxu0 0.0
  %153 = vmatpush1.msra.mxu0 %v72
  %154 = vmatprep.subr.mxu0 0.0
  %155 = vmatpush1.msra.mxu0 %v71
  %156 = vmatprep.subr.mxu0 0.0
  %157 = vmatpush1.msra.mxu0 %v70
  %158 = vmatprep.subr.mxu0 0.0
  %159 = vmatpush1.msra.mxu0 %v69
  %160 = vmatprep.subr.mxu0 0.0
  %161 = vmatpush1.msra.mxu0 %v68
  %162 = vmatprep.subr.mxu0 0.0
  %163 = vmatpush2.msra.mxu0 0.0
  %164 = vmatprep.subr.mxu0 0.0
  %165 = vmatpush2.msra.mxu0 0.0
  %166 = vmatprep.subr.mxu0 0.0
  %167 = vmatpush2.msra.mxu0 0.0
  %168 = vmatprep.subr.mxu0 0.0
  %169 = vmatpush2.msra.mxu0 0.0
  %170 = vmatprep.subr.mxu0 0.0
  %171 = vmatpush2.msra.mxu0 0.0
  %172 = vmatprep.subr.mxu0 0.0
  %173 = vmatpush2.msra.mxu0 0.0
  %174 = vmatprep.subr.mxu0 0.0
  %175 = vmatpush2.msra.mxu0 0.0
  %176 = vmatprep.subr.mxu0 0.0
  %177 = vmatpush2.msra.mxu0 0.0
  %178 = vmatprep.subr.mxu0 0.0
  %179 = vmatpush2.msra.mxu0 0.0
  %180 = vmatprep.subr.mxu0 0.0
  %181 = vmatpush2.msra.mxu0 0.0
  %182 = vmatprep.subr.mxu0 0.0
  %183 = vmatpush2.msra.mxu0 0.0
  %184 = vmatprep.subr.mxu0 0.0
  %185 = vmatpush2.msra.mxu0 0.0
  %186 = vmatprep.subr.mxu0 0.0
  %187 = vmatpush2.msra.mxu0 0.0
  %188 = vmatprep.subr.mxu0 0.0
  %189 = vmatpush2.msra.mxu0 0.0
  %190 = vmatprep.subr.mxu0 0.0
  %191 = vmatpush2.msra.mxu0 0.0
  %192 = vmatprep.subr.mxu0 0.0
  %193 = vmatpush2.msra.mxu0 0.0
  %194 = vmatprep.mubr.f32.mxu0 0.0
  %195 = vmatmul.mubr.f32.gmra.mxu0 %v128
  %v196 = vpop.f32.mrf.mxu0
  %v197 = vadd.f32 0.0, %v196
  %v198 = vpop.f32.mrf.mxu0
  %199 = vdwg.mxu0
  %v200 = vmul.f32 %v197, 0.001953125
  %v202 = vsel %vm96, %v126, 0
  %204 = vmatprep.subr.mxu0 0.0
  %205 = vmatpush1.msra.mxu0 0.0
  %206 = vmatprep.subr.mxu0 0.0
  %207 = vmatpush1.msra.mxu0 0.0
  %208 = vmatprep.subr.mxu0 0.0
  %209 = vmatpush1.msra.mxu0 0.0
  %210 = vmatprep.subr.mxu0 0.0
  %211 = vmatpush1.msra.mxu0 0.0
  %212 = vmatprep.subr.mxu0 0.0
  %213 = vmatpush1.msra.mxu0 0.0
  %214 = vmatprep.subr.mxu0 0.0
  %215 = vmatpush1.msra.mxu0 0.0
  %216 = vmatprep.subr.mxu0 0.0
  %217 = vmatpush1.msra.mxu0 0.0
  %218 = vmatprep.subr.mxu0 0.0
  %219 = vmatpush1.msra.mxu0 0.0
  %220 = vmatprep.subr.mxu0 0.0
  %221 = vmatpush1.msra.mxu0 %v75
  %222 = vmatprep.subr.mxu0 0.0
  %223 = vmatpush1.msra.mxu0 %v74
  %224 = vmatprep.subr.mxu0 0.0
  %225 = vmatpush1.msra.mxu0 %v73
  %226 = vmatprep.subr.mxu0 0.0
  %227 = vmatpush1.msra.mxu0 %v72
  %228 = vmatprep.subr.mxu0 0.0
  %229 = vmatpush1.msra.mxu0 %v71
  %230 = vmatprep.subr.mxu0 0.0
  %231 = vmatpush1.msra.mxu0 %v70
  %232 = vmatprep.subr.mxu0 0.0
  %233 = vmatpush1.msra.mxu0 %v69
  %234 = vmatprep.subr.mxu0 0.0
  %235 = vmatpush1.msra.mxu0 %v68
  %236 = vmatprep.subr.mxu0 0.0
  %237 = vmatpush2.msra.mxu0 0.0
  %238 = vmatprep.subr.mxu0 0.0
  %239 = vmatpush2.msra.mxu0 0.0
  %240 = vmatprep.subr.mxu0 0.0
  %241 = vmatpush2.msra.mxu0 0.0
  %242 = vmatprep.subr.mxu0 0.0
  %243 = vmatpush2.msra.mxu0 0.0
  %244 = vmatprep.subr.mxu0 0.0
  %245 = vmatpush2.msra.mxu0 0.0
  %246 = vmatprep.subr.mxu0 0.0
  %247 = vmatpush2.msra.mxu0 0.0
  %248 = vmatprep.subr.mxu0 0.0
  %249 = vmatpush2.msra.mxu0 0.0
  %250 = vmatprep.subr.mxu0 0.0
  %251 = vmatpush2.msra.mxu0 0.0
  %252 = vmatprep.subr.mxu0 0.0
  %253 = vmatpush2.msra.mxu0 0.0
  %254 = vmatprep.subr.mxu0 0.0
  %255 = vmatpush2.msra.mxu0 0.0
  %256 = vmatprep.subr.mxu0 0.0
  %257 = vmatpush2.msra.mxu0 0.0
  %258 = vmatprep.subr.mxu0 0.0
  %259 = vmatpush2.msra.mxu0 0.0
  %260 = vmatprep.subr.mxu0 0.0
  %261 = vmatpush2.msra.mxu0 0.0
  %262 = vmatprep.subr.mxu0 0.0
  %263 = vmatpush2.msra.mxu0 0.0
  %264 = vmatprep.subr.mxu0 0.0
  %265 = vmatpush2.msra.mxu0 0.0
  %266 = vmatprep.subr.mxu0 0.0
  %267 = vmatpush2.msra.mxu0 0.0
  %268 = vmatprep.mubr.f32.mxu0 0.0
  %269 = vmatmul.mubr.f32.gmra.mxu0 %v202
  %v270 = vpop.f32.mrf.mxu0
  %v271 = vadd.f32 0.0, %v270
  %v272 = vpop.f32.mrf.mxu0
  %273 = vdwg.mxu0
  %v274 = vmul.f32 %v271, 0.001953125
  %v275 = vmul.f32 %v200, %v200
  %v276 = vsub.f32 %v274, %v275
  %v277 = vld [vmem:[%s5] sm:$0x1]
  %v278 = vadd.f32 %v276, 1e-05
  %v279 = vrsqrt.pop %v278
  %v280 = vmul.f32 %v277, %v279
  %v281 = vld [vmem:[%s6] sm:$0x1]
  %v282 = vmul.f32 %v200, %v280
  %v283 = vsub.f32 %v281, %v282
  %v285 = vlaneseq
  %v286 = vshrl.u32 %v285, 7
  %v287 = vsub.s32 0, %v286
  %v288 = vrot.slane %v280, %v287
  %v290 = vmul.f32 %v92, %v288
  %v291 = vmul.f32 %v93, %v288
  %v292 = vmul.f32 %v94, %v288
  %v293 = vmul.f32 %v95, %v288
  %v295 = vlaneseq
  %v296 = vshrl.u32 %v295, 7
  %v297 = vsub.s32 0, %v296
  %v298 = vrot.slane %v283, %v297
  %v300 = vadd.f32 %v290, %v298
  %v301 = vadd.f32 %v291, %v298
  %v302 = vadd.f32 %v292, %v298
  %v303 = vadd.f32 %v293, %v298
  %v304 = vpack.c.bf16 %v301, %v300
  %v305 = vpack.c.bf16 %v303, %v302
  %v310 = vunpack.c.l.b16 %v60
  %v311 = vunpack.c.l.b16 %v61
  %v312 = vunpack.c.l.b16 %v62
  %v313 = vunpack.c.l.b16 %v63
  %v314 = vpack.c.b16 %v311, %v310
  %v315 = vpack.c.b16 %v313, %v312
  %vm316 = vcmask 261120
  %v318 = vsel %vm316, %v314, 0
  %v321 = vsel %vm316, %v315, 0
  %323 = vmatprep.subr.bf16.mxu0 0
  %324 = vmatpush1.bf16.msra.mxu0 0
  %325 = vmatprep.subr.bf16.mxu0 0
  %326 = vmatpush1.bf16.msra.mxu0 0
  %327 = vmatprep.subr.bf16.mxu0 0
  %328 = vmatpush1.bf16.msra.mxu0 0
  %329 = vmatprep.subr.bf16.mxu0 0
  %330 = vmatpush1.bf16.msra.mxu0 0
  %331 = vmatprep.subr.bf16.mxu0 0
  %332 = vmatpush1.bf16.msra.mxu0 0
  %333 = vmatprep.subr.bf16.mxu0 0
  %334 = vmatpush1.bf16.msra.mxu0 0
  %335 = vmatprep.subr.bf16.mxu0 0
  %336 = vmatpush1.bf16.msra.mxu0 %v305
  %337 = vmatprep.subr.bf16.mxu0 0
  %338 = vmatpush1.bf16.msra.mxu0 %v304
  %339 = vmatprep.subr.bf16.mxu0 0
  %340 = vmatpush2.bf16.msra.mxu0 0
  %341 = vmatprep.subr.bf16.mxu0 0
  %342 = vmatpush2.bf16.msra.mxu0 0
  %343 = vmatprep.subr.bf16.mxu0 0
  %344 = vmatpush2.bf16.msra.mxu0 0
  %345 = vmatprep.subr.bf16.mxu0 0
  %346 = vmatpush2.bf16.msra.mxu0 0
  %347 = vmatprep.subr.bf16.mxu0 0
  %348 = vmatpush2.bf16.msra.mxu0 0
  %349 = vmatprep.subr.bf16.mxu0 0
  %350 = vmatpush2.bf16.msra.mxu0 0
  %351 = vmatprep.subr.bf16.mxu0 0
  %352 = vmatpush2.bf16.msra.mxu0 0
  %353 = vmatprep.subr.bf16.mxu0 0
  %354 = vmatpush2.bf16.msra.mxu0 0
  %355 = vmatprep.mubr.bf16.mxu0 0
  %356 = vmatmul.mubr.bf16.gmra.mxu0 %v318
  %v357 = vpop.f32.mrf.mxu0
  %v358 = vadd.f32 0.0, %v357
  %v359 = vpop.f32.mrf.mxu0
  %v360 = vpop.f32.mrf.mxu0
  %v361 = vadd.f32 0.0, %v360
  %v362 = vpop.f32.mrf.mxu0
  %363 = vmatprep.mubr.bf16.mxu0 0
  %364 = vmatmul.mubr.bf16.gmra.mxu0 %v321
  %v365 = vpop.f32.mrf.mxu0
  %v366 = vadd.f32 0.0, %v365
  %v367 = vpop.f32.mrf.mxu0
  %v368 = vpop.f32.mrf.mxu0
  %v369 = vadd.f32 0.0, %v368
  %v370 = vpop.f32.mrf.mxu0
  %371 = vdwg.mxu0
  %v372 = vpack.c.bf16 %v361, %v358
  %v373 = vpack.c.bf16 %v369, %v366
  %v378 = vunpack.c.l.b16 %v64
  %v379 = vunpack.c.l.b16 %v65
  %v380 = vunpack.c.l.b16 %v66
  %v381 = vunpack.c.l.b16 %v67
  %v382 = vpack.c.b16 %v379, %v378
  %v383 = vpack.c.b16 %v381, %v380
  %v385 = vsel %vm316, %v382, 0
  %v388 = vsel %vm316, %v383, 0
  %390 = vmatprep.subr.bf16.mxu0 0
  %391 = vmatpush1.bf16.msra.mxu0 0
  %392 = vmatprep.subr.bf16.mxu0 0
  %393 = vmatpush1.bf16.msra.mxu0 0
  %394 = vmatprep.subr.bf16.mxu0 0
  %395 = vmatpush1.bf16.msra.mxu0 0
  %396 = vmatprep.subr.bf16.mxu0 0
  %397 = vmatpush1.bf16.msra.mxu0 0
  %398 = vmatprep.subr.bf16.mxu0 0
  %399 = vmatpush1.bf16.msra.mxu0 0
  %400 = vmatprep.subr.bf16.mxu0 0
  %401 = vmatpush1.bf16.msra.mxu0 0
  %402 = vmatprep.subr.bf16.mxu0 0
  %403 = vmatpush1.bf16.msra.mxu0 %v305
  %404 = vmatprep.subr.bf16.mxu0 0
  %405 = vmatpush1.bf16.msra.mxu0 %v304
  %406 = vmatprep.subr.bf16.mxu0 0
  %407 = vmatpush2.bf16.msra.mxu0 0
  %408 = vmatprep.subr.bf16.mxu0 0
  %409 = vmatpush2.bf16.msra.mxu0 0
  %410 = vmatprep.subr.bf16.mxu0 0
  %411 = vmatpush2.bf16.msra.mxu0 0
  %412 = vmatprep.subr.bf16.mxu0 0
  %413 = vmatpush2.bf16.msra.mxu0 0
  %414 = vmatprep.subr.bf16.mxu0 0
  %415 = vmatpush2.bf16.msra.mxu0 0
  %416 = vmatprep.subr.bf16.mxu0 0
  %417 = vmatpush2.bf16.msra.mxu0 0
  %418 = vmatprep.subr.bf16.mxu0 0
  %419 = vmatpush2.bf16.msra.mxu0 0
  %420 = vmatprep.subr.bf16.mxu0 0
  %421 = vmatpush2.bf16.msra.mxu0 0
  %422 = vmatprep.mubr.bf16.mxu0 0
  %423 = vmatmul.mubr.bf16.gmra.mxu0 %v385
  %v424 = vpop.f32.mrf.mxu0
  %v425 = vadd.f32 0.0, %v424
  %v426 = vpop.f32.mrf.mxu0
  %v427 = vpop.f32.mrf.mxu0
  %v428 = vadd.f32 0.0, %v427
  %v429 = vpop.f32.mrf.mxu0
  %430 = vmatprep.mubr.bf16.mxu0 0
  %431 = vmatmul.mubr.bf16.gmra.mxu0 %v388
  %v432 = vpop.f32.mrf.mxu0
  %v433 = vadd.f32 0.0, %v432
  %v434 = vpop.f32.mrf.mxu0
  %v435 = vpop.f32.mrf.mxu0
  %v436 = vadd.f32 0.0, %v435
  %v437 = vpop.f32.mrf.mxu0
  %438 = vdwg.mxu0
  %v439 = vpack.c.bf16 %v428, %v425
  %v440 = vpack.c.bf16 %v436, %v433
  %v441 = vld [vmem:[%s13] sm:$0xf]
  %v442 = vld [vmem:[%s13 + $0x4] sm:$0xf]
  %v443 = vld [vmem:[%s13 + $0x8] sm:$0xf]
  %v444 = vld [vmem:[%s13 + $0xc] sm:$0xf]
  %v445 = vld [vmem:[%s13 + $0x10] sm:$0xf]
  %v446 = vld [vmem:[%s13 + $0x14] sm:$0xf]
  %v447 = vld [vmem:[%s13 + $0x18] sm:$0xf]
  %v448 = vld [vmem:[%s13 + $0x1c] sm:$0xf]
  %s449 = scalar_lea.vmem %s13, 32
  %v450 = vld [vmem:[%s449] sm:$0xf]
  %v451 = vld [vmem:[%s449 + $0x4] sm:$0xf]
  %v452 = vld [vmem:[%s449 + $0x8] sm:$0xf]
  %v453 = vld [vmem:[%s449 + $0xc] sm:$0xf]
  %v454 = vld [vmem:[%s449 + $0x10] sm:$0xf]
  %v455 = vld [vmem:[%s449 + $0x14] sm:$0xf]
  %v456 = vld [vmem:[%s449 + $0x18] sm:$0xf]
  %v457 = vld [vmem:[%s449 + $0x1c] sm:$0xf]
  %v466 = vunpack.c.l.b16 %v450
  %v467 = vunpack.c.l.b16 %v451
  %v468 = vunpack.c.l.b16 %v452
  %v469 = vunpack.c.l.b16 %v453
  %v470 = vunpack.c.l.b16 %v454
  %v471 = vunpack.c.l.b16 %v455
  %v472 = vunpack.c.l.b16 %v456
  %v473 = vunpack.c.l.b16 %v457
  %v474 = vpack.c.b16 %v467, %v466
  %v475 = vpack.c.b16 %v469, %v468
  %v476 = vpack.c.b16 %v471, %v470
  %v477 = vpack.c.b16 %v473, %v472
  %v483 = vsel %vm96, %v304, 0
  %v486 = vsel %vm96, %v305, 0
  %488 = vmatprep.subr.bf16.mxu0 0
  %489 = vmatpush1.bf16.msra.mxu0 0
  %490 = vmatprep.subr.bf16.mxu0 0
  %491 = vmatpush1.bf16.msra.mxu0 0
  %492 = vmatprep.subr.bf16.mxu0 0
  %493 = vmatpush1.bf16.msra.mxu0 0
  %494 = vmatprep.subr.bf16.mxu0 0
  %495 = vmatpush1.bf16.msra.mxu0 0
  %496 = vmatprep.subr.bf16.mxu0 0
  %497 = vmatpush1.bf16.msra.mxu0 %v477
  %498 = vmatprep.subr.bf16.mxu0 0
  %499 = vmatpush1.bf16.msra.mxu0 %v476
  %500 = vmatprep.subr.bf16.mxu0 0
  %501 = vmatpush1.bf16.msra.mxu0 %v475
  %502 = vmatprep.subr.bf16.mxu0 0
  %503 = vmatpush1.bf16.msra.mxu0 %v474
  %504 = vmatprep.subr.bf16.mxu0 0
  %505 = vmatpush2.bf16.msra.mxu0 0
  %506 = vmatprep.subr.bf16.mxu0 0
  %507 = vmatpush2.bf16.msra.mxu0 0
  %508 = vmatprep.subr.bf16.mxu0 0
  %509 = vmatpush2.bf16.msra.mxu0 0
  %510 = vmatprep.subr.bf16.mxu0 0
  %511 = vmatpush2.bf16.msra.mxu0 0
  %512 = vmatprep.subr.bf16.mxu0 0
  %513 = vmatpush2.bf16.msra.mxu0 0
  %514 = vmatprep.subr.bf16.mxu0 0
  %515 = vmatpush2.bf16.msra.mxu0 0
  %516 = vmatprep.subr.bf16.mxu0 0
  %517 = vmatpush2.bf16.msra.mxu0 0
  %518 = vmatprep.subr.bf16.mxu0 0
  %519 = vmatpush2.bf16.msra.mxu0 0
  %520 = vmatprep.mubr.bf16.mxu0 0
  %521 = vmatmul.mubr.bf16.gmra.mxu0 %v483
  %v522 = vpop.f32.mrf.mxu0
  %v523 = vadd.f32 0.0, %v522
  %v524 = vpop.f32.mrf.mxu0
  %v525 = vpop.f32.mrf.mxu0
  %v526 = vadd.f32 0.0, %v525
  %v527 = vpop.f32.mrf.mxu0
  %528 = vmatprep.mubr.bf16.mxu0 0
  %529 = vmatmul.mubr.bf16.gmra.mxu0 %v486
  %v530 = vpop.f32.mrf.mxu0
  %v531 = vadd.f32 0.0, %v530
  %v532 = vpop.f32.mrf.mxu0
  %v533 = vpop.f32.mrf.mxu0
  %v534 = vadd.f32 0.0, %v533
  %v535 = vpop.f32.mrf.mxu0
  %536 = vdwg.mxu0
  %v545 = vunpack.c.l.b16 %v441
  %v546 = vunpack.c.l.b16 %v442
  %v547 = vunpack.c.l.b16 %v443
  %v548 = vunpack.c.l.b16 %v444
  %v549 = vunpack.c.l.b16 %v445
  %v550 = vunpack.c.l.b16 %v446
  %v551 = vunpack.c.l.b16 %v447
  %v552 = vunpack.c.l.b16 %v448
  %v553 = vpack.c.b16 %v546, %v545
  %v554 = vpack.c.b16 %v548, %v547
  %v555 = vpack.c.b16 %v550, %v549
  %v556 = vpack.c.b16 %v552, %v551
  %v562 = vsel %vm96, %v372, 0
  %v565 = vsel %vm96, %v373, 0
  %567 = vmatprep.subr.bf16.mxu0 0
  %568 = vmatpush1.bf16.msra.mxu0 0
  %569 = vmatprep.subr.bf16.mxu0 0
  %570 = vmatpush1.bf16.msra.mxu0 0
  %571 = vmatprep.subr.bf16.mxu0 0
  %572 = vmatpush1.bf16.msra.mxu0 0
  %573 = vmatprep.subr.bf16.mxu0 0
  %574 = vmatpush1.bf16.msra.mxu0 0
  %575 = vmatprep.subr.bf16.mxu0 0
  %576 = vmatpush1.bf16.msra.mxu0 %v556
  %577 = vmatprep.subr.bf16.mxu0 0
  %578 = vmatpush1.bf16.msra.mxu0 %v555
  %579 = vmatprep.subr.bf16.mxu0 0
  %580 = vmatpush1.bf16.msra.mxu0 %v554
  %581 = vmatprep.subr.bf16.mxu0 0
  %582 = vmatpush1.bf16.msra.mxu0 %v553
  %583 = vmatprep.subr.bf16.mxu0 0
  %584 = vmatpush2.bf16.msra.mxu0 0
  %585 = vmatprep.subr.bf16.mxu0 0
  %586 = vmatpush2.bf16.msra.mxu0 0
  %587 = vmatprep.subr.bf16.mxu0 0
  %588 = vmatpush2.bf16.msra.mxu0 0
  %589 = vmatprep.subr.bf16.mxu0 0
  %590 = vmatpush2.bf16.msra.mxu0 0
  %591 = vmatprep.subr.bf16.mxu0 0
  %592 = vmatpush2.bf16.msra.mxu0 0
  %593 = vmatprep.subr.bf16.mxu0 0
  %594 = vmatpush2.bf16.msra.mxu0 0
  %595 = vmatprep.subr.bf16.mxu0 0
  %596 = vmatpush2.bf16.msra.mxu0 0
  %597 = vmatprep.subr.bf16.mxu0 0
  %598 = vmatpush2.bf16.msra.mxu0 0
  %599 = vmatprep.mubr.bf16.mxu0 0
  %600 = vmatmul.mubr.bf16.gmra.mxu0 %v562
  %v601 = vpop.f32.mrf.mxu0
  %v602 = vadd.f32 %v523, %v601
  %v603 = vpop.f32.mrf.mxu0
  %v604 = vpop.f32.mrf.mxu0
  %v605 = vadd.f32 %v526, %v604
  %v606 = vpop.f32.mrf.mxu0
  %607 = vmatprep.mubr.bf16.mxu0 0
  %608 = vmatmul.mubr.bf16.gmra.mxu0 %v565
  %v609 = vpop.f32.mrf.mxu0
  %v610 = vadd.f32 %v531, %v609
  %v611 = vpop.f32.mrf.mxu0
  %v612 = vpop.f32.mrf.mxu0
  %v613 = vadd.f32 %v534, %v612
  %v614 = vpop.f32.mrf.mxu0
  %615 = vdwg.mxu0
  %s616 = scalar_lea.vmem %s13, 64
  %v617 = vld [vmem:[%s616] sm:$0xf]
  %v618 = vld [vmem:[%s616 + $0x4] sm:$0xf]
  %v619 = vld [vmem:[%s616 + $0x8] sm:$0xf]
  %v620 = vld [vmem:[%s616 + $0xc] sm:$0xf]
  %v621 = vld [vmem:[%s616 + $0x10] sm:$0xf]
  %v622 = vld [vmem:[%s616 + $0x14] sm:$0xf]
  %v623 = vld [vmem:[%s616 + $0x18] sm:$0xf]
  %v624 = vld [vmem:[%s616 + $0x1c] sm:$0xf]
  %v633 = vunpack.c.l.b16 %v617
  %v634 = vunpack.c.l.b16 %v618
  %v635 = vunpack.c.l.b16 %v619
  %v636 = vunpack.c.l.b16 %v620
  %v637 = vunpack.c.l.b16 %v621
  %v638 = vunpack.c.l.b16 %v622
  %v639 = vunpack.c.l.b16 %v623
  %v640 = vunpack.c.l.b16 %v624
  %v641 = vpack.c.b16 %v634, %v633
  %v642 = vpack.c.b16 %v636, %v635
  %v643 = vpack.c.b16 %v638, %v637
  %v644 = vpack.c.b16 %v640, %v639
  %v650 = vsel %vm96, %v439, 0
  %v653 = vsel %vm96, %v440, 0
  %655 = vmatprep.subr.bf16.mxu0 0
  %656 = vmatpush1.bf16.msra.mxu0 0
  %657 = vmatprep.subr.bf16.mxu0 0
  %658 = vmatpush1.bf16.msra.mxu0 0
  %659 = vmatprep.subr.bf16.mxu0 0
  %660 = vmatpush1.bf16.msra.mxu0 0
  %661 = vmatprep.subr.bf16.mxu0 0
  %662 = vmatpush1.bf16.msra.mxu0 0
  %663 = vmatprep.subr.bf16.mxu0 0
  %664 = vmatpush1.bf16.msra.mxu0 %v644
  %665 = vmatprep.subr.bf16.mxu0 0
  %666 = vmatpush1.bf16.msra.mxu0 %v643
  %667 = vmatprep.subr.bf16.mxu0 0
  %668 = vmatpush1.bf16.msra.mxu0 %v642
  %669 = vmatprep.subr.bf16.mxu0 0
  %670 = vmatpush1.bf16.msra.mxu0 %v641
  %671 = vmatprep.subr.bf16.mxu0 0
  %672 = vmatpush2.bf16.msra.mxu0 0
  %673 = vmatprep.subr.bf16.mxu0 0
  %674 = vmatpush2.bf16.msra.mxu0 0
  %675 = vmatprep.subr.bf16.mxu0 0
  %676 = vmatpush2.bf16.msra.mxu0 0
  %677 = vmatprep.subr.bf16.mxu0 0
  %678 = vmatpush2.bf16.msra.mxu0 0
  %679 = vmatprep.subr.bf16.mxu0 0
  %680 = vmatpush2.bf16.msra.mxu0 0
  %681 = vmatprep.subr.bf16.mxu0 0
  %682 = vmatpush2.bf16.msra.mxu0 0
  %683 = vmatprep.subr.bf16.mxu0 0
  %684 = vmatpush2.bf16.msra.mxu0 0
  %685 = vmatprep.subr.bf16.mxu0 0
  %686 = vmatpush2.bf16.msra.mxu0 0
  %687 = vmatprep.mubr.bf16.mxu0 0
  %688 = vmatmul.mubr.bf16.gmra.mxu0 %v650
  %v689 = vpop.f32.mrf.mxu0
  %v690 = vadd.f32 0.0, %v689
  %v691 = vpop.f32.mrf.mxu0
  %v692 = vpop.f32.mrf.mxu0
  %v693 = vadd.f32 0.0, %v692
  %v694 = vpop.f32.mrf.mxu0
  %695 = vmatprep.mubr.bf16.mxu0 0
  %696 = vmatmul.mubr.bf16.gmra.mxu0 %v653
  %v697 = vpop.f32.mrf.mxu0
  %v698 = vadd.f32 0.0, %v697
  %v699 = vpop.f32.mrf.mxu0
  %v700 = vpop.f32.mrf.mxu0
  %v701 = vadd.f32 0.0, %v700
  %v702 = vpop.f32.mrf.mxu0
  %703 = vdwg.mxu0
  %v704 = vadd.f32 %v602, %v690
  %v705 = vadd.f32 %v605, %v693
  %v706 = vadd.f32 %v610, %v698
  %v707 = vadd.f32 %v613, %v701
  %v708 = vmax.f32 %v704, 0.0
  %v709 = vmax.f32 %v705, 0.0
  %v710 = vmax.f32 %v706, 0.0
  %v711 = vmax.f32 %v707, 0.0
  %v712 = vadd.f32 %v708, %v709
  %v713 = vadd.f32 %v712, %v710
  %v714 = vadd.f32 %v713, %v711
  %v715 = vrot.slane %v714, 4
  %v716 = vadd.f32 %v714, %v715
  %v717 = vrot.slane %v716, 2
  %v718 = vadd.f32 %v716, %v717
  %v719 = vrot.slane %v718, 1
  %v720 = vadd.f32 %v718, %v719
  %v721 = vmul.f32 %v708, %v708
  %v722 = vmul.f32 %v709, %v709
  %v723 = vmul.f32 %v710, %v710
  %v724 = vmul.f32 %v711, %v711
  %v725 = vadd.f32 %v721, %v722
  %v726 = vadd.f32 %v725, %v723
  %v727 = vadd.f32 %v726, %v724
  %v728 = vrot.slane %v727, 4
  %v729 = vadd.f32 %v727, %v728
  %v730 = vrot.slane %v729, 2
  %v731 = vadd.f32 %v729, %v730
  %v732 = vrot.slane %v731, 1
  %v733 = vadd.f32 %v731, %v732
  %734 = vmatprep.subr.mxu0 0.0
  %735 = vmatpush1.msra.mxu0 %v91
  %736 = vmatprep.subr.mxu0 0.0
  %737 = vmatpush1.msra.mxu0 %v90
  %738 = vmatprep.subr.mxu0 0.0
  %739 = vmatpush1.msra.mxu0 %v89
  %740 = vmatprep.subr.mxu0 0.0
  %741 = vmatpush1.msra.mxu0 %v88
  %742 = vmatprep.subr.mxu0 0.0
  %743 = vmatpush1.msra.mxu0 %v87
  %744 = vmatprep.subr.mxu0 0.0
  %745 = vmatpush1.msra.mxu0 %v86
  %746 = vmatprep.subr.mxu0 0.0
  %747 = vmatpush1.msra.mxu0 %v85
  %748 = vmatprep.subr.mxu0 0.0
  %749 = vmatpush1.msra.mxu0 %v84
  %750 = vmatprep.subr.mxu0 0.0
  %751 = vmatpush1.msra.mxu0 %v83
  %752 = vmatprep.subr.mxu0 0.0
  %753 = vmatpush1.msra.mxu0 %v82
  %754 = vmatprep.subr.mxu0 0.0
  %755 = vmatpush1.msra.mxu0 %v81
  %756 = vmatprep.subr.mxu0 0.0
  %757 = vmatpush1.msra.mxu0 %v80
  %758 = vmatprep.subr.mxu0 0.0
  %759 = vmatpush1.msra.mxu0 %v79
  %760 = vmatprep.subr.mxu0 0.0
  %761 = vmatpush1.msra.mxu0 %v78
  %762 = vmatprep.subr.mxu0 0.0
  %763 = vmatpush1.msra.mxu0 %v77
  %764 = vmatprep.subr.mxu0 0.0
  %765 = vmatpush1.msra.mxu0 %v76
  %766 = vmatprep.subr.mxu0 0.0
  %767 = vmatpush2.msra.mxu0 0.0
  %768 = vmatprep.subr.mxu0 0.0
  %769 = vmatpush2.msra.mxu0 0.0
  %770 = vmatprep.subr.mxu0 0.0
  %771 = vmatpush2.msra.mxu0 0.0
  %772 = vmatprep.subr.mxu0 0.0
  %773 = vmatpush2.msra.mxu0 0.0
  %774 = vmatprep.subr.mxu0 0.0
  %775 = vmatpush2.msra.mxu0 0.0
  %776 = vmatprep.subr.mxu0 0.0
  %777 = vmatpush2.msra.mxu0 0.0
  %778 = vmatprep.subr.mxu0 0.0
  %779 = vmatpush2.msra.mxu0 0.0
  %780 = vmatprep.subr.mxu0 0.0
  %781 = vmatpush2.msra.mxu0 0.0
  %782 = vmatprep.subr.mxu0 0.0
  %783 = vmatpush2.msra.mxu0 0.0
  %784 = vmatprep.subr.mxu0 0.0
  %785 = vmatpush2.msra.mxu0 0.0
  %786 = vmatprep.subr.mxu0 0.0
  %787 = vmatpush2.msra.mxu0 0.0
  %788 = vmatprep.subr.mxu0 0.0
  %789 = vmatpush2.msra.mxu0 0.0
  %790 = vmatprep.subr.mxu0 0.0
  %791 = vmatpush2.msra.mxu0 0.0
  %792 = vmatprep.subr.mxu0 0.0
  %793 = vmatpush2.msra.mxu0 0.0
  %794 = vmatprep.subr.mxu0 0.0
  %795 = vmatpush2.msra.mxu0 0.0
  %796 = vmatprep.subr.mxu0 0.0
  %797 = vmatpush2.msra.mxu0 0.0
  %798 = vmatprep.mubr.f32.mxu0 0.0
  %799 = vmatmul.mubr.f32.gmra.mxu0 %v720
  %v800 = vpop.f32.mrf.mxu0
  %v801 = vadd.f32 0.0, %v800
  %v802 = vpop.f32.mrf.mxu0
  %803 = vdwg.mxu0
  %v804 = vmul.f32 %v801, 0.001953125
  %805 = vmatprep.subr.mxu0 0.0
  %806 = vmatpush1.msra.mxu0 %v91
  %807 = vmatprep.subr.mxu0 0.0
  %808 = vmatpush1.msra.mxu0 %v90
  %809 = vmatprep.subr.mxu0 0.0
  %810 = vmatpush1.msra.mxu0 %v89
  %811 = vmatprep.subr.mxu0 0.0
  %812 = vmatpush1.msra.mxu0 %v88
  %813 = vmatprep.subr.mxu0 0.0
  %814 = vmatpush1.msra.mxu0 %v87
  %815 = vmatprep.subr.mxu0 0.0
  %816 = vmatpush1.msra.mxu0 %v86
  %817 = vmatprep.subr.mxu0 0.0
  %818 = vmatpush1.msra.mxu0 %v85
  %819 = vmatprep.subr.mxu0 0.0
  %820 = vmatpush1.msra.mxu0 %v84
  %821 = vmatprep.subr.mxu0 0.0
  %822 = vmatpush1.msra.mxu0 %v83
  %823 = vmatprep.subr.mxu0 0.0
  %824 = vmatpush1.msra.mxu0 %v82
  %825 = vmatprep.subr.mxu0 0.0
  %826 = vmatpush1.msra.mxu0 %v81
  %827 = vmatprep.subr.mxu0 0.0
  %828 = vmatpush1.msra.mxu0 %v80
  %829 = vmatprep.subr.mxu0 0.0
  %830 = vmatpush1.msra.mxu0 %v79
  %831 = vmatprep.subr.mxu0 0.0
  %832 = vmatpush1.msra.mxu0 %v78
  %833 = vmatprep.subr.mxu0 0.0
  %834 = vmatpush1.msra.mxu0 %v77
  %835 = vmatprep.subr.mxu0 0.0
  %836 = vmatpush1.msra.mxu0 %v76
  %837 = vmatprep.subr.mxu0 0.0
  %838 = vmatpush2.msra.mxu0 0.0
  %839 = vmatprep.subr.mxu0 0.0
  %840 = vmatpush2.msra.mxu0 0.0
  %841 = vmatprep.subr.mxu0 0.0
  %842 = vmatpush2.msra.mxu0 0.0
  %843 = vmatprep.subr.mxu0 0.0
  %844 = vmatpush2.msra.mxu0 0.0
  %845 = vmatprep.subr.mxu0 0.0
  %846 = vmatpush2.msra.mxu0 0.0
  %847 = vmatprep.subr.mxu0 0.0
  %848 = vmatpush2.msra.mxu0 0.0
  %849 = vmatprep.subr.mxu0 0.0
  %850 = vmatpush2.msra.mxu0 0.0
  %851 = vmatprep.subr.mxu0 0.0
  %852 = vmatpush2.msra.mxu0 0.0
  %853 = vmatprep.subr.mxu0 0.0
  %854 = vmatpush2.msra.mxu0 0.0
  %855 = vmatprep.subr.mxu0 0.0
  %856 = vmatpush2.msra.mxu0 0.0
  %857 = vmatprep.subr.mxu0 0.0
  %858 = vmatpush2.msra.mxu0 0.0
  %859 = vmatprep.subr.mxu0 0.0
  %860 = vmatpush2.msra.mxu0 0.0
  %861 = vmatprep.subr.mxu0 0.0
  %862 = vmatpush2.msra.mxu0 0.0
  %863 = vmatprep.subr.mxu0 0.0
  %864 = vmatpush2.msra.mxu0 0.0
  %865 = vmatprep.subr.mxu0 0.0
  %866 = vmatpush2.msra.mxu0 0.0
  %867 = vmatprep.subr.mxu0 0.0
  %868 = vmatpush2.msra.mxu0 0.0
  %869 = vmatprep.mubr.f32.mxu0 0.0
  %870 = vmatmul.mubr.f32.gmra.mxu0 %v733
  %v871 = vpop.f32.mrf.mxu0
  %v872 = vadd.f32 0.0, %v871
  %v873 = vpop.f32.mrf.mxu0
  %874 = vdwg.mxu0
  %v875 = vmul.f32 %v872, 0.001953125
  %v876 = vmul.f32 %v804, %v804
  %v877 = vsub.f32 %v875, %v876
  %v878 = vld [vmem:[%s7] sm:$0x1]
  %v879 = vadd.f32 %v877, 1e-05
  %v880 = vrsqrt.pop %v879
  %v881 = vmul.f32 %v878, %v880
  %v882 = vld [vmem:[%s8] sm:$0x1]
  %v883 = vmul.f32 %v804, %v881
  %v884 = vsub.f32 %v882, %v883
  %v886 = vlaneseq
  %v887 = vshrl.u32 %v886, 7
  %v888 = vsub.s32 0, %v887
  %v889 = vrot.slane %v881, %v888
  %v891 = vmul.f32 %v708, %v889
  %v892 = vmul.f32 %v709, %v889
  %v893 = vmul.f32 %v710, %v889
  %v894 = vmul.f32 %v711, %v889
  %v896 = vlaneseq
  %v897 = vshrl.u32 %v896, 7
  %v898 = vsub.s32 0, %v897
  %v899 = vrot.slane %v884, %v898
  %v901 = vadd.f32 %v891, %v899
  %v902 = vadd.f32 %v892, %v899
  %v903 = vadd.f32 %v893, %v899
  %v904 = vadd.f32 %v894, %v899
  %v905 = vpack.c.bf16 %v902, %v901
  %v906 = vpack.c.bf16 %v904, %v903
  %907 = vmatprep.subr.bf16.mxu0 0
  %908 = vmatpush1.bf16.msra.mxu0 0
  %909 = vmatprep.subr.bf16.mxu0 0
  %910 = vmatpush1.bf16.msra.mxu0 0
  %911 = vmatprep.subr.bf16.mxu0 0
  %912 = vmatpush1.bf16.msra.mxu0 0
  %913 = vmatprep.subr.bf16.mxu0 0
  %914 = vmatpush1.bf16.msra.mxu0 0
  %915 = vmatprep.subr.bf16.mxu0 0
  %916 = vmatpush1.bf16.msra.mxu0 0
  %917 = vmatprep.subr.bf16.mxu0 0
  %918 = vmatpush1.bf16.msra.mxu0 0
  %919 = vmatprep.subr.bf16.mxu0 0
  %920 = vmatpush1.bf16.msra.mxu0 %v906
  %921 = vmatprep.subr.bf16.mxu0 0
  %922 = vmatpush1.bf16.msra.mxu0 %v905
  %923 = vmatprep.subr.bf16.mxu0 0
  %924 = vmatpush2.bf16.msra.mxu0 0
  %925 = vmatprep.subr.bf16.mxu0 0
  %926 = vmatpush2.bf16.msra.mxu0 0
  %927 = vmatprep.subr.bf16.mxu0 0
  %928 = vmatpush2.bf16.msra.mxu0 0
  %929 = vmatprep.subr.bf16.mxu0 0
  %930 = vmatpush2.bf16.msra.mxu0 0
  %931 = vmatprep.subr.bf16.mxu0 0
  %932 = vmatpush2.bf16.msra.mxu0 0
  %933 = vmatprep.subr.bf16.mxu0 0
  %934 = vmatpush2.bf16.msra.mxu0 0
  %935 = vmatprep.subr.bf16.mxu0 0
  %936 = vmatpush2.bf16.msra.mxu0 0
  %937 = vmatprep.subr.bf16.mxu0 0
  %938 = vmatpush2.bf16.msra.mxu0 0
  %939 = vmatprep.mubr.bf16.mxu0 0
  %940 = vmatmul.mubr.bf16.gmra.mxu0 %v318
  %v941 = vpop.f32.mrf.mxu0
  %v942 = vadd.f32 0.0, %v941
  %v943 = vpop.f32.mrf.mxu0
  %v944 = vpop.f32.mrf.mxu0
  %v945 = vadd.f32 0.0, %v944
  %v946 = vpop.f32.mrf.mxu0
  %947 = vmatprep.mubr.bf16.mxu0 0
  %948 = vmatmul.mubr.bf16.gmra.mxu0 %v321
  %v949 = vpop.f32.mrf.mxu0
  %v950 = vadd.f32 0.0, %v949
  %v951 = vpop.f32.mrf.mxu0
  %v952 = vpop.f32.mrf.mxu0
  %v953 = vadd.f32 0.0, %v952
  %v954 = vpop.f32.mrf.mxu0
  %955 = vdwg.mxu0
  %v956 = vpack.c.bf16 %v945, %v942
  %v957 = vpack.c.bf16 %v953, %v950
  %958 = vmatprep.subr.bf16.mxu0 0
  %959 = vmatpush1.bf16.msra.mxu0 0
  %960 = vmatprep.subr.bf16.mxu0 0
  %961 = vmatpush1.bf16.msra.mxu0 0
  %962 = vmatprep.subr.bf16.mxu0 0
  %963 = vmatpush1.bf16.msra.mxu0 0
  %964 = vmatprep.subr.bf16.mxu0 0
  %965 = vmatpush1.bf16.msra.mxu0 0
  %966 = vmatprep.subr.bf16.mxu0 0
  %967 = vmatpush1.bf16.msra.mxu0 0
  %968 = vmatprep.subr.bf16.mxu0 0
  %969 = vmatpush1.bf16.msra.mxu0 0
  %970 = vmatprep.subr.bf16.mxu0 0
  %971 = vmatpush1.bf16.msra.mxu0 %v906
  %972 = vmatprep.subr.bf16.mxu0 0
  %973 = vmatpush1.bf16.msra.mxu0 %v905
  %974 = vmatprep.subr.bf16.mxu0 0
  %975 = vmatpush2.bf16.msra.mxu0 0
  %976 = vmatprep.subr.bf16.mxu0 0
  %977 = vmatpush2.bf16.msra.mxu0 0
  %978 = vmatprep.subr.bf16.mxu0 0
  %979 = vmatpush2.bf16.msra.mxu0 0
  %980 = vmatprep.subr.bf16.mxu0 0
  %981 = vmatpush2.bf16.msra.mxu0 0
  %982 = vmatprep.subr.bf16.mxu0 0
  %983 = vmatpush2.bf16.msra.mxu0 0
  %984 = vmatprep.subr.bf16.mxu0 0
  %985 = vmatpush2.bf16.msra.mxu0 0
  %986 = vmatprep.subr.bf16.mxu0 0
  %987 = vmatpush2.bf16.msra.mxu0 0
  %988 = vmatprep.subr.bf16.mxu0 0
  %989 = vmatpush2.bf16.msra.mxu0 0
  %990 = vmatprep.mubr.bf16.mxu0 0
  %991 = vmatmul.mubr.bf16.gmra.mxu0 %v385
  %v992 = vpop.f32.mrf.mxu0
  %v993 = vadd.f32 0.0, %v992
  %v994 = vpop.f32.mrf.mxu0
  %v995 = vpop.f32.mrf.mxu0
  %v996 = vadd.f32 0.0, %v995
  %v997 = vpop.f32.mrf.mxu0
  %998 = vmatprep.mubr.bf16.mxu0 0
  %999 = vmatmul.mubr.bf16.gmra.mxu0 %v388
  %v1000 = vpop.f32.mrf.mxu0
  %v1001 = vadd.f32 0.0, %v1000
  %v1002 = vpop.f32.mrf.mxu0
  %v1003 = vpop.f32.mrf.mxu0
  %v1004 = vadd.f32 0.0, %v1003
  %v1005 = vpop.f32.mrf.mxu0
  %1006 = vdwg.mxu0
  %v1007 = vpack.c.bf16 %v996, %v993
  %v1008 = vpack.c.bf16 %v1004, %v1001
  %v1009 = vld [vmem:[%s14] sm:$0xf]
  %v1010 = vld [vmem:[%s14 + $0x4] sm:$0xf]
  %v1011 = vld [vmem:[%s14 + $0x8] sm:$0xf]
  %v1012 = vld [vmem:[%s14 + $0xc] sm:$0xf]
  %v1013 = vld [vmem:[%s14 + $0x10] sm:$0xf]
  %v1014 = vld [vmem:[%s14 + $0x14] sm:$0xf]
  %v1015 = vld [vmem:[%s14 + $0x18] sm:$0xf]
  %v1016 = vld [vmem:[%s14 + $0x1c] sm:$0xf]
  %v1017 = vld [vmem:[%s14 + $0x20] sm:$0xf]
  %v1018 = vld [vmem:[%s14 + $0x24] sm:$0xf]
  %v1019 = vld [vmem:[%s14 + $0x28] sm:$0xf]
  %v1020 = vld [vmem:[%s14 + $0x2c] sm:$0xf]
  %v1021 = vld [vmem:[%s14 + $0x30] sm:$0xf]
  %v1022 = vld [vmem:[%s14 + $0x34] sm:$0xf]
  %v1023 = vld [vmem:[%s14 + $0x38] sm:$0xf]
  %v1024 = vld [vmem:[%s14 + $0x3c] sm:$0xf]
  %s1025 = scalar_lea.vmem %s14, 64
  %v1026 = vld [vmem:[%s1025] sm:$0xf]
  %v1027 = vld [vmem:[%s1025 + $0x4] sm:$0xf]
  %v1028 = vld [vmem:[%s1025 + $0x8] sm:$0xf]
  %v1029 = vld [vmem:[%s1025 + $0xc] sm:$0xf]
  %v1030 = vld [vmem:[%s1025 + $0x10] sm:$0xf]
  %v1031 = vld [vmem:[%s1025 + $0x14] sm:$0xf]
  %v1032 = vld [vmem:[%s1025 + $0x18] sm:$0xf]
  %v1033 = vld [vmem:[%s1025 + $0x1c] sm:$0xf]
  %v1034 = vld [vmem:[%s1025 + $0x20] sm:$0xf]
  %v1035 = vld [vmem:[%s1025 + $0x24] sm:$0xf]
  %v1036 = vld [vmem:[%s1025 + $0x28] sm:$0xf]
  %v1037 = vld [vmem:[%s1025 + $0x2c] sm:$0xf]
  %v1038 = vld [vmem:[%s1025 + $0x30] sm:$0xf]
  %v1039 = vld [vmem:[%s1025 + $0x34] sm:$0xf]
  %v1040 = vld [vmem:[%s1025 + $0x38] sm:$0xf]
  %v1041 = vld [vmem:[%s1025 + $0x3c] sm:$0xf]
  %v1058 = vunpack.c.l.b16 %v1026
  %v1059 = vunpack.c.l.b16 %v1027
  %v1060 = vunpack.c.l.b16 %v1028
  %v1061 = vunpack.c.l.b16 %v1029
  %v1062 = vunpack.c.l.b16 %v1030
  %v1063 = vunpack.c.l.b16 %v1031
  %v1064 = vunpack.c.l.b16 %v1032
  %v1065 = vunpack.c.l.b16 %v1033
  %v1066 = vunpack.c.l.b16 %v1034
  %v1067 = vunpack.c.l.b16 %v1035
  %v1068 = vunpack.c.l.b16 %v1036
  %v1069 = vunpack.c.l.b16 %v1037
  %v1070 = vunpack.c.l.b16 %v1038
  %v1071 = vunpack.c.l.b16 %v1039
  %v1072 = vunpack.c.l.b16 %v1040
  %v1073 = vunpack.c.l.b16 %v1041
  %v1074 = vpack.c.b16 %v1059, %v1058
  %v1075 = vpack.c.b16 %v1061, %v1060
  %v1076 = vpack.c.b16 %v1063, %v1062
  %v1077 = vpack.c.b16 %v1065, %v1064
  %v1078 = vpack.c.b16 %v1067, %v1066
  %v1079 = vpack.c.b16 %v1069, %v1068
  %v1080 = vpack.c.b16 %v1071, %v1070
  %v1081 = vpack.c.b16 %v1073, %v1072
  %1090 = vmatprep.subr.bf16.mxu0 0
  %1091 = vmatpush1.bf16.msra.mxu0 %v1081
  %1092 = vmatprep.subr.bf16.mxu0 0
  %1093 = vmatpush1.bf16.msra.mxu0 %v1080
  %1094 = vmatprep.subr.bf16.mxu0 0
  %1095 = vmatpush1.bf16.msra.mxu0 %v1079
  %1096 = vmatprep.subr.bf16.mxu0 0
  %1097 = vmatpush1.bf16.msra.mxu0 %v1078
  %1098 = vmatprep.subr.bf16.mxu0 0
  %1099 = vmatpush1.bf16.msra.mxu0 %v1077
  %1100 = vmatprep.subr.bf16.mxu0 0
  %1101 = vmatpush1.bf16.msra.mxu0 %v1076
  %1102 = vmatprep.subr.bf16.mxu0 0
  %1103 = vmatpush1.bf16.msra.mxu0 %v1075
  %1104 = vmatprep.subr.bf16.mxu0 0
  %1105 = vmatpush1.bf16.msra.mxu0 %v1074
  %1106 = vmatprep.subr.bf16.mxu0 0
  %1107 = vmatpush2.bf16.msra.mxu0 0
  %1108 = vmatprep.subr.bf16.mxu0 0
  %1109 = vmatpush2.bf16.msra.mxu0 0
  %1110 = vmatprep.subr.bf16.mxu0 0
  %1111 = vmatpush2.bf16.msra.mxu0 0
  %1112 = vmatprep.subr.bf16.mxu0 0
  %1113 = vmatpush2.bf16.msra.mxu0 0
  %1114 = vmatprep.subr.bf16.mxu0 0
  %1115 = vmatpush2.bf16.msra.mxu0 0
  %1116 = vmatprep.subr.bf16.mxu0 0
  %1117 = vmatpush2.bf16.msra.mxu0 0
  %1118 = vmatprep.subr.bf16.mxu0 0
  %1119 = vmatpush2.bf16.msra.mxu0 0
  %1120 = vmatprep.subr.bf16.mxu0 0
  %1121 = vmatpush2.bf16.msra.mxu0 0
  %1122 = vmatprep.mubr.bf16.mxu0 0
  %1123 = vmatmul.mubr.bf16.gmra.mxu0 %v905
  %v1124 = vpop.f32.mrf.mxu0
  %v1125 = vadd.f32 0.0, %v1124
  %v1126 = vpop.f32.mrf.mxu0
  %v1127 = vpop.f32.mrf.mxu0
  %v1128 = vadd.f32 0.0, %v1127
  %v1129 = vpop.f32.mrf.mxu0
  %1130 = vmatprep.mubr.bf16.mxu0 0
  %1131 = vmatmul.mubr.bf16.gmra.mxu0 %v906
  %v1132 = vpop.f32.mrf.mxu0
  %v1133 = vadd.f32 0.0, %v1132
  %v1134 = vpop.f32.mrf.mxu0
  %v1135 = vpop.f32.mrf.mxu0
  %v1136 = vadd.f32 0.0, %v1135
  %v1137 = vpop.f32.mrf.mxu0
  %1138 = vdwg.mxu0
  %v1155 = vunpack.c.l.b16 %v1009
  %v1156 = vunpack.c.l.b16 %v1010
  %v1157 = vunpack.c.l.b16 %v1011
  %v1158 = vunpack.c.l.b16 %v1012
  %v1159 = vunpack.c.l.b16 %v1013
  %v1160 = vunpack.c.l.b16 %v1014
  %v1161 = vunpack.c.l.b16 %v1015
  %v1162 = vunpack.c.l.b16 %v1016
  %v1163 = vunpack.c.l.b16 %v1017
  %v1164 = vunpack.c.l.b16 %v1018
  %v1165 = vunpack.c.l.b16 %v1019
  %v1166 = vunpack.c.l.b16 %v1020
  %v1167 = vunpack.c.l.b16 %v1021
  %v1168 = vunpack.c.l.b16 %v1022
  %v1169 = vunpack.c.l.b16 %v1023
  %v1170 = vunpack.c.l.b16 %v1024
  %v1171 = vpack.c.b16 %v1156, %v1155
  %v1172 = vpack.c.b16 %v1158, %v1157
  %v1173 = vpack.c.b16 %v1160, %v1159
  %v1174 = vpack.c.b16 %v1162, %v1161
  %v1175 = vpack.c.b16 %v1164, %v1163
  %v1176 = vpack.c.b16 %v1166, %v1165
  %v1177 = vpack.c.b16 %v1168, %v1167
  %v1178 = vpack.c.b16 %v1170, %v1169
  %1187 = vmatprep.subr.bf16.mxu0 0
  %1188 = vmatpush1.bf16.msra.mxu0 %v1178
  %1189 = vmatprep.subr.bf16.mxu0 0
  %1190 = vmatpush1.bf16.msra.mxu0 %v1177
  %1191 = vmatprep.subr.bf16.mxu0 0
  %1192 = vmatpush1.bf16.msra.mxu0 %v1176
  %1193 = vmatprep.subr.bf16.mxu0 0
  %1194 = vmatpush1.bf16.msra.mxu0 %v1175
  %1195 = vmatprep.subr.bf16.mxu0 0
  %1196 = vmatpush1.bf16.msra.mxu0 %v1174
  %1197 = vmatprep.subr.bf16.mxu0 0
  %1198 = vmatpush1.bf16.msra.mxu0 %v1173
  %1199 = vmatprep.subr.bf16.mxu0 0
  %1200 = vmatpush1.bf16.msra.mxu0 %v1172
  %1201 = vmatprep.subr.bf16.mxu0 0
  %1202 = vmatpush1.bf16.msra.mxu0 %v1171
  %1203 = vmatprep.subr.bf16.mxu0 0
  %1204 = vmatpush2.bf16.msra.mxu0 0
  %1205 = vmatprep.subr.bf16.mxu0 0
  %1206 = vmatpush2.bf16.msra.mxu0 0
  %1207 = vmatprep.subr.bf16.mxu0 0
  %1208 = vmatpush2.bf16.msra.mxu0 0
  %1209 = vmatprep.subr.bf16.mxu0 0
  %1210 = vmatpush2.bf16.msra.mxu0 0
  %1211 = vmatprep.subr.bf16.mxu0 0
  %1212 = vmatpush2.bf16.msra.mxu0 0
  %1213 = vmatprep.subr.bf16.mxu0 0
  %1214 = vmatpush2.bf16.msra.mxu0 0
  %1215 = vmatprep.subr.bf16.mxu0 0
  %1216 = vmatpush2.bf16.msra.mxu0 0
  %1217 = vmatprep.subr.bf16.mxu0 0
  %1218 = vmatpush2.bf16.msra.mxu0 0
  %1219 = vmatprep.mubr.bf16.mxu0 0
  %1220 = vmatmul.mubr.bf16.gmra.mxu0 %v956
  %v1221 = vpop.f32.mrf.mxu0
  %v1222 = vadd.f32 %v1125, %v1221
  %v1223 = vpop.f32.mrf.mxu0
  %v1224 = vpop.f32.mrf.mxu0
  %v1225 = vadd.f32 %v1128, %v1224
  %v1226 = vpop.f32.mrf.mxu0
  %1227 = vmatprep.mubr.bf16.mxu0 0
  %1228 = vmatmul.mubr.bf16.gmra.mxu0 %v957
  %v1229 = vpop.f32.mrf.mxu0
  %v1230 = vadd.f32 %v1133, %v1229
  %v1231 = vpop.f32.mrf.mxu0
  %v1232 = vpop.f32.mrf.mxu0
  %v1233 = vadd.f32 %v1136, %v1232
  %v1234 = vpop.f32.mrf.mxu0
  %1235 = vdwg.mxu0
  %s1236 = scalar_lea.vmem %s14, 128
  %v1237 = vld [vmem:[%s1236] sm:$0xf]
  %v1238 = vld [vmem:[%s1236 + $0x4] sm:$0xf]
  %v1239 = vld [vmem:[%s1236 + $0x8] sm:$0xf]
  %v1240 = vld [vmem:[%s1236 + $0xc] sm:$0xf]
  %v1241 = vld [vmem:[%s1236 + $0x10] sm:$0xf]
  %v1242 = vld [vmem:[%s1236 + $0x14] sm:$0xf]
  %v1243 = vld [vmem:[%s1236 + $0x18] sm:$0xf]
  %v1244 = vld [vmem:[%s1236 + $0x1c] sm:$0xf]
  %v1245 = vld [vmem:[%s1236 + $0x20] sm:$0xf]
  %v1246 = vld [vmem:[%s1236 + $0x24] sm:$0xf]
  %v1247 = vld [vmem:[%s1236 + $0x28] sm:$0xf]
  %v1248 = vld [vmem:[%s1236 + $0x2c] sm:$0xf]
  %v1249 = vld [vmem:[%s1236 + $0x30] sm:$0xf]
  %v1250 = vld [vmem:[%s1236 + $0x34] sm:$0xf]
  %v1251 = vld [vmem:[%s1236 + $0x38] sm:$0xf]
  %v1252 = vld [vmem:[%s1236 + $0x3c] sm:$0xf]
  %v1269 = vunpack.c.l.b16 %v1237
  %v1270 = vunpack.c.l.b16 %v1238
  %v1271 = vunpack.c.l.b16 %v1239
  %v1272 = vunpack.c.l.b16 %v1240
  %v1273 = vunpack.c.l.b16 %v1241
  %v1274 = vunpack.c.l.b16 %v1242
  %v1275 = vunpack.c.l.b16 %v1243
  %v1276 = vunpack.c.l.b16 %v1244
  %v1277 = vunpack.c.l.b16 %v1245
  %v1278 = vunpack.c.l.b16 %v1246
  %v1279 = vunpack.c.l.b16 %v1247
  %v1280 = vunpack.c.l.b16 %v1248
  %v1281 = vunpack.c.l.b16 %v1249
  %v1282 = vunpack.c.l.b16 %v1250
  %v1283 = vunpack.c.l.b16 %v1251
  %v1284 = vunpack.c.l.b16 %v1252
  %v1285 = vpack.c.b16 %v1270, %v1269
  %v1286 = vpack.c.b16 %v1272, %v1271
  %v1287 = vpack.c.b16 %v1274, %v1273
  %v1288 = vpack.c.b16 %v1276, %v1275
  %v1289 = vpack.c.b16 %v1278, %v1277
  %v1290 = vpack.c.b16 %v1280, %v1279
  %v1291 = vpack.c.b16 %v1282, %v1281
  %v1292 = vpack.c.b16 %v1284, %v1283
  %1301 = vmatprep.subr.bf16.mxu0 0
  %1302 = vmatpush1.bf16.msra.mxu0 %v1292
  %1303 = vmatprep.subr.bf16.mxu0 0
  %1304 = vmatpush1.bf16.msra.mxu0 %v1291
  %1305 = vmatprep.subr.bf16.mxu0 0
  %1306 = vmatpush1.bf16.msra.mxu0 %v1290
  %1307 = vmatprep.subr.bf16.mxu0 0
  %1308 = vmatpush1.bf16.msra.mxu0 %v1289
  %1309 = vmatprep.subr.bf16.mxu0 0
  %1310 = vmatpush1.bf16.msra.mxu0 %v1288
  %1311 = vmatprep.subr.bf16.mxu0 0
  %1312 = vmatpush1.bf16.msra.mxu0 %v1287
  %1313 = vmatprep.subr.bf16.mxu0 0
  %1314 = vmatpush1.bf16.msra.mxu0 %v1286
  %1315 = vmatprep.subr.bf16.mxu0 0
  %1316 = vmatpush1.bf16.msra.mxu0 %v1285
  %1317 = vmatprep.subr.bf16.mxu0 0
  %1318 = vmatpush2.bf16.msra.mxu0 0
  %1319 = vmatprep.subr.bf16.mxu0 0
  %1320 = vmatpush2.bf16.msra.mxu0 0
  %1321 = vmatprep.subr.bf16.mxu0 0
  %1322 = vmatpush2.bf16.msra.mxu0 0
  %1323 = vmatprep.subr.bf16.mxu0 0
  %1324 = vmatpush2.bf16.msra.mxu0 0
  %1325 = vmatprep.subr.bf16.mxu0 0
  %1326 = vmatpush2.bf16.msra.mxu0 0
  %1327 = vmatprep.subr.bf16.mxu0 0
  %1328 = vmatpush2.bf16.msra.mxu0 0
  %1329 = vmatprep.subr.bf16.mxu0 0
  %1330 = vmatpush2.bf16.msra.mxu0 0
  %1331 = vmatprep.subr.bf16.mxu0 0
  %1332 = vmatpush2.bf16.msra.mxu0 0
  %1333 = vmatprep.mubr.bf16.mxu0 0
  %1334 = vmatmul.mubr.bf16.gmra.mxu0 %v1007
  %v1335 = vpop.f32.mrf.mxu0
  %v1336 = vadd.f32 0.0, %v1335
  %v1337 = vpop.f32.mrf.mxu0
  %v1338 = vpop.f32.mrf.mxu0
  %v1339 = vadd.f32 0.0, %v1338
  %v1340 = vpop.f32.mrf.mxu0
  %1341 = vmatprep.mubr.bf16.mxu0 0
  %1342 = vmatmul.mubr.bf16.gmra.mxu0 %v1008
  %v1343 = vpop.f32.mrf.mxu0
  %v1344 = vadd.f32 0.0, %v1343
  %v1345 = vpop.f32.mrf.mxu0
  %v1346 = vpop.f32.mrf.mxu0
  %v1347 = vadd.f32 0.0, %v1346
  %v1348 = vpop.f32.mrf.mxu0
  %1349 = vdwg.mxu0
  %v1350 = vadd.f32 %v1222, %v1336
  %v1351 = vadd.f32 %v1225, %v1339
  %v1352 = vadd.f32 %v1230, %v1344
  %v1353 = vadd.f32 %v1233, %v1347
  %v1354 = vmax.f32 %v1350, 0.0
  %v1355 = vmax.f32 %v1351, 0.0
  %v1356 = vmax.f32 %v1352, 0.0
  %v1357 = vmax.f32 %v1353, 0.0
  %v1358 = vadd.f32 %v1354, %v1355
  %v1359 = vadd.f32 %v1358, %v1356
  %v1360 = vadd.f32 %v1359, %v1357
  %v1361 = vrot.slane %v1360, 4
  %v1362 = vadd.f32 %v1360, %v1361
  %v1363 = vrot.slane %v1362, 2
  %v1364 = vadd.f32 %v1362, %v1363
  %v1365 = vrot.slane %v1364, 1
  %v1366 = vadd.f32 %v1364, %v1365
  %v1367 = vmul.f32 %v1354, %v1354
  %v1368 = vmul.f32 %v1355, %v1355
  %v1369 = vmul.f32 %v1356, %v1356
  %v1370 = vmul.f32 %v1357, %v1357
  %v1371 = vadd.f32 %v1367, %v1368
  %v1372 = vadd.f32 %v1371, %v1369
  %v1373 = vadd.f32 %v1372, %v1370
  %v1374 = vrot.slane %v1373, 4
  %v1375 = vadd.f32 %v1373, %v1374
  %v1376 = vrot.slane %v1375, 2
  %v1377 = vadd.f32 %v1375, %v1376
  %v1378 = vrot.slane %v1377, 1
  %v1379 = vadd.f32 %v1377, %v1378
  %1380 = vmatprep.subr.mxu0 0.0
  %1381 = vmatpush1.msra.mxu0 %v91
  %1382 = vmatprep.subr.mxu0 0.0
  %1383 = vmatpush1.msra.mxu0 %v90
  %1384 = vmatprep.subr.mxu0 0.0
  %1385 = vmatpush1.msra.mxu0 %v89
  %1386 = vmatprep.subr.mxu0 0.0
  %1387 = vmatpush1.msra.mxu0 %v88
  %1388 = vmatprep.subr.mxu0 0.0
  %1389 = vmatpush1.msra.mxu0 %v87
  %1390 = vmatprep.subr.mxu0 0.0
  %1391 = vmatpush1.msra.mxu0 %v86
  %1392 = vmatprep.subr.mxu0 0.0
  %1393 = vmatpush1.msra.mxu0 %v85
  %1394 = vmatprep.subr.mxu0 0.0
  %1395 = vmatpush1.msra.mxu0 %v84
  %1396 = vmatprep.subr.mxu0 0.0
  %1397 = vmatpush1.msra.mxu0 %v83
  %1398 = vmatprep.subr.mxu0 0.0
  %1399 = vmatpush1.msra.mxu0 %v82
  %1400 = vmatprep.subr.mxu0 0.0
  %1401 = vmatpush1.msra.mxu0 %v81
  %1402 = vmatprep.subr.mxu0 0.0
  %1403 = vmatpush1.msra.mxu0 %v80
  %1404 = vmatprep.subr.mxu0 0.0
  %1405 = vmatpush1.msra.mxu0 %v79
  %1406 = vmatprep.subr.mxu0 0.0
  %1407 = vmatpush1.msra.mxu0 %v78
  %1408 = vmatprep.subr.mxu0 0.0
  %1409 = vmatpush1.msra.mxu0 %v77
  %1410 = vmatprep.subr.mxu0 0.0
  %1411 = vmatpush1.msra.mxu0 %v76
  %1412 = vmatprep.subr.mxu0 0.0
  %1413 = vmatpush2.msra.mxu0 0.0
  %1414 = vmatprep.subr.mxu0 0.0
  %1415 = vmatpush2.msra.mxu0 0.0
  %1416 = vmatprep.subr.mxu0 0.0
  %1417 = vmatpush2.msra.mxu0 0.0
  %1418 = vmatprep.subr.mxu0 0.0
  %1419 = vmatpush2.msra.mxu0 0.0
  %1420 = vmatprep.subr.mxu0 0.0
  %1421 = vmatpush2.msra.mxu0 0.0
  %1422 = vmatprep.subr.mxu0 0.0
  %1423 = vmatpush2.msra.mxu0 0.0
  %1424 = vmatprep.subr.mxu0 0.0
  %1425 = vmatpush2.msra.mxu0 0.0
  %1426 = vmatprep.subr.mxu0 0.0
  %1427 = vmatpush2.msra.mxu0 0.0
  %1428 = vmatprep.subr.mxu0 0.0
  %1429 = vmatpush2.msra.mxu0 0.0
  %1430 = vmatprep.subr.mxu0 0.0
  %1431 = vmatpush2.msra.mxu0 0.0
  %1432 = vmatprep.subr.mxu0 0.0
  %1433 = vmatpush2.msra.mxu0 0.0
  %1434 = vmatprep.subr.mxu0 0.0
  %1435 = vmatpush2.msra.mxu0 0.0
  %1436 = vmatprep.subr.mxu0 0.0
  %1437 = vmatpush2.msra.mxu0 0.0
  %1438 = vmatprep.subr.mxu0 0.0
  %1439 = vmatpush2.msra.mxu0 0.0
  %1440 = vmatprep.subr.mxu0 0.0
  %1441 = vmatpush2.msra.mxu0 0.0
  %1442 = vmatprep.subr.mxu0 0.0
  %1443 = vmatpush2.msra.mxu0 0.0
  %1444 = vmatprep.mubr.f32.mxu0 0.0
  %1445 = vmatmul.mubr.f32.gmra.mxu0 %v1366
  %v1446 = vpop.f32.mrf.mxu0
  %v1447 = vadd.f32 0.0, %v1446
  %v1448 = vpop.f32.mrf.mxu0
  %1449 = vdwg.mxu0
  %v1450 = vmul.f32 %v1447, 0.001953125
  %1451 = vmatprep.subr.mxu0 0.0
  %1452 = vmatpush1.msra.mxu0 %v91
  %1453 = vmatprep.subr.mxu0 0.0
  %1454 = vmatpush1.msra.mxu0 %v90
  %1455 = vmatprep.subr.mxu0 0.0
  %1456 = vmatpush1.msra.mxu0 %v89
  %1457 = vmatprep.subr.mxu0 0.0
  %1458 = vmatpush1.msra.mxu0 %v88
  %1459 = vmatprep.subr.mxu0 0.0
  %1460 = vmatpush1.msra.mxu0 %v87
  %1461 = vmatprep.subr.mxu0 0.0
  %1462 = vmatpush1.msra.mxu0 %v86
  %1463 = vmatprep.subr.mxu0 0.0
  %1464 = vmatpush1.msra.mxu0 %v85
  %1465 = vmatprep.subr.mxu0 0.0
  %1466 = vmatpush1.msra.mxu0 %v84
  %1467 = vmatprep.subr.mxu0 0.0
  %1468 = vmatpush1.msra.mxu0 %v83
  %1469 = vmatprep.subr.mxu0 0.0
  %1470 = vmatpush1.msra.mxu0 %v82
  %1471 = vmatprep.subr.mxu0 0.0
  %1472 = vmatpush1.msra.mxu0 %v81
  %1473 = vmatprep.subr.mxu0 0.0
  %1474 = vmatpush1.msra.mxu0 %v80
  %1475 = vmatprep.subr.mxu0 0.0
  %1476 = vmatpush1.msra.mxu0 %v79
  %1477 = vmatprep.subr.mxu0 0.0
  %1478 = vmatpush1.msra.mxu0 %v78
  %1479 = vmatprep.subr.mxu0 0.0
  %1480 = vmatpush1.msra.mxu0 %v77
  %1481 = vmatprep.subr.mxu0 0.0
  %1482 = vmatpush1.msra.mxu0 %v76
  %1483 = vmatprep.subr.mxu0 0.0
  %1484 = vmatpush2.msra.mxu0 0.0
  %1485 = vmatprep.subr.mxu0 0.0
  %1486 = vmatpush2.msra.mxu0 0.0
  %1487 = vmatprep.subr.mxu0 0.0
  %1488 = vmatpush2.msra.mxu0 0.0
  %1489 = vmatprep.subr.mxu0 0.0
  %1490 = vmatpush2.msra.mxu0 0.0
  %1491 = vmatprep.subr.mxu0 0.0
  %1492 = vmatpush2.msra.mxu0 0.0
  %1493 = vmatprep.subr.mxu0 0.0
  %1494 = vmatpush2.msra.mxu0 0.0
  %1495 = vmatprep.subr.mxu0 0.0
  %1496 = vmatpush2.msra.mxu0 0.0
  %1497 = vmatprep.subr.mxu0 0.0
  %1498 = vmatpush2.msra.mxu0 0.0
  %1499 = vmatprep.subr.mxu0 0.0
  %1500 = vmatpush2.msra.mxu0 0.0
  %1501 = vmatprep.subr.mxu0 0.0
  %1502 = vmatpush2.msra.mxu0 0.0
  %1503 = vmatprep.subr.mxu0 0.0
  %1504 = vmatpush2.msra.mxu0 0.0
  %1505 = vmatprep.subr.mxu0 0.0
  %1506 = vmatpush2.msra.mxu0 0.0
  %1507 = vmatprep.subr.mxu0 0.0
  %1508 = vmatpush2.msra.mxu0 0.0
  %1509 = vmatprep.subr.mxu0 0.0
  %1510 = vmatpush2.msra.mxu0 0.0
  %1511 = vmatprep.subr.mxu0 0.0
  %1512 = vmatpush2.msra.mxu0 0.0
  %1513 = vmatprep.subr.mxu0 0.0
  %1514 = vmatpush2.msra.mxu0 0.0
  %1515 = vmatprep.mubr.f32.mxu0 0.0
  %1516 = vmatmul.mubr.f32.gmra.mxu0 %v1379
  %v1517 = vpop.f32.mrf.mxu0
  %v1518 = vadd.f32 0.0, %v1517
  %v1519 = vpop.f32.mrf.mxu0
  %1520 = vdwg.mxu0
  %v1521 = vmul.f32 %v1518, 0.001953125
  %v1522 = vmul.f32 %v1450, %v1450
  %v1523 = vsub.f32 %v1521, %v1522
  %v1524 = vld [vmem:[%s9] sm:$0x1]
  %v1525 = vadd.f32 %v1523, 1e-05
  %v1526 = vrsqrt.pop %v1525
  %v1527 = vmul.f32 %v1524, %v1526
  %v1528 = vld [vmem:[%s10] sm:$0x1]
  %v1529 = vmul.f32 %v1450, %v1527
  %v1530 = vsub.f32 %v1528, %v1529
  %v1532 = vlaneseq
  %v1533 = vshrl.u32 %v1532, 7
  %v1534 = vsub.s32 0, %v1533
  %v1535 = vrot.slane %v1527, %v1534
  %v1537 = vmul.f32 %v1354, %v1535
  %v1538 = vmul.f32 %v1355, %v1535
  %v1539 = vmul.f32 %v1356, %v1535
  %v1540 = vmul.f32 %v1357, %v1535
  %v1542 = vlaneseq
  %v1543 = vshrl.u32 %v1542, 7
  %v1544 = vsub.s32 0, %v1543
  %v1545 = vrot.slane %v1530, %v1544
  %v1547 = vadd.f32 %v1537, %v1545
  %v1548 = vadd.f32 %v1538, %v1545
  %v1549 = vadd.f32 %v1539, %v1545
  %v1550 = vadd.f32 %v1540, %v1545
  %v1551 = vpack.c.bf16 %v1548, %v1547
  %v1552 = vpack.c.bf16 %v1550, %v1549
  %1553 = vmatprep.subr.bf16.mxu0 0
  %1554 = vmatpush1.bf16.msra.mxu0 0
  %1555 = vmatprep.subr.bf16.mxu0 0
  %1556 = vmatpush1.bf16.msra.mxu0 0
  %1557 = vmatprep.subr.bf16.mxu0 0
  %1558 = vmatpush1.bf16.msra.mxu0 0
  %1559 = vmatprep.subr.bf16.mxu0 0
  %1560 = vmatpush1.bf16.msra.mxu0 0
  %1561 = vmatprep.subr.bf16.mxu0 0
  %1562 = vmatpush1.bf16.msra.mxu0 0
  %1563 = vmatprep.subr.bf16.mxu0 0
  %1564 = vmatpush1.bf16.msra.mxu0 0
  %1565 = vmatprep.subr.bf16.mxu0 0
  %1566 = vmatpush1.bf16.msra.mxu0 %v1552
  %1567 = vmatprep.subr.bf16.mxu0 0
  %1568 = vmatpush1.bf16.msra.mxu0 %v1551
  %1569 = vmatprep.subr.bf16.mxu0 0
  %1570 = vmatpush2.bf16.msra.mxu0 0
  %1571 = vmatprep.subr.bf16.mxu0 0
  %1572 = vmatpush2.bf16.msra.mxu0 0
  %1573 = vmatprep.subr.bf16.mxu0 0
  %1574 = vmatpush2.bf16.msra.mxu0 0
  %1575 = vmatprep.subr.bf16.mxu0 0
  %1576 = vmatpush2.bf16.msra.mxu0 0
  %1577 = vmatprep.subr.bf16.mxu0 0
  %1578 = vmatpush2.bf16.msra.mxu0 0
  %1579 = vmatprep.subr.bf16.mxu0 0
  %1580 = vmatpush2.bf16.msra.mxu0 0
  %1581 = vmatprep.subr.bf16.mxu0 0
  %1582 = vmatpush2.bf16.msra.mxu0 0
  %1583 = vmatprep.subr.bf16.mxu0 0
  %1584 = vmatpush2.bf16.msra.mxu0 0
  %1585 = vmatprep.mubr.bf16.mxu0 0
  %1586 = vmatmul.mubr.bf16.gmra.mxu0 %v318
  %v1587 = vpop.f32.mrf.mxu0
  %v1588 = vadd.f32 0.0, %v1587
  %v1589 = vpop.f32.mrf.mxu0
  %v1590 = vpop.f32.mrf.mxu0
  %v1591 = vadd.f32 0.0, %v1590
  %v1592 = vpop.f32.mrf.mxu0
  %1593 = vmatprep.mubr.bf16.mxu0 0
  %1594 = vmatmul.mubr.bf16.gmra.mxu0 %v321
  %v1595 = vpop.f32.mrf.mxu0
  %v1596 = vadd.f32 0.0, %v1595
  %v1597 = vpop.f32.mrf.mxu0
  %v1598 = vpop.f32.mrf.mxu0
  %v1599 = vadd.f32 0.0, %v1598
  %v1600 = vpop.f32.mrf.mxu0
  %1601 = vdwg.mxu0
  %v1602 = vpack.c.bf16 %v1591, %v1588
  %v1603 = vpack.c.bf16 %v1599, %v1596
  %1604 = vmatprep.subr.bf16.mxu0 0
  %1605 = vmatpush1.bf16.msra.mxu0 0
  %1606 = vmatprep.subr.bf16.mxu0 0
  %1607 = vmatpush1.bf16.msra.mxu0 0
  %1608 = vmatprep.subr.bf16.mxu0 0
  %1609 = vmatpush1.bf16.msra.mxu0 0
  %1610 = vmatprep.subr.bf16.mxu0 0
  %1611 = vmatpush1.bf16.msra.mxu0 0
  %1612 = vmatprep.subr.bf16.mxu0 0
  %1613 = vmatpush1.bf16.msra.mxu0 0
  %1614 = vmatprep.subr.bf16.mxu0 0
  %1615 = vmatpush1.bf16.msra.mxu0 0
  %1616 = vmatprep.subr.bf16.mxu0 0
  %1617 = vmatpush1.bf16.msra.mxu0 %v1552
  %1618 = vmatprep.subr.bf16.mxu0 0
  %1619 = vmatpush1.bf16.msra.mxu0 %v1551
  %1620 = vmatprep.subr.bf16.mxu0 0
  %1621 = vmatpush2.bf16.msra.mxu0 0
  %1622 = vmatprep.subr.bf16.mxu0 0
  %1623 = vmatpush2.bf16.msra.mxu0 0
  %1624 = vmatprep.subr.bf16.mxu0 0
  %1625 = vmatpush2.bf16.msra.mxu0 0
  %1626 = vmatprep.subr.bf16.mxu0 0
  %1627 = vmatpush2.bf16.msra.mxu0 0
  %1628 = vmatprep.subr.bf16.mxu0 0
  %1629 = vmatpush2.bf16.msra.mxu0 0
  %1630 = vmatprep.subr.bf16.mxu0 0
  %1631 = vmatpush2.bf16.msra.mxu0 0
  %1632 = vmatprep.subr.bf16.mxu0 0
  %1633 = vmatpush2.bf16.msra.mxu0 0
  %1634 = vmatprep.subr.bf16.mxu0 0
  %1635 = vmatpush2.bf16.msra.mxu0 0
  %1636 = vmatprep.mubr.bf16.mxu0 0
  %1637 = vmatmul.mubr.bf16.gmra.mxu0 %v385
  %v1638 = vpop.f32.mrf.mxu0
  %v1639 = vadd.f32 0.0, %v1638
  %v1640 = vpop.f32.mrf.mxu0
  %v1641 = vpop.f32.mrf.mxu0
  %v1642 = vadd.f32 0.0, %v1641
  %v1643 = vpop.f32.mrf.mxu0
  %1644 = vmatprep.mubr.bf16.mxu0 0
  %1645 = vmatmul.mubr.bf16.gmra.mxu0 %v388
  %v1646 = vpop.f32.mrf.mxu0
  %v1647 = vadd.f32 0.0, %v1646
  %v1648 = vpop.f32.mrf.mxu0
  %v1649 = vpop.f32.mrf.mxu0
  %v1650 = vadd.f32 0.0, %v1649
  %v1651 = vpop.f32.mrf.mxu0
  %1652 = vdwg.mxu0
  %v1653 = vpack.c.bf16 %v1642, %v1639
  %v1654 = vpack.c.bf16 %v1650, %v1647
  %v1655 = vld [vmem:[%s15] sm:$0xf]
  %v1656 = vld [vmem:[%s15 + $0x4] sm:$0xf]
  %v1657 = vld [vmem:[%s15 + $0x8] sm:$0xf]
  %v1658 = vld [vmem:[%s15 + $0xc] sm:$0xf]
  %v1659 = vld [vmem:[%s15 + $0x10] sm:$0xf]
  %v1660 = vld [vmem:[%s15 + $0x14] sm:$0xf]
  %v1661 = vld [vmem:[%s15 + $0x18] sm:$0xf]
  %v1662 = vld [vmem:[%s15 + $0x1c] sm:$0xf]
  %v1663 = vld [vmem:[%s15 + $0x20] sm:$0xf]
  %v1664 = vld [vmem:[%s15 + $0x24] sm:$0xf]
  %v1665 = vld [vmem:[%s15 + $0x28] sm:$0xf]
  %v1666 = vld [vmem:[%s15 + $0x2c] sm:$0xf]
  %v1667 = vld [vmem:[%s15 + $0x30] sm:$0xf]
  %v1668 = vld [vmem:[%s15 + $0x34] sm:$0xf]
  %v1669 = vld [vmem:[%s15 + $0x38] sm:$0xf]
  %v1670 = vld [vmem:[%s15 + $0x3c] sm:$0xf]
  %s1671 = scalar_lea.vmem %s15, 64
  %v1672 = vld [vmem:[%s1671] sm:$0xf]
  %v1673 = vld [vmem:[%s1671 + $0x4] sm:$0xf]
  %v1674 = vld [vmem:[%s1671 + $0x8] sm:$0xf]
  %v1675 = vld [vmem:[%s1671 + $0xc] sm:$0xf]
  %v1676 = vld [vmem:[%s1671 + $0x10] sm:$0xf]
  %v1677 = vld [vmem:[%s1671 + $0x14] sm:$0xf]
  %v1678 = vld [vmem:[%s1671 + $0x18] sm:$0xf]
  %v1679 = vld [vmem:[%s1671 + $0x1c] sm:$0xf]
  %v1680 = vld [vmem:[%s1671 + $0x20] sm:$0xf]
  %v1681 = vld [vmem:[%s1671 + $0x24] sm:$0xf]
  %v1682 = vld [vmem:[%s1671 + $0x28] sm:$0xf]
  %v1683 = vld [vmem:[%s1671 + $0x2c] sm:$0xf]
  %v1684 = vld [vmem:[%s1671 + $0x30] sm:$0xf]
  %v1685 = vld [vmem:[%s1671 + $0x34] sm:$0xf]
  %v1686 = vld [vmem:[%s1671 + $0x38] sm:$0xf]
  %v1687 = vld [vmem:[%s1671 + $0x3c] sm:$0xf]
  %v1704 = vunpack.c.l.b16 %v1672
  %v1705 = vunpack.c.l.b16 %v1673
  %v1706 = vunpack.c.l.b16 %v1674
  %v1707 = vunpack.c.l.b16 %v1675
  %v1708 = vunpack.c.l.b16 %v1676
  %v1709 = vunpack.c.l.b16 %v1677
  %v1710 = vunpack.c.l.b16 %v1678
  %v1711 = vunpack.c.l.b16 %v1679
  %v1712 = vunpack.c.l.b16 %v1680
  %v1713 = vunpack.c.l.b16 %v1681
  %v1714 = vunpack.c.l.b16 %v1682
  %v1715 = vunpack.c.l.b16 %v1683
  %v1716 = vunpack.c.l.b16 %v1684
  %v1717 = vunpack.c.l.b16 %v1685
  %v1718 = vunpack.c.l.b16 %v1686
  %v1719 = vunpack.c.l.b16 %v1687
  %v1720 = vpack.c.b16 %v1705, %v1704
  %v1721 = vpack.c.b16 %v1707, %v1706
  %v1722 = vpack.c.b16 %v1709, %v1708
  %v1723 = vpack.c.b16 %v1711, %v1710
  %v1724 = vpack.c.b16 %v1713, %v1712
  %v1725 = vpack.c.b16 %v1715, %v1714
  %v1726 = vpack.c.b16 %v1717, %v1716
  %v1727 = vpack.c.b16 %v1719, %v1718
  %1736 = vmatprep.subr.bf16.mxu0 0
  %1737 = vmatpush1.bf16.msra.mxu0 %v1727
  %1738 = vmatprep.subr.bf16.mxu0 0
  %1739 = vmatpush1.bf16.msra.mxu0 %v1726
  %1740 = vmatprep.subr.bf16.mxu0 0
  %1741 = vmatpush1.bf16.msra.mxu0 %v1725
  %1742 = vmatprep.subr.bf16.mxu0 0
  %1743 = vmatpush1.bf16.msra.mxu0 %v1724
  %1744 = vmatprep.subr.bf16.mxu0 0
  %1745 = vmatpush1.bf16.msra.mxu0 %v1723
  %1746 = vmatprep.subr.bf16.mxu0 0
  %1747 = vmatpush1.bf16.msra.mxu0 %v1722
  %1748 = vmatprep.subr.bf16.mxu0 0
  %1749 = vmatpush1.bf16.msra.mxu0 %v1721
  %1750 = vmatprep.subr.bf16.mxu0 0
  %1751 = vmatpush1.bf16.msra.mxu0 %v1720
  %1752 = vmatprep.subr.bf16.mxu0 0
  %1753 = vmatpush2.bf16.msra.mxu0 0
  %1754 = vmatprep.subr.bf16.mxu0 0
  %1755 = vmatpush2.bf16.msra.mxu0 0
  %1756 = vmatprep.subr.bf16.mxu0 0
  %1757 = vmatpush2.bf16.msra.mxu0 0
  %1758 = vmatprep.subr.bf16.mxu0 0
  %1759 = vmatpush2.bf16.msra.mxu0 0
  %1760 = vmatprep.subr.bf16.mxu0 0
  %1761 = vmatpush2.bf16.msra.mxu0 0
  %1762 = vmatprep.subr.bf16.mxu0 0
  %1763 = vmatpush2.bf16.msra.mxu0 0
  %1764 = vmatprep.subr.bf16.mxu0 0
  %1765 = vmatpush2.bf16.msra.mxu0 0
  %1766 = vmatprep.subr.bf16.mxu0 0
  %1767 = vmatpush2.bf16.msra.mxu0 0
  %1768 = vmatprep.mubr.bf16.mxu0 0
  %1769 = vmatmul.mubr.bf16.gmra.mxu0 %v1551
  %v1770 = vpop.f32.mrf.mxu0
  %v1771 = vadd.f32 0.0, %v1770
  %v1772 = vpop.f32.mrf.mxu0
  %v1773 = vpop.f32.mrf.mxu0
  %v1774 = vadd.f32 0.0, %v1773
  %v1775 = vpop.f32.mrf.mxu0
  %1776 = vmatprep.mubr.bf16.mxu0 0
  %1777 = vmatmul.mubr.bf16.gmra.mxu0 %v1552
  %v1778 = vpop.f32.mrf.mxu0
  %v1779 = vadd.f32 0.0, %v1778
  %v1780 = vpop.f32.mrf.mxu0
  %v1781 = vpop.f32.mrf.mxu0
  %v1782 = vadd.f32 0.0, %v1781
  %v1783 = vpop.f32.mrf.mxu0
  %1784 = vdwg.mxu0
  %v1801 = vunpack.c.l.b16 %v1655
  %v1802 = vunpack.c.l.b16 %v1656
  %v1803 = vunpack.c.l.b16 %v1657
  %v1804 = vunpack.c.l.b16 %v1658
  %v1805 = vunpack.c.l.b16 %v1659
  %v1806 = vunpack.c.l.b16 %v1660
  %v1807 = vunpack.c.l.b16 %v1661
  %v1808 = vunpack.c.l.b16 %v1662
  %v1809 = vunpack.c.l.b16 %v1663
  %v1810 = vunpack.c.l.b16 %v1664
  %v1811 = vunpack.c.l.b16 %v1665
  %v1812 = vunpack.c.l.b16 %v1666
  %v1813 = vunpack.c.l.b16 %v1667
  %v1814 = vunpack.c.l.b16 %v1668
  %v1815 = vunpack.c.l.b16 %v1669
  %v1816 = vunpack.c.l.b16 %v1670
  %v1817 = vpack.c.b16 %v1802, %v1801
  %v1818 = vpack.c.b16 %v1804, %v1803
  %v1819 = vpack.c.b16 %v1806, %v1805
  %v1820 = vpack.c.b16 %v1808, %v1807
  %v1821 = vpack.c.b16 %v1810, %v1809
  %v1822 = vpack.c.b16 %v1812, %v1811
  %v1823 = vpack.c.b16 %v1814, %v1813
  %v1824 = vpack.c.b16 %v1816, %v1815
  %1833 = vmatprep.subr.bf16.mxu0 0
  %1834 = vmatpush1.bf16.msra.mxu0 %v1824
  %1835 = vmatprep.subr.bf16.mxu0 0
  %1836 = vmatpush1.bf16.msra.mxu0 %v1823
  %1837 = vmatprep.subr.bf16.mxu0 0
  %1838 = vmatpush1.bf16.msra.mxu0 %v1822
  %1839 = vmatprep.subr.bf16.mxu0 0
  %1840 = vmatpush1.bf16.msra.mxu0 %v1821
  %1841 = vmatprep.subr.bf16.mxu0 0
  %1842 = vmatpush1.bf16.msra.mxu0 %v1820
  %1843 = vmatprep.subr.bf16.mxu0 0
  %1844 = vmatpush1.bf16.msra.mxu0 %v1819
  %1845 = vmatprep.subr.bf16.mxu0 0
  %1846 = vmatpush1.bf16.msra.mxu0 %v1818
  %1847 = vmatprep.subr.bf16.mxu0 0
  %1848 = vmatpush1.bf16.msra.mxu0 %v1817
  %1849 = vmatprep.subr.bf16.mxu0 0
  %1850 = vmatpush2.bf16.msra.mxu0 0
  %1851 = vmatprep.subr.bf16.mxu0 0
  %1852 = vmatpush2.bf16.msra.mxu0 0
  %1853 = vmatprep.subr.bf16.mxu0 0
  %1854 = vmatpush2.bf16.msra.mxu0 0
  %1855 = vmatprep.subr.bf16.mxu0 0
  %1856 = vmatpush2.bf16.msra.mxu0 0
  %1857 = vmatprep.subr.bf16.mxu0 0
  %1858 = vmatpush2.bf16.msra.mxu0 0
  %1859 = vmatprep.subr.bf16.mxu0 0
  %1860 = vmatpush2.bf16.msra.mxu0 0
  %1861 = vmatprep.subr.bf16.mxu0 0
  %1862 = vmatpush2.bf16.msra.mxu0 0
  %1863 = vmatprep.subr.bf16.mxu0 0
  %1864 = vmatpush2.bf16.msra.mxu0 0
  %1865 = vmatprep.mubr.bf16.mxu0 0
  %1866 = vmatmul.mubr.bf16.gmra.mxu0 %v1602
  %v1867 = vpop.f32.mrf.mxu0
  %v1868 = vadd.f32 %v1771, %v1867
  %v1869 = vpop.f32.mrf.mxu0
  %v1870 = vpop.f32.mrf.mxu0
  %v1871 = vadd.f32 %v1774, %v1870
  %v1872 = vpop.f32.mrf.mxu0
  %1873 = vmatprep.mubr.bf16.mxu0 0
  %1874 = vmatmul.mubr.bf16.gmra.mxu0 %v1603
  %v1875 = vpop.f32.mrf.mxu0
  %v1876 = vadd.f32 %v1779, %v1875
  %v1877 = vpop.f32.mrf.mxu0
  %v1878 = vpop.f32.mrf.mxu0
  %v1879 = vadd.f32 %v1782, %v1878
  %v1880 = vpop.f32.mrf.mxu0
  %1881 = vdwg.mxu0
  %s1882 = scalar_lea.vmem %s15, 128
  %v1883 = vld [vmem:[%s1882] sm:$0xf]
  %v1884 = vld [vmem:[%s1882 + $0x4] sm:$0xf]
  %v1885 = vld [vmem:[%s1882 + $0x8] sm:$0xf]
  %v1886 = vld [vmem:[%s1882 + $0xc] sm:$0xf]
  %v1887 = vld [vmem:[%s1882 + $0x10] sm:$0xf]
  %v1888 = vld [vmem:[%s1882 + $0x14] sm:$0xf]
  %v1889 = vld [vmem:[%s1882 + $0x18] sm:$0xf]
  %v1890 = vld [vmem:[%s1882 + $0x1c] sm:$0xf]
  %v1891 = vld [vmem:[%s1882 + $0x20] sm:$0xf]
  %v1892 = vld [vmem:[%s1882 + $0x24] sm:$0xf]
  %v1893 = vld [vmem:[%s1882 + $0x28] sm:$0xf]
  %v1894 = vld [vmem:[%s1882 + $0x2c] sm:$0xf]
  %v1895 = vld [vmem:[%s1882 + $0x30] sm:$0xf]
  %v1896 = vld [vmem:[%s1882 + $0x34] sm:$0xf]
  %v1897 = vld [vmem:[%s1882 + $0x38] sm:$0xf]
  %v1898 = vld [vmem:[%s1882 + $0x3c] sm:$0xf]
  %v1915 = vunpack.c.l.b16 %v1883
  %v1916 = vunpack.c.l.b16 %v1884
  %v1917 = vunpack.c.l.b16 %v1885
  %v1918 = vunpack.c.l.b16 %v1886
  %v1919 = vunpack.c.l.b16 %v1887
  %v1920 = vunpack.c.l.b16 %v1888
  %v1921 = vunpack.c.l.b16 %v1889
  %v1922 = vunpack.c.l.b16 %v1890
  %v1923 = vunpack.c.l.b16 %v1891
  %v1924 = vunpack.c.l.b16 %v1892
  %v1925 = vunpack.c.l.b16 %v1893
  %v1926 = vunpack.c.l.b16 %v1894
  %v1927 = vunpack.c.l.b16 %v1895
  %v1928 = vunpack.c.l.b16 %v1896
  %v1929 = vunpack.c.l.b16 %v1897
  %v1930 = vunpack.c.l.b16 %v1898
  %v1931 = vpack.c.b16 %v1916, %v1915
  %v1932 = vpack.c.b16 %v1918, %v1917
  %v1933 = vpack.c.b16 %v1920, %v1919
  %v1934 = vpack.c.b16 %v1922, %v1921
  %v1935 = vpack.c.b16 %v1924, %v1923
  %v1936 = vpack.c.b16 %v1926, %v1925
  %v1937 = vpack.c.b16 %v1928, %v1927
  %v1938 = vpack.c.b16 %v1930, %v1929
  %1947 = vmatprep.subr.bf16.mxu0 0
  %1948 = vmatpush1.bf16.msra.mxu0 %v1938
  %1949 = vmatprep.subr.bf16.mxu0 0
  %1950 = vmatpush1.bf16.msra.mxu0 %v1937
  %1951 = vmatprep.subr.bf16.mxu0 0
  %1952 = vmatpush1.bf16.msra.mxu0 %v1936
  %1953 = vmatprep.subr.bf16.mxu0 0
  %1954 = vmatpush1.bf16.msra.mxu0 %v1935
  %1955 = vmatprep.subr.bf16.mxu0 0
  %1956 = vmatpush1.bf16.msra.mxu0 %v1934
  %1957 = vmatprep.subr.bf16.mxu0 0
  %1958 = vmatpush1.bf16.msra.mxu0 %v1933
  %1959 = vmatprep.subr.bf16.mxu0 0
  %1960 = vmatpush1.bf16.msra.mxu0 %v1932
  %1961 = vmatprep.subr.bf16.mxu0 0
  %1962 = vmatpush1.bf16.msra.mxu0 %v1931
  %1963 = vmatprep.subr.bf16.mxu0 0
  %1964 = vmatpush2.bf16.msra.mxu0 0
  %1965 = vmatprep.subr.bf16.mxu0 0
  %1966 = vmatpush2.bf16.msra.mxu0 0
  %1967 = vmatprep.subr.bf16.mxu0 0
  %1968 = vmatpush2.bf16.msra.mxu0 0
  %1969 = vmatprep.subr.bf16.mxu0 0
  %1970 = vmatpush2.bf16.msra.mxu0 0
  %1971 = vmatprep.subr.bf16.mxu0 0
  %1972 = vmatpush2.bf16.msra.mxu0 0
  %1973 = vmatprep.subr.bf16.mxu0 0
  %1974 = vmatpush2.bf16.msra.mxu0 0
  %1975 = vmatprep.subr.bf16.mxu0 0
  %1976 = vmatpush2.bf16.msra.mxu0 0
  %1977 = vmatprep.subr.bf16.mxu0 0
  %1978 = vmatpush2.bf16.msra.mxu0 0
  %1979 = vmatprep.mubr.bf16.mxu0 0
  %1980 = vmatmul.mubr.bf16.gmra.mxu0 %v1653
  %v1981 = vpop.f32.mrf.mxu0
  %v1982 = vadd.f32 0.0, %v1981
  %v1983 = vpop.f32.mrf.mxu0
  %v1984 = vpop.f32.mrf.mxu0
  %v1985 = vadd.f32 0.0, %v1984
  %v1986 = vpop.f32.mrf.mxu0
  %1987 = vmatprep.mubr.bf16.mxu0 0
  %1988 = vmatmul.mubr.bf16.gmra.mxu0 %v1654
  %v1989 = vpop.f32.mrf.mxu0
  %v1990 = vadd.f32 0.0, %v1989
  %v1991 = vpop.f32.mrf.mxu0
  %v1992 = vpop.f32.mrf.mxu0
  %v1993 = vadd.f32 0.0, %v1992
  %v1994 = vpop.f32.mrf.mxu0
  %1995 = vdwg.mxu0
  %v1996 = vadd.f32 %v1868, %v1982
  %v1997 = vadd.f32 %v1871, %v1985
  %v1998 = vadd.f32 %v1876, %v1990
  %v1999 = vadd.f32 %v1879, %v1993
  %v2000 = vmax.f32 %v1996, 0.0
  %v2001 = vmax.f32 %v1997, 0.0
  %v2002 = vmax.f32 %v1998, 0.0
  %v2003 = vmax.f32 %v1999, 0.0
  %v2004 = vadd.f32 %v2000, %v2001
  %v2005 = vadd.f32 %v2004, %v2002
  %v2006 = vadd.f32 %v2005, %v2003
  %v2007 = vrot.slane %v2006, 4
  %v2008 = vadd.f32 %v2006, %v2007
  %v2009 = vrot.slane %v2008, 2
  %v2010 = vadd.f32 %v2008, %v2009
  %v2011 = vrot.slane %v2010, 1
  %v2012 = vadd.f32 %v2010, %v2011
  %v2013 = vmul.f32 %v2000, %v2000
  %v2014 = vmul.f32 %v2001, %v2001
  %v2015 = vmul.f32 %v2002, %v2002
  %v2016 = vmul.f32 %v2003, %v2003
  %v2017 = vadd.f32 %v2013, %v2014
  %v2018 = vadd.f32 %v2017, %v2015
  %v2019 = vadd.f32 %v2018, %v2016
  %v2020 = vrot.slane %v2019, 4
  %v2021 = vadd.f32 %v2019, %v2020
  %v2022 = vrot.slane %v2021, 2
  %v2023 = vadd.f32 %v2021, %v2022
  %v2024 = vrot.slane %v2023, 1
  %v2025 = vadd.f32 %v2023, %v2024
  %2026 = vmatprep.subr.mxu0 0.0
  %2027 = vmatpush1.msra.mxu0 %v91
  %2028 = vmatprep.subr.mxu0 0.0
  %2029 = vmatpush1.msra.mxu0 %v90
  %2030 = vmatprep.subr.mxu0 0.0
  %2031 = vmatpush1.msra.mxu0 %v89
  %2032 = vmatprep.subr.mxu0 0.0
  %2033 = vmatpush1.msra.mxu0 %v88
  %2034 = vmatprep.subr.mxu0 0.0
  %2035 = vmatpush1.msra.mxu0 %v87
  %2036 = vmatprep.subr.mxu0 0.0
  %2037 = vmatpush1.msra.mxu0 %v86
  %2038 = vmatprep.subr.mxu0 0.0
  %2039 = vmatpush1.msra.mxu0 %v85
  %2040 = vmatprep.subr.mxu0 0.0
  %2041 = vmatpush1.msra.mxu0 %v84
  %2042 = vmatprep.subr.mxu0 0.0
  %2043 = vmatpush1.msra.mxu0 %v83
  %2044 = vmatprep.subr.mxu0 0.0
  %2045 = vmatpush1.msra.mxu0 %v82
  %2046 = vmatprep.subr.mxu0 0.0
  %2047 = vmatpush1.msra.mxu0 %v81
  %2048 = vmatprep.subr.mxu0 0.0
  %2049 = vmatpush1.msra.mxu0 %v80
  %2050 = vmatprep.subr.mxu0 0.0
  %2051 = vmatpush1.msra.mxu0 %v79
  %2052 = vmatprep.subr.mxu0 0.0
  %2053 = vmatpush1.msra.mxu0 %v78
  %2054 = vmatprep.subr.mxu0 0.0
  %2055 = vmatpush1.msra.mxu0 %v77
  %2056 = vmatprep.subr.mxu0 0.0
  %2057 = vmatpush1.msra.mxu0 %v76
  %2058 = vmatprep.subr.mxu0 0.0
  %2059 = vmatpush2.msra.mxu0 0.0
  %2060 = vmatprep.subr.mxu0 0.0
  %2061 = vmatpush2.msra.mxu0 0.0
  %2062 = vmatprep.subr.mxu0 0.0
  %2063 = vmatpush2.msra.mxu0 0.0
  %2064 = vmatprep.subr.mxu0 0.0
  %2065 = vmatpush2.msra.mxu0 0.0
  %2066 = vmatprep.subr.mxu0 0.0
  %2067 = vmatpush2.msra.mxu0 0.0
  %2068 = vmatprep.subr.mxu0 0.0
  %2069 = vmatpush2.msra.mxu0 0.0
  %2070 = vmatprep.subr.mxu0 0.0
  %2071 = vmatpush2.msra.mxu0 0.0
  %2072 = vmatprep.subr.mxu0 0.0
  %2073 = vmatpush2.msra.mxu0 0.0
  %2074 = vmatprep.subr.mxu0 0.0
  %2075 = vmatpush2.msra.mxu0 0.0
  %2076 = vmatprep.subr.mxu0 0.0
  %2077 = vmatpush2.msra.mxu0 0.0
  %2078 = vmatprep.subr.mxu0 0.0
  %2079 = vmatpush2.msra.mxu0 0.0
  %2080 = vmatprep.subr.mxu0 0.0
  %2081 = vmatpush2.msra.mxu0 0.0
  %2082 = vmatprep.subr.mxu0 0.0
  %2083 = vmatpush2.msra.mxu0 0.0
  %2084 = vmatprep.subr.mxu0 0.0
  %2085 = vmatpush2.msra.mxu0 0.0
  %2086 = vmatprep.subr.mxu0 0.0
  %2087 = vmatpush2.msra.mxu0 0.0
  %2088 = vmatprep.subr.mxu0 0.0
  %2089 = vmatpush2.msra.mxu0 0.0
  %2090 = vmatprep.mubr.f32.mxu0 0.0
  %2091 = vmatmul.mubr.f32.gmra.mxu0 %v2012
  %v2092 = vpop.f32.mrf.mxu0
  %v2093 = vadd.f32 0.0, %v2092
  %v2094 = vpop.f32.mrf.mxu0
  %2095 = vdwg.mxu0
  %v2096 = vmul.f32 %v2093, 0.001953125
  %2097 = vmatprep.subr.mxu0 0.0
  %2098 = vmatpush1.msra.mxu0 %v91
  %2099 = vmatprep.subr.mxu0 0.0
  %2100 = vmatpush1.msra.mxu0 %v90
  %2101 = vmatprep.subr.mxu0 0.0
  %2102 = vmatpush1.msra.mxu0 %v89
  %2103 = vmatprep.subr.mxu0 0.0
  %2104 = vmatpush1.msra.mxu0 %v88
  %2105 = vmatprep.subr.mxu0 0.0
  %2106 = vmatpush1.msra.mxu0 %v87
  %2107 = vmatprep.subr.mxu0 0.0
  %2108 = vmatpush1.msra.mxu0 %v86
  %2109 = vmatprep.subr.mxu0 0.0
  %2110 = vmatpush1.msra.mxu0 %v85
  %2111 = vmatprep.subr.mxu0 0.0
  %2112 = vmatpush1.msra.mxu0 %v84
  %2113 = vmatprep.subr.mxu0 0.0
  %2114 = vmatpush1.msra.mxu0 %v83
  %2115 = vmatprep.subr.mxu0 0.0
  %2116 = vmatpush1.msra.mxu0 %v82
  %2117 = vmatprep.subr.mxu0 0.0
  %2118 = vmatpush1.msra.mxu0 %v81
  %2119 = vmatprep.subr.mxu0 0.0
  %2120 = vmatpush1.msra.mxu0 %v80
  %2121 = vmatprep.subr.mxu0 0.0
  %2122 = vmatpush1.msra.mxu0 %v79
  %2123 = vmatprep.subr.mxu0 0.0
  %2124 = vmatpush1.msra.mxu0 %v78
  %2125 = vmatprep.subr.mxu0 0.0
  %2126 = vmatpush1.msra.mxu0 %v77
  %2127 = vmatprep.subr.mxu0 0.0
  %2128 = vmatpush1.msra.mxu0 %v76
  %2129 = vmatprep.subr.mxu0 0.0
  %2130 = vmatpush2.msra.mxu0 0.0
  %2131 = vmatprep.subr.mxu0 0.0
  %2132 = vmatpush2.msra.mxu0 0.0
  %2133 = vmatprep.subr.mxu0 0.0
  %2134 = vmatpush2.msra.mxu0 0.0
  %2135 = vmatprep.subr.mxu0 0.0
  %2136 = vmatpush2.msra.mxu0 0.0
  %2137 = vmatprep.subr.mxu0 0.0
  %2138 = vmatpush2.msra.mxu0 0.0
  %2139 = vmatprep.subr.mxu0 0.0
  %2140 = vmatpush2.msra.mxu0 0.0
  %2141 = vmatprep.subr.mxu0 0.0
  %2142 = vmatpush2.msra.mxu0 0.0
  %2143 = vmatprep.subr.mxu0 0.0
  %2144 = vmatpush2.msra.mxu0 0.0
  %2145 = vmatprep.subr.mxu0 0.0
  %2146 = vmatpush2.msra.mxu0 0.0
  %2147 = vmatprep.subr.mxu0 0.0
  %2148 = vmatpush2.msra.mxu0 0.0
  %2149 = vmatprep.subr.mxu0 0.0
  %2150 = vmatpush2.msra.mxu0 0.0
  %2151 = vmatprep.subr.mxu0 0.0
  %2152 = vmatpush2.msra.mxu0 0.0
  %2153 = vmatprep.subr.mxu0 0.0
  %2154 = vmatpush2.msra.mxu0 0.0
  %2155 = vmatprep.subr.mxu0 0.0
  %2156 = vmatpush2.msra.mxu0 0.0
  %2157 = vmatprep.subr.mxu0 0.0
  %2158 = vmatpush2.msra.mxu0 0.0
  %2159 = vmatprep.subr.mxu0 0.0
  %2160 = vmatpush2.msra.mxu0 0.0
  %2161 = vmatprep.mubr.f32.mxu0 0.0
  %2162 = vmatmul.mubr.f32.gmra.mxu0 %v2025
  %v2163 = vpop.f32.mrf.mxu0
  %v2164 = vadd.f32 0.0, %v2163
  %v2165 = vpop.f32.mrf.mxu0
  %2166 = vdwg.mxu0
  %v2167 = vmul.f32 %v2164, 0.001953125
  %v2168 = vmul.f32 %v2096, %v2096
  %v2169 = vsub.f32 %v2167, %v2168
  %v2170 = vld [vmem:[%s11] sm:$0x1]
  %v2171 = vadd.f32 %v2169, 1e-05
  %v2172 = vrsqrt.pop %v2171
  %v2173 = vmul.f32 %v2170, %v2172
  %v2174 = vld [vmem:[%s12] sm:$0x1]
  %v2175 = vmul.f32 %v2096, %v2173
  %v2176 = vsub.f32 %v2174, %v2175
  %v2178 = vlaneseq
  %v2179 = vshrl.u32 %v2178, 7
  %v2180 = vsub.s32 0, %v2179
  %v2181 = vrot.slane %v2173, %v2180
  %v2183 = vmul.f32 %v2000, %v2181
  %v2184 = vmul.f32 %v2001, %v2181
  %v2185 = vmul.f32 %v2002, %v2181
  %v2186 = vmul.f32 %v2003, %v2181
  %v2188 = vlaneseq
  %v2189 = vshrl.u32 %v2188, 7
  %v2190 = vsub.s32 0, %v2189
  %v2191 = vrot.slane %v2176, %v2190
  %v2193 = vadd.f32 %v2183, %v2191
  %v2194 = vadd.f32 %v2184, %v2191
  %v2195 = vadd.f32 %v2185, %v2191
  %v2196 = vadd.f32 %v2186, %v2191
  %v2197 = vpack.c.bf16 %v2194, %v2193
  %v2198 = vpack.c.bf16 %v2196, %v2195
  %2199 = vmatprep.subr.bf16.mxu0 0
  %2200 = vmatpush1.bf16.msra.mxu0 0
  %2201 = vmatprep.subr.bf16.mxu0 0
  %2202 = vmatpush1.bf16.msra.mxu0 0
  %2203 = vmatprep.subr.bf16.mxu0 0
  %2204 = vmatpush1.bf16.msra.mxu0 0
  %2205 = vmatprep.subr.bf16.mxu0 0
  %2206 = vmatpush1.bf16.msra.mxu0 0
  %2207 = vmatprep.subr.bf16.mxu0 0
  %2208 = vmatpush1.bf16.msra.mxu0 0
  %2209 = vmatprep.subr.bf16.mxu0 0
  %2210 = vmatpush1.bf16.msra.mxu0 0
  %2211 = vmatprep.subr.bf16.mxu0 0
  %2212 = vmatpush1.bf16.msra.mxu0 %v2198
  %2213 = vmatprep.subr.bf16.mxu0 0
  %2214 = vmatpush1.bf16.msra.mxu0 %v2197
  %2215 = vmatprep.subr.bf16.mxu0 0
  %2216 = vmatpush2.bf16.msra.mxu0 0
  %2217 = vmatprep.subr.bf16.mxu0 0
  %2218 = vmatpush2.bf16.msra.mxu0 0
  %2219 = vmatprep.subr.bf16.mxu0 0
  %2220 = vmatpush2.bf16.msra.mxu0 0
  %2221 = vmatprep.subr.bf16.mxu0 0
  %2222 = vmatpush2.bf16.msra.mxu0 0
  %2223 = vmatprep.subr.bf16.mxu0 0
  %2224 = vmatpush2.bf16.msra.mxu0 0
  %2225 = vmatprep.subr.bf16.mxu0 0
  %2226 = vmatpush2.bf16.msra.mxu0 0
  %2227 = vmatprep.subr.bf16.mxu0 0
  %2228 = vmatpush2.bf16.msra.mxu0 0
  %2229 = vmatprep.subr.bf16.mxu0 0
  %2230 = vmatpush2.bf16.msra.mxu0 0
  %2231 = vmatprep.mubr.bf16.mxu0 0
  %2232 = vmatmul.mubr.bf16.gmra.mxu0 %v318
  %v2233 = vpop.f32.mrf.mxu0
  %v2234 = vadd.f32 0.0, %v2233
  %v2235 = vpop.f32.mrf.mxu0
  %v2236 = vpop.f32.mrf.mxu0
  %v2237 = vadd.f32 0.0, %v2236
  %v2238 = vpop.f32.mrf.mxu0
  %2239 = vmatprep.mubr.bf16.mxu0 0
  %2240 = vmatmul.mubr.bf16.gmra.mxu0 %v321
  %v2241 = vpop.f32.mrf.mxu0
  %v2242 = vadd.f32 0.0, %v2241
  %v2243 = vpop.f32.mrf.mxu0
  %v2244 = vpop.f32.mrf.mxu0
  %v2245 = vadd.f32 0.0, %v2244
  %v2246 = vpop.f32.mrf.mxu0
  %2247 = vdwg.mxu0
  %v2248 = vpack.c.bf16 %v2237, %v2234
  %v2249 = vpack.c.bf16 %v2245, %v2242
  %2250 = vmatprep.subr.bf16.mxu0 0
  %2251 = vmatpush1.bf16.msra.mxu0 0
  %2252 = vmatprep.subr.bf16.mxu0 0
  %2253 = vmatpush1.bf16.msra.mxu0 0
  %2254 = vmatprep.subr.bf16.mxu0 0
  %2255 = vmatpush1.bf16.msra.mxu0 0
  %2256 = vmatprep.subr.bf16.mxu0 0
  %2257 = vmatpush1.bf16.msra.mxu0 0
  %2258 = vmatprep.subr.bf16.mxu0 0
  %2259 = vmatpush1.bf16.msra.mxu0 0
  %2260 = vmatprep.subr.bf16.mxu0 0
  %2261 = vmatpush1.bf16.msra.mxu0 0
  %2262 = vmatprep.subr.bf16.mxu0 0
  %2263 = vmatpush1.bf16.msra.mxu0 %v2198
  %2264 = vmatprep.subr.bf16.mxu0 0
  %2265 = vmatpush1.bf16.msra.mxu0 %v2197
  %2266 = vmatprep.subr.bf16.mxu0 0
  %2267 = vmatpush2.bf16.msra.mxu0 0
  %2268 = vmatprep.subr.bf16.mxu0 0
  %2269 = vmatpush2.bf16.msra.mxu0 0
  %2270 = vmatprep.subr.bf16.mxu0 0
  %2271 = vmatpush2.bf16.msra.mxu0 0
  %2272 = vmatprep.subr.bf16.mxu0 0
  %2273 = vmatpush2.bf16.msra.mxu0 0
  %2274 = vmatprep.subr.bf16.mxu0 0
  %2275 = vmatpush2.bf16.msra.mxu0 0
  %2276 = vmatprep.subr.bf16.mxu0 0
  %2277 = vmatpush2.bf16.msra.mxu0 0
  %2278 = vmatprep.subr.bf16.mxu0 0
  %2279 = vmatpush2.bf16.msra.mxu0 0
  %2280 = vmatprep.subr.bf16.mxu0 0
  %2281 = vmatpush2.bf16.msra.mxu0 0
  %2282 = vmatprep.mubr.bf16.mxu0 0
  %2283 = vmatmul.mubr.bf16.gmra.mxu0 %v385
  %v2284 = vpop.f32.mrf.mxu0
  %v2285 = vadd.f32 0.0, %v2284
  %v2286 = vpop.f32.mrf.mxu0
  %v2287 = vpop.f32.mrf.mxu0
  %v2288 = vadd.f32 0.0, %v2287
  %v2289 = vpop.f32.mrf.mxu0
  %2290 = vmatprep.mubr.bf16.mxu0 0
  %2291 = vmatmul.mubr.bf16.gmra.mxu0 %v388
  %v2292 = vpop.f32.mrf.mxu0
  %v2293 = vadd.f32 0.0, %v2292
  %v2294 = vpop.f32.mrf.mxu0
  %v2295 = vpop.f32.mrf.mxu0
  %v2296 = vadd.f32 0.0, %v2295
  %v2297 = vpop.f32.mrf.mxu0
  %2298 = vdwg.mxu0
  %v2299 = vpack.c.bf16 %v2288, %v2285
  %v2300 = vpack.c.bf16 %v2296, %v2293
  %v2301 = vld [vmem:[%s16] sm:$0xf]
  %v2302 = vld [vmem:[%s16 + $0x4] sm:$0xf]
  %v2303 = vld [vmem:[%s16 + $0x8] sm:$0xf]
  %v2304 = vld [vmem:[%s16 + $0xc] sm:$0xf]
  %v2305 = vld [vmem:[%s16 + $0x10] sm:$0xf]
  %v2306 = vld [vmem:[%s16 + $0x14] sm:$0xf]
  %v2307 = vld [vmem:[%s16 + $0x18] sm:$0xf]
  %v2308 = vld [vmem:[%s16 + $0x1c] sm:$0xf]
  %v2309 = vld [vmem:[%s16 + $0x20] sm:$0xf]
  %v2310 = vld [vmem:[%s16 + $0x24] sm:$0xf]
  %v2311 = vld [vmem:[%s16 + $0x28] sm:$0xf]
  %v2312 = vld [vmem:[%s16 + $0x2c] sm:$0xf]
  %v2313 = vld [vmem:[%s16 + $0x30] sm:$0xf]
  %v2314 = vld [vmem:[%s16 + $0x34] sm:$0xf]
  %v2315 = vld [vmem:[%s16 + $0x38] sm:$0xf]
  %v2316 = vld [vmem:[%s16 + $0x3c] sm:$0xf]
  %s2317 = scalar_lea.vmem %s16, 64
  %v2318 = vld [vmem:[%s2317] sm:$0xf]
  %v2319 = vld [vmem:[%s2317 + $0x4] sm:$0xf]
  %v2320 = vld [vmem:[%s2317 + $0x8] sm:$0xf]
  %v2321 = vld [vmem:[%s2317 + $0xc] sm:$0xf]
  %v2322 = vld [vmem:[%s2317 + $0x10] sm:$0xf]
  %v2323 = vld [vmem:[%s2317 + $0x14] sm:$0xf]
  %v2324 = vld [vmem:[%s2317 + $0x18] sm:$0xf]
  %v2325 = vld [vmem:[%s2317 + $0x1c] sm:$0xf]
  %v2326 = vld [vmem:[%s2317 + $0x20] sm:$0xf]
  %v2327 = vld [vmem:[%s2317 + $0x24] sm:$0xf]
  %v2328 = vld [vmem:[%s2317 + $0x28] sm:$0xf]
  %v2329 = vld [vmem:[%s2317 + $0x2c] sm:$0xf]
  %v2330 = vld [vmem:[%s2317 + $0x30] sm:$0xf]
  %v2331 = vld [vmem:[%s2317 + $0x34] sm:$0xf]
  %v2332 = vld [vmem:[%s2317 + $0x38] sm:$0xf]
  %v2333 = vld [vmem:[%s2317 + $0x3c] sm:$0xf]
  %v2350 = vunpack.c.l.b16 %v2318
  %v2351 = vunpack.c.l.b16 %v2319
  %v2352 = vunpack.c.l.b16 %v2320
  %v2353 = vunpack.c.l.b16 %v2321
  %v2354 = vunpack.c.l.b16 %v2322
  %v2355 = vunpack.c.l.b16 %v2323
  %v2356 = vunpack.c.l.b16 %v2324
  %v2357 = vunpack.c.l.b16 %v2325
  %v2358 = vunpack.c.l.b16 %v2326
  %v2359 = vunpack.c.l.b16 %v2327
  %v2360 = vunpack.c.l.b16 %v2328
  %v2361 = vunpack.c.l.b16 %v2329
  %v2362 = vunpack.c.l.b16 %v2330
  %v2363 = vunpack.c.l.b16 %v2331
  %v2364 = vunpack.c.l.b16 %v2332
  %v2365 = vunpack.c.l.b16 %v2333
  %v2366 = vpack.c.b16 %v2351, %v2350
  %v2367 = vpack.c.b16 %v2353, %v2352
  %v2368 = vpack.c.b16 %v2355, %v2354
  %v2369 = vpack.c.b16 %v2357, %v2356
  %v2370 = vpack.c.b16 %v2359, %v2358
  %v2371 = vpack.c.b16 %v2361, %v2360
  %v2372 = vpack.c.b16 %v2363, %v2362
  %v2373 = vpack.c.b16 %v2365, %v2364
  %2382 = vmatprep.subr.bf16.mxu0 0
  %2383 = vmatpush1.bf16.msra.mxu0 %v2373
  %2384 = vmatprep.subr.bf16.mxu0 0
  %2385 = vmatpush1.bf16.msra.mxu0 %v2372
  %2386 = vmatprep.subr.bf16.mxu0 0
  %2387 = vmatpush1.bf16.msra.mxu0 %v2371
  %2388 = vmatprep.subr.bf16.mxu0 0
  %2389 = vmatpush1.bf16.msra.mxu0 %v2370
  %2390 = vmatprep.subr.bf16.mxu0 0
  %2391 = vmatpush1.bf16.msra.mxu0 %v2369
  %2392 = vmatprep.subr.bf16.mxu0 0
  %2393 = vmatpush1.bf16.msra.mxu0 %v2368
  %2394 = vmatprep.subr.bf16.mxu0 0
  %2395 = vmatpush1.bf16.msra.mxu0 %v2367
  %2396 = vmatprep.subr.bf16.mxu0 0
  %2397 = vmatpush1.bf16.msra.mxu0 %v2366
  %2398 = vmatprep.subr.bf16.mxu0 0
  %2399 = vmatpush2.bf16.msra.mxu0 0
  %2400 = vmatprep.subr.bf16.mxu0 0
  %2401 = vmatpush2.bf16.msra.mxu0 0
  %2402 = vmatprep.subr.bf16.mxu0 0
  %2403 = vmatpush2.bf16.msra.mxu0 0
  %2404 = vmatprep.subr.bf16.mxu0 0
  %2405 = vmatpush2.bf16.msra.mxu0 0
  %2406 = vmatprep.subr.bf16.mxu0 0
  %2407 = vmatpush2.bf16.msra.mxu0 0
  %2408 = vmatprep.subr.bf16.mxu0 0
  %2409 = vmatpush2.bf16.msra.mxu0 0
  %2410 = vmatprep.subr.bf16.mxu0 0
  %2411 = vmatpush2.bf16.msra.mxu0 0
  %2412 = vmatprep.subr.bf16.mxu0 0
  %2413 = vmatpush2.bf16.msra.mxu0 0
  %2414 = vmatprep.mubr.bf16.mxu0 0
  %2415 = vmatmul.mubr.bf16.gmra.mxu0 %v2197
  %v2416 = vpop.f32.mrf.mxu0
  %v2417 = vadd.f32 0.0, %v2416
  %v2418 = vpop.f32.mrf.mxu0
  %v2419 = vpop.f32.mrf.mxu0
  %v2420 = vadd.f32 0.0, %v2419
  %v2421 = vpop.f32.mrf.mxu0
  %2422 = vmatprep.mubr.bf16.mxu0 0
  %2423 = vmatmul.mubr.bf16.gmra.mxu0 %v2198
  %v2424 = vpop.f32.mrf.mxu0
  %v2425 = vadd.f32 0.0, %v2424
  %v2426 = vpop.f32.mrf.mxu0
  %v2427 = vpop.f32.mrf.mxu0
  %v2428 = vadd.f32 0.0, %v2427
  %v2429 = vpop.f32.mrf.mxu0
  %2430 = vdwg.mxu0
  %v2447 = vunpack.c.l.b16 %v2301
  %v2448 = vunpack.c.l.b16 %v2302
  %v2449 = vunpack.c.l.b16 %v2303
  %v2450 = vunpack.c.l.b16 %v2304
  %v2451 = vunpack.c.l.b16 %v2305
  %v2452 = vunpack.c.l.b16 %v2306
  %v2453 = vunpack.c.l.b16 %v2307
  %v2454 = vunpack.c.l.b16 %v2308
  %v2455 = vunpack.c.l.b16 %v2309
  %v2456 = vunpack.c.l.b16 %v2310
  %v2457 = vunpack.c.l.b16 %v2311
  %v2458 = vunpack.c.l.b16 %v2312
  %v2459 = vunpack.c.l.b16 %v2313
  %v2460 = vunpack.c.l.b16 %v2314
  %v2461 = vunpack.c.l.b16 %v2315
  %v2462 = vunpack.c.l.b16 %v2316
  %v2463 = vpack.c.b16 %v2448, %v2447
  %v2464 = vpack.c.b16 %v2450, %v2449
  %v2465 = vpack.c.b16 %v2452, %v2451
  %v2466 = vpack.c.b16 %v2454, %v2453
  %v2467 = vpack.c.b16 %v2456, %v2455
  %v2468 = vpack.c.b16 %v2458, %v2457
  %v2469 = vpack.c.b16 %v2460, %v2459
  %v2470 = vpack.c.b16 %v2462, %v2461
  %2479 = vmatprep.subr.bf16.mxu0 0
  %2480 = vmatpush1.bf16.msra.mxu0 %v2470
  %2481 = vmatprep.subr.bf16.mxu0 0
  %2482 = vmatpush1.bf16.msra.mxu0 %v2469
  %2483 = vmatprep.subr.bf16.mxu0 0
  %2484 = vmatpush1.bf16.msra.mxu0 %v2468
  %2485 = vmatprep.subr.bf16.mxu0 0
  %2486 = vmatpush1.bf16.msra.mxu0 %v2467
  %2487 = vmatprep.subr.bf16.mxu0 0
  %2488 = vmatpush1.bf16.msra.mxu0 %v2466
  %2489 = vmatprep.subr.bf16.mxu0 0
  %2490 = vmatpush1.bf16.msra.mxu0 %v2465
  %2491 = vmatprep.subr.bf16.mxu0 0
  %2492 = vmatpush1.bf16.msra.mxu0 %v2464
  %2493 = vmatprep.subr.bf16.mxu0 0
  %2494 = vmatpush1.bf16.msra.mxu0 %v2463
  %2495 = vmatprep.subr.bf16.mxu0 0
  %2496 = vmatpush2.bf16.msra.mxu0 0
  %2497 = vmatprep.subr.bf16.mxu0 0
  %2498 = vmatpush2.bf16.msra.mxu0 0
  %2499 = vmatprep.subr.bf16.mxu0 0
  %2500 = vmatpush2.bf16.msra.mxu0 0
  %2501 = vmatprep.subr.bf16.mxu0 0
  %2502 = vmatpush2.bf16.msra.mxu0 0
  %2503 = vmatprep.subr.bf16.mxu0 0
  %2504 = vmatpush2.bf16.msra.mxu0 0
  %2505 = vmatprep.subr.bf16.mxu0 0
  %2506 = vmatpush2.bf16.msra.mxu0 0
  %2507 = vmatprep.subr.bf16.mxu0 0
  %2508 = vmatpush2.bf16.msra.mxu0 0
  %2509 = vmatprep.subr.bf16.mxu0 0
  %2510 = vmatpush2.bf16.msra.mxu0 0
  %2511 = vmatprep.mubr.bf16.mxu0 0
  %2512 = vmatmul.mubr.bf16.gmra.mxu0 %v2248
  %v2513 = vpop.f32.mrf.mxu0
  %v2514 = vadd.f32 %v2417, %v2513
  %v2515 = vpop.f32.mrf.mxu0
  %v2516 = vpop.f32.mrf.mxu0
  %v2517 = vadd.f32 %v2420, %v2516
  %v2518 = vpop.f32.mrf.mxu0
  %2519 = vmatprep.mubr.bf16.mxu0 0
  %2520 = vmatmul.mubr.bf16.gmra.mxu0 %v2249
  %v2521 = vpop.f32.mrf.mxu0
  %v2522 = vadd.f32 %v2425, %v2521
  %v2523 = vpop.f32.mrf.mxu0
  %v2524 = vpop.f32.mrf.mxu0
  %v2525 = vadd.f32 %v2428, %v2524
  %v2526 = vpop.f32.mrf.mxu0
  %2527 = vdwg.mxu0
  %s2528 = scalar_lea.vmem %s16, 128
  %v2529 = vld [vmem:[%s2528] sm:$0xf]
  %v2530 = vld [vmem:[%s2528 + $0x4] sm:$0xf]
  %v2531 = vld [vmem:[%s2528 + $0x8] sm:$0xf]
  %v2532 = vld [vmem:[%s2528 + $0xc] sm:$0xf]
  %v2533 = vld [vmem:[%s2528 + $0x10] sm:$0xf]
  %v2534 = vld [vmem:[%s2528 + $0x14] sm:$0xf]
  %v2535 = vld [vmem:[%s2528 + $0x18] sm:$0xf]
  %v2536 = vld [vmem:[%s2528 + $0x1c] sm:$0xf]
  %v2537 = vld [vmem:[%s2528 + $0x20] sm:$0xf]
  %v2538 = vld [vmem:[%s2528 + $0x24] sm:$0xf]
  %v2539 = vld [vmem:[%s2528 + $0x28] sm:$0xf]
  %v2540 = vld [vmem:[%s2528 + $0x2c] sm:$0xf]
  %v2541 = vld [vmem:[%s2528 + $0x30] sm:$0xf]
  %v2542 = vld [vmem:[%s2528 + $0x34] sm:$0xf]
  %v2543 = vld [vmem:[%s2528 + $0x38] sm:$0xf]
  %v2544 = vld [vmem:[%s2528 + $0x3c] sm:$0xf]
  %v2561 = vunpack.c.l.b16 %v2529
  %v2562 = vunpack.c.l.b16 %v2530
  %v2563 = vunpack.c.l.b16 %v2531
  %v2564 = vunpack.c.l.b16 %v2532
  %v2565 = vunpack.c.l.b16 %v2533
  %v2566 = vunpack.c.l.b16 %v2534
  %v2567 = vunpack.c.l.b16 %v2535
  %v2568 = vunpack.c.l.b16 %v2536
  %v2569 = vunpack.c.l.b16 %v2537
  %v2570 = vunpack.c.l.b16 %v2538
  %v2571 = vunpack.c.l.b16 %v2539
  %v2572 = vunpack.c.l.b16 %v2540
  %v2573 = vunpack.c.l.b16 %v2541
  %v2574 = vunpack.c.l.b16 %v2542
  %v2575 = vunpack.c.l.b16 %v2543
  %v2576 = vunpack.c.l.b16 %v2544
  %v2577 = vpack.c.b16 %v2562, %v2561
  %v2578 = vpack.c.b16 %v2564, %v2563
  %v2579 = vpack.c.b16 %v2566, %v2565
  %v2580 = vpack.c.b16 %v2568, %v2567
  %v2581 = vpack.c.b16 %v2570, %v2569
  %v2582 = vpack.c.b16 %v2572, %v2571
  %v2583 = vpack.c.b16 %v2574, %v2573
  %v2584 = vpack.c.b16 %v2576, %v2575
  %2593 = vmatprep.subr.bf16.mxu0 0
  %2594 = vmatpush1.bf16.msra.mxu0 %v2584
  %2595 = vmatprep.subr.bf16.mxu0 0
  %2596 = vmatpush1.bf16.msra.mxu0 %v2583
  %2597 = vmatprep.subr.bf16.mxu0 0
  %2598 = vmatpush1.bf16.msra.mxu0 %v2582
  %2599 = vmatprep.subr.bf16.mxu0 0
  %2600 = vmatpush1.bf16.msra.mxu0 %v2581
  %2601 = vmatprep.subr.bf16.mxu0 0
  %2602 = vmatpush1.bf16.msra.mxu0 %v2580
  %2603 = vmatprep.subr.bf16.mxu0 0
  %2604 = vmatpush1.bf16.msra.mxu0 %v2579
  %2605 = vmatprep.subr.bf16.mxu0 0
  %2606 = vmatpush1.bf16.msra.mxu0 %v2578
  %2607 = vmatprep.subr.bf16.mxu0 0
  %2608 = vmatpush1.bf16.msra.mxu0 %v2577
  %2609 = vmatprep.subr.bf16.mxu0 0
  %2610 = vmatpush2.bf16.msra.mxu0 0
  %2611 = vmatprep.subr.bf16.mxu0 0
  %2612 = vmatpush2.bf16.msra.mxu0 0
  %2613 = vmatprep.subr.bf16.mxu0 0
  %2614 = vmatpush2.bf16.msra.mxu0 0
  %2615 = vmatprep.subr.bf16.mxu0 0
  %2616 = vmatpush2.bf16.msra.mxu0 0
  %2617 = vmatprep.subr.bf16.mxu0 0
  %2618 = vmatpush2.bf16.msra.mxu0 0
  %2619 = vmatprep.subr.bf16.mxu0 0
  %2620 = vmatpush2.bf16.msra.mxu0 0
  %2621 = vmatprep.subr.bf16.mxu0 0
  %2622 = vmatpush2.bf16.msra.mxu0 0
  %2623 = vmatprep.subr.bf16.mxu0 0
  %2624 = vmatpush2.bf16.msra.mxu0 0
  %2625 = vmatprep.mubr.bf16.mxu0 0
  %2626 = vmatmul.mubr.bf16.gmra.mxu0 %v2299
  %v2627 = vpop.f32.mrf.mxu0
  %v2628 = vadd.f32 0.0, %v2627
  %v2629 = vpop.f32.mrf.mxu0
  %v2630 = vpop.f32.mrf.mxu0
  %v2631 = vadd.f32 0.0, %v2630
  %v2632 = vpop.f32.mrf.mxu0
  %2633 = vmatprep.mubr.bf16.mxu0 0
  %2634 = vmatmul.mubr.bf16.gmra.mxu0 %v2300
  %v2635 = vpop.f32.mrf.mxu0
  %v2636 = vadd.f32 0.0, %v2635
  %v2637 = vpop.f32.mrf.mxu0
  %v2638 = vpop.f32.mrf.mxu0
  %v2639 = vadd.f32 0.0, %v2638
  %v2640 = vpop.f32.mrf.mxu0
  %2641 = vdwg.mxu0
  %v2642 = vadd.f32 %v2514, %v2628
  %v2643 = vadd.f32 %v2517, %v2631
  %v2644 = vadd.f32 %v2522, %v2636
  %v2645 = vadd.f32 %v2525, %v2639
  %v2646 = vmax.f32 %v2642, 0.0
  %v2647 = vmax.f32 %v2643, 0.0
  %v2648 = vmax.f32 %v2644, 0.0
  %v2649 = vmax.f32 %v2645, 0.0
  %v2650 = vpack.c.bf16 %v2647, %v2646
  %v2651 = vpack.c.bf16 %v2649, %v2648
  %2652 = vmatprep.subr.bf16.mxu0 0
  %2653 = vmatpush1.bf16.msra.mxu0 0
  %2654 = vmatprep.subr.bf16.mxu0 0
  %2655 = vmatpush1.bf16.msra.mxu0 0
  %2656 = vmatprep.subr.bf16.mxu0 0
  %2657 = vmatpush1.bf16.msra.mxu0 0
  %2658 = vmatprep.subr.bf16.mxu0 0
  %2659 = vmatpush1.bf16.msra.mxu0 0
  %2660 = vmatprep.subr.bf16.mxu0 0
  %2661 = vmatpush1.bf16.msra.mxu0 0
  %2662 = vmatprep.subr.bf16.mxu0 0
  %2663 = vmatpush1.bf16.msra.mxu0 0
  %2664 = vmatprep.subr.bf16.mxu0 0
  %2665 = vmatpush1.bf16.msra.mxu0 %v2651
  %2666 = vmatprep.subr.bf16.mxu0 0
  %2667 = vmatpush1.bf16.msra.mxu0 %v2650
  %2668 = vmatprep.subr.bf16.mxu0 0
  %2669 = vmatpush2.bf16.msra.mxu0 0
  %2670 = vmatprep.subr.bf16.mxu0 0
  %2671 = vmatpush2.bf16.msra.mxu0 0
  %2672 = vmatprep.subr.bf16.mxu0 0
  %2673 = vmatpush2.bf16.msra.mxu0 0
  %2674 = vmatprep.subr.bf16.mxu0 0
  %2675 = vmatpush2.bf16.msra.mxu0 0
  %2676 = vmatprep.subr.bf16.mxu0 0
  %2677 = vmatpush2.bf16.msra.mxu0 0
  %2678 = vmatprep.subr.bf16.mxu0 0
  %2679 = vmatpush2.bf16.msra.mxu0 0
  %2680 = vmatprep.subr.bf16.mxu0 0
  %2681 = vmatpush2.bf16.msra.mxu0 0
  %2682 = vmatprep.subr.bf16.mxu0 0
  %2683 = vmatpush2.bf16.msra.mxu0 0
  %2684 = vmatprep.mubr.bf16.mxu0 0
  %2685 = vmatmul.mubr.bf16.gmra.mxu0 %v318
  %v2686 = vpop.f32.mrf.mxu0
  %v2687 = vadd.f32 0.0, %v2686
  %v2688 = vpop.f32.mrf.mxu0
  %v2689 = vpop.f32.mrf.mxu0
  %v2690 = vadd.f32 0.0, %v2689
  %v2691 = vpop.f32.mrf.mxu0
  %2692 = vmatprep.mubr.bf16.mxu0 0
  %2693 = vmatmul.mubr.bf16.gmra.mxu0 %v321
  %v2694 = vpop.f32.mrf.mxu0
  %v2695 = vadd.f32 0.0, %v2694
  %v2696 = vpop.f32.mrf.mxu0
  %v2697 = vpop.f32.mrf.mxu0
  %v2698 = vadd.f32 0.0, %v2697
  %v2699 = vpop.f32.mrf.mxu0
  %2700 = vdwg.mxu0
  %v2701 = vpack.c.bf16 %v2690, %v2687
  %v2702 = vpack.c.bf16 %v2698, %v2695
  %2703 = vmatprep.subr.bf16.mxu0 0
  %2704 = vmatpush1.bf16.msra.mxu0 0
  %2705 = vmatprep.subr.bf16.mxu0 0
  %2706 = vmatpush1.bf16.msra.mxu0 0
  %2707 = vmatprep.subr.bf16.mxu0 0
  %2708 = vmatpush1.bf16.msra.mxu0 0
  %2709 = vmatprep.subr.bf16.mxu0 0
  %2710 = vmatpush1.bf16.msra.mxu0 0
  %2711 = vmatprep.subr.bf16.mxu0 0
  %2712 = vmatpush1.bf16.msra.mxu0 0
  %2713 = vmatprep.subr.bf16.mxu0 0
  %2714 = vmatpush1.bf16.msra.mxu0 0
  %2715 = vmatprep.subr.bf16.mxu0 0
  %2716 = vmatpush1.bf16.msra.mxu0 %v2651
  %2717 = vmatprep.subr.bf16.mxu0 0
  %2718 = vmatpush1.bf16.msra.mxu0 %v2650
  %2719 = vmatprep.subr.bf16.mxu0 0
  %2720 = vmatpush2.bf16.msra.mxu0 0
  %2721 = vmatprep.subr.bf16.mxu0 0
  %2722 = vmatpush2.bf16.msra.mxu0 0
  %2723 = vmatprep.subr.bf16.mxu0 0
  %2724 = vmatpush2.bf16.msra.mxu0 0
  %2725 = vmatprep.subr.bf16.mxu0 0
  %2726 = vmatpush2.bf16.msra.mxu0 0
  %2727 = vmatprep.subr.bf16.mxu0 0
  %2728 = vmatpush2.bf16.msra.mxu0 0
  %2729 = vmatprep.subr.bf16.mxu0 0
  %2730 = vmatpush2.bf16.msra.mxu0 0
  %2731 = vmatprep.subr.bf16.mxu0 0
  %2732 = vmatpush2.bf16.msra.mxu0 0
  %2733 = vmatprep.subr.bf16.mxu0 0
  %2734 = vmatpush2.bf16.msra.mxu0 0
  %2735 = vmatprep.mubr.bf16.mxu0 0
  %2736 = vmatmul.mubr.bf16.gmra.mxu0 %v385
  %v2737 = vpop.f32.mrf.mxu0
  %v2738 = vadd.f32 0.0, %v2737
  %v2739 = vpop.f32.mrf.mxu0
  %v2740 = vpop.f32.mrf.mxu0
  %v2741 = vadd.f32 0.0, %v2740
  %v2742 = vpop.f32.mrf.mxu0
  %2743 = vmatprep.mubr.bf16.mxu0 0
  %2744 = vmatmul.mubr.bf16.gmra.mxu0 %v388
  %v2745 = vpop.f32.mrf.mxu0
  %v2746 = vadd.f32 0.0, %v2745
  %v2747 = vpop.f32.mrf.mxu0
  %v2748 = vpop.f32.mrf.mxu0
  %v2749 = vadd.f32 0.0, %v2748
  %v2750 = vpop.f32.mrf.mxu0
  %2751 = vdwg.mxu0
  %v2752 = vpack.c.bf16 %v2741, %v2738
  %v2753 = vpack.c.bf16 %v2749, %v2746
  %v2754 = vld [vmem:[%s17] sm:$0xf]
  %v2755 = vld [vmem:[%s17 + $0x4] sm:$0xf]
  %v2756 = vld [vmem:[%s17 + $0x8] sm:$0xf]
  %v2757 = vld [vmem:[%s17 + $0xc] sm:$0xf]
  %v2758 = vld [vmem:[%s17 + $0x10] sm:$0xf]
  %v2759 = vld [vmem:[%s17 + $0x14] sm:$0xf]
  %v2760 = vld [vmem:[%s17 + $0x18] sm:$0xf]
  %v2761 = vld [vmem:[%s17 + $0x1c] sm:$0xf]
  %v2762 = vld [vmem:[%s17 + $0x20] sm:$0xf]
  %v2763 = vld [vmem:[%s17 + $0x24] sm:$0xf]
  %v2764 = vld [vmem:[%s17 + $0x28] sm:$0xf]
  %v2765 = vld [vmem:[%s17 + $0x2c] sm:$0xf]
  %v2766 = vld [vmem:[%s17 + $0x30] sm:$0xf]
  %v2767 = vld [vmem:[%s17 + $0x34] sm:$0xf]
  %v2768 = vld [vmem:[%s17 + $0x38] sm:$0xf]
  %v2769 = vld [vmem:[%s17 + $0x3c] sm:$0xf]
  %s2770 = scalar_lea.vmem %s17, 64
  %v2771 = vld [vmem:[%s2770] sm:$0xf]
  %v2772 = vld [vmem:[%s2770 + $0x4] sm:$0xf]
  %v2773 = vld [vmem:[%s2770 + $0x8] sm:$0xf]
  %v2774 = vld [vmem:[%s2770 + $0xc] sm:$0xf]
  %v2775 = vld [vmem:[%s2770 + $0x10] sm:$0xf]
  %v2776 = vld [vmem:[%s2770 + $0x14] sm:$0xf]
  %v2777 = vld [vmem:[%s2770 + $0x18] sm:$0xf]
  %v2778 = vld [vmem:[%s2770 + $0x1c] sm:$0xf]
  %v2779 = vld [vmem:[%s2770 + $0x20] sm:$0xf]
  %v2780 = vld [vmem:[%s2770 + $0x24] sm:$0xf]
  %v2781 = vld [vmem:[%s2770 + $0x28] sm:$0xf]
  %v2782 = vld [vmem:[%s2770 + $0x2c] sm:$0xf]
  %v2783 = vld [vmem:[%s2770 + $0x30] sm:$0xf]
  %v2784 = vld [vmem:[%s2770 + $0x34] sm:$0xf]
  %v2785 = vld [vmem:[%s2770 + $0x38] sm:$0xf]
  %v2786 = vld [vmem:[%s2770 + $0x3c] sm:$0xf]
  %v2803 = vunpack.c.l.b16 %v2771
  %v2804 = vunpack.c.l.b16 %v2772
  %v2805 = vunpack.c.l.b16 %v2773
  %v2806 = vunpack.c.l.b16 %v2774
  %v2807 = vunpack.c.l.b16 %v2775
  %v2808 = vunpack.c.l.b16 %v2776
  %v2809 = vunpack.c.l.b16 %v2777
  %v2810 = vunpack.c.l.b16 %v2778
  %v2811 = vunpack.c.l.b16 %v2779
  %v2812 = vunpack.c.l.b16 %v2780
  %v2813 = vunpack.c.l.b16 %v2781
  %v2814 = vunpack.c.l.b16 %v2782
  %v2815 = vunpack.c.l.b16 %v2783
  %v2816 = vunpack.c.l.b16 %v2784
  %v2817 = vunpack.c.l.b16 %v2785
  %v2818 = vunpack.c.l.b16 %v2786
  %v2819 = vpack.c.b16 %v2804, %v2803
  %v2820 = vpack.c.b16 %v2806, %v2805
  %v2821 = vpack.c.b16 %v2808, %v2807
  %v2822 = vpack.c.b16 %v2810, %v2809
  %v2823 = vpack.c.b16 %v2812, %v2811
  %v2824 = vpack.c.b16 %v2814, %v2813
  %v2825 = vpack.c.b16 %v2816, %v2815
  %v2826 = vpack.c.b16 %v2818, %v2817
  %2835 = vmatprep.subr.bf16.mxu0 0
  %2836 = vmatpush1.bf16.msra.mxu0 %v2826
  %2837 = vmatprep.subr.bf16.mxu0 0
  %2838 = vmatpush1.bf16.msra.mxu0 %v2825
  %2839 = vmatprep.subr.bf16.mxu0 0
  %2840 = vmatpush1.bf16.msra.mxu0 %v2824
  %2841 = vmatprep.subr.bf16.mxu0 0
  %2842 = vmatpush1.bf16.msra.mxu0 %v2823
  %2843 = vmatprep.subr.bf16.mxu0 0
  %2844 = vmatpush1.bf16.msra.mxu0 %v2822
  %2845 = vmatprep.subr.bf16.mxu0 0
  %2846 = vmatpush1.bf16.msra.mxu0 %v2821
  %2847 = vmatprep.subr.bf16.mxu0 0
  %2848 = vmatpush1.bf16.msra.mxu0 %v2820
  %2849 = vmatprep.subr.bf16.mxu0 0
  %2850 = vmatpush1.bf16.msra.mxu0 %v2819
  %2851 = vmatprep.subr.bf16.mxu0 0
  %2852 = vmatpush2.bf16.msra.mxu0 0
  %2853 = vmatprep.subr.bf16.mxu0 0
  %2854 = vmatpush2.bf16.msra.mxu0 0
  %2855 = vmatprep.subr.bf16.mxu0 0
  %2856 = vmatpush2.bf16.msra.mxu0 0
  %2857 = vmatprep.subr.bf16.mxu0 0
  %2858 = vmatpush2.bf16.msra.mxu0 0
  %2859 = vmatprep.subr.bf16.mxu0 0
  %2860 = vmatpush2.bf16.msra.mxu0 0
  %2861 = vmatprep.subr.bf16.mxu0 0
  %2862 = vmatpush2.bf16.msra.mxu0 0
  %2863 = vmatprep.subr.bf16.mxu0 0
  %2864 = vmatpush2.bf16.msra.mxu0 0
  %2865 = vmatprep.subr.bf16.mxu0 0
  %2866 = vmatpush2.bf16.msra.mxu0 0
  %2867 = vmatprep.mubr.bf16.mxu0 0
  %2868 = vmatmul.mubr.bf16.gmra.mxu0 %v2650
  %v2869 = vpop.f32.mrf.mxu0
  %v2870 = vadd.f32 0.0, %v2869
  %v2871 = vpop.f32.mrf.mxu0
  %v2872 = vpop.f32.mrf.mxu0
  %v2873 = vadd.f32 0.0, %v2872
  %v2874 = vpop.f32.mrf.mxu0
  %2875 = vmatprep.mubr.bf16.mxu0 0
  %2876 = vmatmul.mubr.bf16.gmra.mxu0 %v2651
  %v2877 = vpop.f32.mrf.mxu0
  %v2878 = vadd.f32 0.0, %v2877
  %v2879 = vpop.f32.mrf.mxu0
  %v2880 = vpop.f32.mrf.mxu0
  %v2881 = vadd.f32 0.0, %v2880
  %v2882 = vpop.f32.mrf.mxu0
  %2883 = vdwg.mxu0
  %v2900 = vunpack.c.l.b16 %v2754
  %v2901 = vunpack.c.l.b16 %v2755
  %v2902 = vunpack.c.l.b16 %v2756
  %v2903 = vunpack.c.l.b16 %v2757
  %v2904 = vunpack.c.l.b16 %v2758
  %v2905 = vunpack.c.l.b16 %v2759
  %v2906 = vunpack.c.l.b16 %v2760
  %v2907 = vunpack.c.l.b16 %v2761
  %v2908 = vunpack.c.l.b16 %v2762
  %v2909 = vunpack.c.l.b16 %v2763
  %v2910 = vunpack.c.l.b16 %v2764
  %v2911 = vunpack.c.l.b16 %v2765
  %v2912 = vunpack.c.l.b16 %v2766
  %v2913 = vunpack.c.l.b16 %v2767
  %v2914 = vunpack.c.l.b16 %v2768
  %v2915 = vunpack.c.l.b16 %v2769
  %v2916 = vpack.c.b16 %v2901, %v2900
  %v2917 = vpack.c.b16 %v2903, %v2902
  %v2918 = vpack.c.b16 %v2905, %v2904
  %v2919 = vpack.c.b16 %v2907, %v2906
  %v2920 = vpack.c.b16 %v2909, %v2908
  %v2921 = vpack.c.b16 %v2911, %v2910
  %v2922 = vpack.c.b16 %v2913, %v2912
  %v2923 = vpack.c.b16 %v2915, %v2914
  %2932 = vmatprep.subr.bf16.mxu0 0
  %2933 = vmatpush1.bf16.msra.mxu0 %v2923
  %2934 = vmatprep.subr.bf16.mxu0 0
  %2935 = vmatpush1.bf16.msra.mxu0 %v2922
  %2936 = vmatprep.subr.bf16.mxu0 0
  %2937 = vmatpush1.bf16.msra.mxu0 %v2921
  %2938 = vmatprep.subr.bf16.mxu0 0
  %2939 = vmatpush1.bf16.msra.mxu0 %v2920
  %2940 = vmatprep.subr.bf16.mxu0 0
  %2941 = vmatpush1.bf16.msra.mxu0 %v2919
  %2942 = vmatprep.subr.bf16.mxu0 0
  %2943 = vmatpush1.bf16.msra.mxu0 %v2918
  %2944 = vmatprep.subr.bf16.mxu0 0
  %2945 = vmatpush1.bf16.msra.mxu0 %v2917
  %2946 = vmatprep.subr.bf16.mxu0 0
  %2947 = vmatpush1.bf16.msra.mxu0 %v2916
  %2948 = vmatprep.subr.bf16.mxu0 0
  %2949 = vmatpush2.bf16.msra.mxu0 0
  %2950 = vmatprep.subr.bf16.mxu0 0
  %2951 = vmatpush2.bf16.msra.mxu0 0
  %2952 = vmatprep.subr.bf16.mxu0 0
  %2953 = vmatpush2.bf16.msra.mxu0 0
  %2954 = vmatprep.subr.bf16.mxu0 0
  %2955 = vmatpush2.bf16.msra.mxu0 0
  %2956 = vmatprep.subr.bf16.mxu0 0
  %2957 = vmatpush2.bf16.msra.mxu0 0
  %2958 = vmatprep.subr.bf16.mxu0 0
  %2959 = vmatpush2.bf16.msra.mxu0 0
  %2960 = vmatprep.subr.bf16.mxu0 0
  %2961 = vmatpush2.bf16.msra.mxu0 0
  %2962 = vmatprep.subr.bf16.mxu0 0
  %2963 = vmatpush2.bf16.msra.mxu0 0
  %2964 = vmatprep.mubr.bf16.mxu0 0
  %2965 = vmatmul.mubr.bf16.gmra.mxu0 %v2701
  %v2966 = vpop.f32.mrf.mxu0
  %v2967 = vadd.f32 %v2870, %v2966
  %v2968 = vpop.f32.mrf.mxu0
  %v2969 = vpop.f32.mrf.mxu0
  %v2970 = vadd.f32 %v2873, %v2969
  %v2971 = vpop.f32.mrf.mxu0
  %2972 = vmatprep.mubr.bf16.mxu0 0
  %2973 = vmatmul.mubr.bf16.gmra.mxu0 %v2702
  %v2974 = vpop.f32.mrf.mxu0
  %v2975 = vadd.f32 %v2878, %v2974
  %v2976 = vpop.f32.mrf.mxu0
  %v2977 = vpop.f32.mrf.mxu0
  %v2978 = vadd.f32 %v2881, %v2977
  %v2979 = vpop.f32.mrf.mxu0
  %2980 = vdwg.mxu0
  %s2981 = scalar_lea.vmem %s17, 128
  %v2982 = vld [vmem:[%s2981] sm:$0xf]
  %v2983 = vld [vmem:[%s2981 + $0x4] sm:$0xf]
  %v2984 = vld [vmem:[%s2981 + $0x8] sm:$0xf]
  %v2985 = vld [vmem:[%s2981 + $0xc] sm:$0xf]
  %v2986 = vld [vmem:[%s2981 + $0x10] sm:$0xf]
  %v2987 = vld [vmem:[%s2981 + $0x14] sm:$0xf]
  %v2988 = vld [vmem:[%s2981 + $0x18] sm:$0xf]
  %v2989 = vld [vmem:[%s2981 + $0x1c] sm:$0xf]
  %v2990 = vld [vmem:[%s2981 + $0x20] sm:$0xf]
  %v2991 = vld [vmem:[%s2981 + $0x24] sm:$0xf]
  %v2992 = vld [vmem:[%s2981 + $0x28] sm:$0xf]
  %v2993 = vld [vmem:[%s2981 + $0x2c] sm:$0xf]
  %v2994 = vld [vmem:[%s2981 + $0x30] sm:$0xf]
  %v2995 = vld [vmem:[%s2981 + $0x34] sm:$0xf]
  %v2996 = vld [vmem:[%s2981 + $0x38] sm:$0xf]
  %v2997 = vld [vmem:[%s2981 + $0x3c] sm:$0xf]
  %v3014 = vunpack.c.l.b16 %v2982
  %v3015 = vunpack.c.l.b16 %v2983
  %v3016 = vunpack.c.l.b16 %v2984
  %v3017 = vunpack.c.l.b16 %v2985
  %v3018 = vunpack.c.l.b16 %v2986
  %v3019 = vunpack.c.l.b16 %v2987
  %v3020 = vunpack.c.l.b16 %v2988
  %v3021 = vunpack.c.l.b16 %v2989
  %v3022 = vunpack.c.l.b16 %v2990
  %v3023 = vunpack.c.l.b16 %v2991
  %v3024 = vunpack.c.l.b16 %v2992
  %v3025 = vunpack.c.l.b16 %v2993
  %v3026 = vunpack.c.l.b16 %v2994
  %v3027 = vunpack.c.l.b16 %v2995
  %v3028 = vunpack.c.l.b16 %v2996
  %v3029 = vunpack.c.l.b16 %v2997
  %v3030 = vpack.c.b16 %v3015, %v3014
  %v3031 = vpack.c.b16 %v3017, %v3016
  %v3032 = vpack.c.b16 %v3019, %v3018
  %v3033 = vpack.c.b16 %v3021, %v3020
  %v3034 = vpack.c.b16 %v3023, %v3022
  %v3035 = vpack.c.b16 %v3025, %v3024
  %v3036 = vpack.c.b16 %v3027, %v3026
  %v3037 = vpack.c.b16 %v3029, %v3028
  %3046 = vmatprep.subr.bf16.mxu0 0
  %3047 = vmatpush1.bf16.msra.mxu0 %v3037
  %3048 = vmatprep.subr.bf16.mxu0 0
  %3049 = vmatpush1.bf16.msra.mxu0 %v3036
  %3050 = vmatprep.subr.bf16.mxu0 0
  %3051 = vmatpush1.bf16.msra.mxu0 %v3035
  %3052 = vmatprep.subr.bf16.mxu0 0
  %3053 = vmatpush1.bf16.msra.mxu0 %v3034
  %3054 = vmatprep.subr.bf16.mxu0 0
  %3055 = vmatpush1.bf16.msra.mxu0 %v3033
  %3056 = vmatprep.subr.bf16.mxu0 0
  %3057 = vmatpush1.bf16.msra.mxu0 %v3032
  %3058 = vmatprep.subr.bf16.mxu0 0
  %3059 = vmatpush1.bf16.msra.mxu0 %v3031
  %3060 = vmatprep.subr.bf16.mxu0 0
  %3061 = vmatpush1.bf16.msra.mxu0 %v3030
  %3062 = vmatprep.subr.bf16.mxu0 0
  %3063 = vmatpush2.bf16.msra.mxu0 0
  %3064 = vmatprep.subr.bf16.mxu0 0
  %3065 = vmatpush2.bf16.msra.mxu0 0
  %3066 = vmatprep.subr.bf16.mxu0 0
  %3067 = vmatpush2.bf16.msra.mxu0 0
  %3068 = vmatprep.subr.bf16.mxu0 0
  %3069 = vmatpush2.bf16.msra.mxu0 0
  %3070 = vmatprep.subr.bf16.mxu0 0
  %3071 = vmatpush2.bf16.msra.mxu0 0
  %3072 = vmatprep.subr.bf16.mxu0 0
  %3073 = vmatpush2.bf16.msra.mxu0 0
  %3074 = vmatprep.subr.bf16.mxu0 0
  %3075 = vmatpush2.bf16.msra.mxu0 0
  %3076 = vmatprep.subr.bf16.mxu0 0
  %3077 = vmatpush2.bf16.msra.mxu0 0
  %3078 = vmatprep.mubr.bf16.mxu0 0
  %3079 = vmatmul.mubr.bf16.gmra.mxu0 %v2752
  %v3080 = vpop.f32.mrf.mxu0
  %v3081 = vadd.f32 0.0, %v3080
  %v3082 = vpop.f32.mrf.mxu0
  %v3083 = vpop.f32.mrf.mxu0
  %v3084 = vadd.f32 0.0, %v3083
  %v3085 = vpop.f32.mrf.mxu0
  %3086 = vmatprep.mubr.bf16.mxu0 0
  %3087 = vmatmul.mubr.bf16.gmra.mxu0 %v2753
  %v3088 = vpop.f32.mrf.mxu0
  %v3089 = vadd.f32 0.0, %v3088
  %v3090 = vpop.f32.mrf.mxu0
  %v3091 = vpop.f32.mrf.mxu0
  %v3092 = vadd.f32 0.0, %v3091
  %v3093 = vpop.f32.mrf.mxu0
  %3094 = vdwg.mxu0
  %v3095 = vadd.f32 %v2967, %v3081
  %v3096 = vadd.f32 %v2970, %v3084
  %v3097 = vadd.f32 %v2975, %v3089
  %v3098 = vadd.f32 %v2978, %v3092
  %v3099 = vxor.u32 %v3095, 2147483648
  %v3100 = vxor.u32 %v3096, 2147483648
  %v3101 = vxor.u32 %v3097, 2147483648
  %v3102 = vxor.u32 %v3098, 2147483648
  %v3103 = vmul.f32 %v3099, 1.442695
  %v3104 = vpow.pop %v3103
  %v3105 = vmul.f32 %v3100, 1.442695
  %v3106 = vpow.pop %v3105
  %v3107 = vmul.f32 %v3101, 1.442695
  %v3108 = vpow.pop %v3107
  %v3109 = vmul.f32 %v3102, 1.442695
  %v3110 = vpow.pop %v3109
  %v3111 = vadd.f32 %v3104, 1.0
  %v3112 = vadd.f32 %v3106, 1.0
  %v3113 = vadd.f32 %v3108, 1.0
  %v3114 = vadd.f32 %v3110, 1.0
  %v3115 = vrcp.pop %v3111
  %v3116 = vmul.f32 1.0, %v3115
  %v3117 = vrcp.pop %v3112
  %v3118 = vmul.f32 1.0, %v3117
  %v3119 = vrcp.pop %v3113
  %v3120 = vmul.f32 1.0, %v3119
  %v3121 = vrcp.pop %v3114
  %v3122 = vmul.f32 1.0, %v3121
  %3123 = vst [vmem:[%s18] sm:$0xff] %v3116
  %3124 = vst [vmem:[%s18 + $0x8] sm:$0xff] %v3118
  %3125 = vst [vmem:[%s18 + $0x10] sm:$0xff] %v3120
  %3126 = vst [vmem:[%s18 + $0x18] sm:$0xff] %v3122
  // Predicated region
  $region74: #{simple_cnn.1} parent=0 // pred_check
    _
  $region75: #{simple_cnn.1} parent=0 // pred_check_branch
    %3128 = sbr.rel (0) target = $region77
  $region76: #{simple_cnn.1} parent=0 // pred_region
    _
  $region77: #{simple_cnn.1} parent=0 // pred_fallthru
    _
  // Predicated region
  $region78: #{simple_cnn.1} parent=0 // pred_check
    _
  $region79: #{simple_cnn.1} parent=0 // pred_check_branch
    %3130 = sbr.rel (0) target = $region81
  $region80: #{simple_cnn.1} parent=0 // pred_region
    _
  $region81: #{simple_cnn.1} parent=0 // pred_fallthru
    _

</llo_original>
